<compile_context>
chip_gen: v5e
topology: v5e:2x2
jax: 0.10.0
libtpu: 0.0.40
codegen_flags: <defaults>
</compile_context>

<pallas_src>
import jax
import jax.numpy as jnp
from jax import lax
from jax.experimental import pallas as pl
from jax.experimental.pallas import tpu as pltpu


# ---------------------------------------------------------------------------
# Fused PNet kernel: one grid step == one image, fully VMEM-resident.
# ---------------------------------------------------------------------------
def _pnet_fused_kernel(x_ref, w1_ref, w2_ref, w3_ref, wh_ref, pk_ref,
                       out_ref, pool_scr, c2_scr):
    H, _, W = x_ref.shape                        # (H, 3, W): width in lanes
    OH1, OW1 = H - 2, W - 2                      # conv1 (3x3, VALID)
    PH, PW = (OH1 + 1) // 2, (OW1 + 1) // 2      # MaxPool2d(2, 2, ceil_mode=True)
    OH2, OW2 = PH - 2, PW - 2                    # conv2
    OH3, OW3 = OH2 - 2, OW2 - 2                  # conv3

    w1 = w1_ref[...]                             # [10, 27]
    w2 = w2_ref[...]                             # [16, 90]
    w3 = w3_ref[...]                             # [32, 144]
    wh = wh_ref[...]                             # [6, 32]  (conv4_2 | conv4_1)
    pk = pk_ref[...]                             # [32, 8]  packed bias/alpha cols

    # Hoisted per-layer broadcasts (JAX does not CSE broadcast_in_dim).
    b1 = jnp.broadcast_to(pk[0:10, 0:1], (10, OW1))
    a1 = jnp.broadcast_to(pk[0:10, 1:2], (10, OW1))
    b2 = jnp.broadcast_to(pk[0:16, 2:3], (16, OW2))
    a2 = jnp.broadcast_to(pk[0:16, 3:4], (16, OW2))
    b3 = jnp.broadcast_to(pk[0:32, 4:5], (32, OW3))
    a3 = jnp.broadcast_to(pk[0:32, 5:6], (32, OW3))
    bh = jnp.broadcast_to(pk[0:6, 6:7], (6, OW3))

    def conv3x3_row(src_ref, r, out_w, wp, bias, alpha):
        """One VALID 3x3 conv output row + bias + per-channel PReLU.

        One packed MXU dot [Cout, 9*Cin] x [9*Cin, out_w]; the patch is built
        from a 3-row strip of the VMEM-resident source (never through HBM).
        """
        strip = src_ref[pl.ds(r, 3), :, :]              # [3, Cin, in_w]
        parts = []
        for i in range(3):
            row = strip[i]                              # [Cin, in_w]
            for j in range(3):
                parts.append(row[:, j:j + out_w])       # [Cin, out_w]
        patch = jnp.concatenate(parts, axis=0)          # [9*Cin, out_w]
        y = jnp.dot(wp, patch, preferred_element_type=jnp.float32) + bias
        return jnp.where(y > 0.0, y, y * alpha)         # PReLU

    # 0/1 even-column selector for ceil-mode width pooling (hoisted, built once).
    rows = lax.broadcasted_iota(jnp.int32, (OW1, PW), 0)
    cols = lax.broadcasted_iota(jnp.int32, (OW1, PW), 1)
    sel_even = (rows == 2 * cols).astype(jnp.float32)   # [OW1, PW]

    # ---- conv1 + prelu1 + fused 2x2/2 ceil-mode max pool ---------------------
    @pl.loop(0, PH, unroll=True)
    def _(pr):
        r0 = pr * 2
        r1 = jnp.minimum(r0 + 1, OH1 - 1)               # ceil-mode row clamp
        ya = conv3x3_row(x_ref, r0, OW1, w1, b1, a1)
        yb = conv3x3_row(x_ref, r1, OW1, w1, b1, a1)
        m = jnp.maximum(ya, yb)                         # [10, OW1] row-pair max
        # Column-pair max: lane shift-left (last col duplicated -> ceil clamp).
        m_next = jnp.concatenate([m[:, 1:], m[:, OW1 - 1:OW1]], axis=1)
        paired = jnp.maximum(m, m_next)                 # [10, OW1]
        pooled = jnp.dot(paired, sel_even, preferred_element_type=jnp.float32)
        pool_scr[pl.ds(pr, 1), :, :] = pooled[None, :, :]       # [1, 10, PW]

    # ---- conv2 + prelu2 ------------------------------------------------------
    @pl.loop(0, OH2, unroll=True)
    def _(r):
        y = conv3x3_row(pool_scr, r, OW2, w2, b2, a2)           # [16, OW2]
        c2_scr[pl.ds(r, 1), :, :] = y[None, :, :]

    # ---- conv3 + prelu3 + fused 1x1 heads ------------------------------------
    @pl.loop(0, OH3, unroll=True)
    def _(r):
        c3 = conv3x3_row(c2_scr, r, OW3, w3, b3, a3)            # [32, OW3]
        y = jnp.dot(wh, c3, preferred_element_type=jnp.float32) + bh  # [6, OW3]
        # 2-class channel softmax == sigmoid(logit difference); p1 = 1 - p0.
        p0 = 1.0 / (1.0 + jnp.exp(y[5:6, :] - y[4:5, :]))       # p(class 0)
        head = jnp.concatenate([y[0:4, :], p0, 1.0 - p0], axis=0)     # [6, OW3]
        out_ref[pl.ds(r, 1), :, :] = head[None, :, :]           # full-lane row store


# ---------------------------------------------------------------------------
# Wrapper: layout plumbing only (NCHW <-> row-major, weight packing, specs).
# ---------------------------------------------------------------------------
def pnet_forward(x_nchw, p):
    # (n, 3, H, W) -> (n, H, 3, W): width stays in the lane dim inside the kernel.
    x = jnp.transpose(x_nchw.astype(jnp.float32), (0, 2, 1, 3))
    n, h, c, w = x.shape
    assert c == 3 and h >= 12 and w >= 12

    oh1, ow1 = h - 2, w - 2
    ph, pw = (oh1 + 1) // 2, (ow1 + 1) // 2
    oh2, ow2 = ph - 2, pw - 2
    oh3, ow3 = oh2 - 2, ow2 - 2

    # Conv weights prepacked to [Cout, 9*Cin] matching the in-kernel patch
    # ordering (kernel-row, kernel-col, in-channel).
    pack = lambda wt: jnp.transpose(wt, (3, 0, 1, 2)).reshape(wt.shape[3], -1)
    w1p, w2p, w3p = pack(p['w1']), pack(p['w2']), pack(p['w3'])
    whp = jnp.concatenate([p['w42'].T, p['w41'].T], axis=0)       # [6, 32]

    # Pack the 7 per-channel parameter vectors into one (32, 8) operand.
    pk = jnp.zeros((32, 8), jnp.float32)
    pk = pk.at[:10, 0].set(p['b1']).at[:10, 1].set(p['a1'])
    pk = pk.at[:16, 2].set(p['b2']).at[:16, 3].set(p['a2'])
    pk = pk.at[:32, 4].set(p['b3']).at[:32, 5].set(p['a3'])
    pk = pk.at[:6, 6].set(jnp.concatenate([p['b42'], p['b41']]))

    const2 = lambda i: (0, 0)
    out = pl.pallas_call(
        _pnet_fused_kernel,
        out_shape=jax.ShapeDtypeStruct((n, oh3, 6, ow3), jnp.float32),
        grid_spec=pltpu.PrefetchScalarGridSpec(
            num_scalar_prefetch=0,
            grid=(n,),
            in_specs=[
                pl.BlockSpec((None, h, 3, w), lambda i: (i, 0, 0, 0)),
                pl.BlockSpec((10, 27), const2),
                pl.BlockSpec((16, 90), const2),
                pl.BlockSpec((32, 144), const2),
                pl.BlockSpec((6, 32), const2),
                pl.BlockSpec((32, 8), const2),
            ],
            out_specs=pl.BlockSpec((None, oh3, 6, ow3), lambda i: (i, 0, 0, 0)),
            scratch_shapes=[
                pltpu.VMEM((ph, 10, pw), jnp.float32),    # pooled conv1 acts
                pltpu.VMEM((oh2, 16, ow2), jnp.float32),  # conv2 acts
            ],
        ),
        compiler_params=pltpu.CompilerParams(
            dimension_semantics=("parallel",),      # megacore split over batch
            vmem_limit_bytes=32 * 1024 * 1024,      # fits v7x's 64 MiB VMEM
        ),
    )(x, w1p, w2p, w3p, whp, pk)

    # (n, OH3, 6, OW3) -> PyTorch NCHW heads.
    b = jnp.transpose(out[:, :, 0:4, :], (0, 2, 1, 3))            # conv4_2 (bbox)
    a = jnp.transpose(out[:, :, 4:6, :], (0, 2, 1, 3))            # softmax probs
    return b, a                                                   # matches (b, a)


# ---------------------------------------------------------------------------
# Deterministic synthetic parameters (shapes from PNet.__init__)
# ---------------------------------------------------------------------------
def init_params(key):
    ks = jax.random.split(key, 10)
    w = lambda k, shape: 0.1 * jax.random.normal(k, shape, jnp.float32)
    return {
        # conv weights stored HWIO (KH, KW, Cin, Cout)
        'w1': w(ks[0], (3, 3, 3, 10)),  'b1': w(ks[1], (10,)),
        'a1': 0.25 * jnp.ones((10,), jnp.float32),          # PReLU default init
        'w2': w(ks[2], (3, 3, 10, 16)), 'b2': w(ks[3], (16,)),
        'a2': 0.25 * jnp.ones((16,), jnp.float32),
        'w3': w(ks[4], (3, 3, 16, 32)), 'b3': w(ks[5], (32,)),
        'a3': 0.25 * jnp.ones((32,), jnp.float32),
        'w41': w(ks[6], (32, 2)), 'b41': w(ks[7], (2,)),     # 1x1 convs as [Cin, Cout]
        'w42': w(ks[8], (32, 4)), 'b42': w(ks[9], (4,)),
    }


# ---------------------------------------------------------------------------
# Pure-JAX reference (correctness check only)
# ---------------------------------------------------------------------------
def pnet_reference(x_nchw, p):
    x = jnp.transpose(x_nchw, (0, 2, 3, 1)).astype(jnp.float32)
    conv = lambda x, w, b: lax.conv_general_dilated(
        x, w, (1, 1), 'VALID', dimension_numbers=('NHWC', 'HWIO', 'NHWC'),
        precision=lax.Precision.HIGHEST) + b
    prelu = lambda x, a: jnp.where(x > 0, x, x * a)
    y = prelu(conv(x, p['w1'], p['b1']), p['a1'])
    pad_h, pad_w = y.shape[1] % 2, y.shape[2] % 2                 # ceil_mode pooling
    if pad_h or pad_w:
        y = jnp.pad(y, ((0, 0), (0, pad_h), (0, pad_w), (0, 0)),
                    constant_values=-jnp.inf)
    y = lax.reduce_window(y, -jnp.inf, lax.max, (1, 2, 2, 1), (1, 2, 2, 1), 'VALID')
    y = prelu(conv(y, p['w2'], p['b2']), p['a2'])
    y = prelu(conv(y, p['w3'], p['b3']), p['a3'])
    logits = jnp.einsum('nhwc,co->nhwo', y, p['w41'], precision='highest') + p['b41']
    a = jax.nn.softmax(logits, axis=-1)
    b = jnp.einsum('nhwc,co->nhwo', y, p['w42'], precision='highest') + p['b42']
    return jnp.transpose(b, (0, 3, 1, 2)), jnp.transpose(a, (0, 3, 1, 2))


if __name__ == "__main__":
    key = jax.random.PRNGKey(0)
    kx, kp = jax.random.split(key)
    # PyTorch-style NCHW input: batch=2, channels=3 (required by conv1), 16x16 spatial
    x = jax.random.normal(kx, (2, 3, 16, 16), jnp.float32)
    params = init_params(kp)

    fwd = jax.jit(pnet_forward)
    b, a = jax.block_until_ready(fwd(x, params))
    b_ref, a_ref = pnet_reference(x, params)

    assert b.shape == (2, 4, 3, 3) and a.shape == (2, 2, 3, 3)
    assert jnp.allclose(a, a_ref, atol=2e-3, rtol=2e-3)
    assert jnp.allclose(b, b_ref, atol=2e-3, rtol=2e-3)
    print("KERNEL_OK")
</pallas_src>

<mosaic_0001>
module attributes {stable_mosaic.version = 11 : i64} {
  func.func @_pnet_fused_kernel(%arg0: i32, %arg1: memref<1x16x3x16xf32, #tpu.memory_space<vmem>>, %arg2: memref<10x27xf32, #tpu.memory_space<vmem>>, %arg3: memref<16x90xf32, #tpu.memory_space<vmem>>, %arg4: memref<32x144xf32, #tpu.memory_space<vmem>>, %arg5: memref<6x32xf32, #tpu.memory_space<vmem>>, %arg6: memref<32x8xf32, #tpu.memory_space<vmem>>, %arg7: memref<1x3x6x3xf32, #tpu.memory_space<vmem>>, %arg8: memref<7x10x7xf32, #tpu.memory_space<vmem>>, %arg9: memref<5x16x5xf32, #tpu.memory_space<vmem>>) attributes {dimension_semantics = [#tpu.dimension_semantics<parallel>], iteration_bounds = array<i64: 2>, scalar_prefetch = 0 : i64, scratch_operands = 2 : i64, tpu.core_type = #tpu.core_type<tc>, window_params = [{transform_indices = @transform_0, window_bounds = array<i64: 1, 16, 3, 16>}, {pipeline_mode = #tpu.pipeline_mode<synchronous>, transform_indices = @transform_1, window_bounds = array<i64: 10, 27>}, {pipeline_mode = #tpu.pipeline_mode<synchronous>, transform_indices = @transform_2, window_bounds = array<i64: 16, 90>}, {pipeline_mode = #tpu.pipeline_mode<synchronous>, transform_indices = @transform_3, window_bounds = array<i64: 32, 144>}, {pipeline_mode = #tpu.pipeline_mode<synchronous>, transform_indices = @transform_4, window_bounds = array<i64: 6, 32>}, {pipeline_mode = #tpu.pipeline_mode<synchronous>, transform_indices = @transform_5, window_bounds = array<i64: 32, 8>}, {transform_indices = @transform_6, window_bounds = array<i64: 1, 3, 6, 3>}]} {
    %c0 = arith.constant 0 : index
    %c0_0 = arith.constant 0 : index
    %0 = vector.load %arg2[%c0, %c0_0] : memref<10x27xf32, #tpu.memory_space<vmem>>, vector<10x27xf32>
    %c0_1 = arith.constant 0 : index
    %c0_2 = arith.constant 0 : index
    %1 = vector.load %arg3[%c0_1, %c0_2] : memref<16x90xf32, #tpu.memory_space<vmem>>, vector<16x90xf32>
    %c0_3 = arith.constant 0 : index
    %c0_4 = arith.constant 0 : index
    %2 = vector.load %arg4[%c0_3, %c0_4] : memref<32x144xf32, #tpu.memory_space<vmem>>, vector<32x144xf32>
    %c0_5 = arith.constant 0 : index
    %c0_6 = arith.constant 0 : index
    %3 = vector.load %arg5[%c0_5, %c0_6] : memref<6x32xf32, #tpu.memory_space<vmem>>, vector<6x32xf32>
    %c0_7 = arith.constant 0 : index
    %c0_8 = arith.constant 0 : index
    %4 = vector.load %arg6[%c0_7, %c0_8] : memref<32x8xf32, #tpu.memory_space<vmem>>, vector<32x8xf32>
    %5 = vector.extract_strided_slice %4 {offsets = [0, 0], sizes = [10, 1], strides = [1, 1]} : vector<32x8xf32> to vector<10x1xf32>
    %6 = vector.shape_cast %5 : vector<10x1xf32> to vector<10x1xf32>
    %7 = vector.broadcast %6 : vector<10x1xf32> to vector<10x14xf32>
    %8 = vector.extract_strided_slice %4 {offsets = [0, 1], sizes = [10, 1], strides = [1, 1]} : vector<32x8xf32> to vector<10x1xf32>
    %9 = vector.shape_cast %8 : vector<10x1xf32> to vector<10x1xf32>
    %10 = vector.broadcast %9 : vector<10x1xf32> to vector<10x14xf32>
    %11 = vector.extract_strided_slice %4 {offsets = [0, 2], sizes = [16, 1], strides = [1, 1]} : vector<32x8xf32> to vector<16x1xf32>
    %12 = vector.shape_cast %11 : vector<16x1xf32> to vector<16x1xf32>
    %13 = vector.broadcast %12 : vector<16x1xf32> to vector<16x5xf32>
    %14 = vector.extract_strided_slice %4 {offsets = [0, 3], sizes = [16, 1], strides = [1, 1]} : vector<32x8xf32> to vector<16x1xf32>
    %15 = vector.shape_cast %14 : vector<16x1xf32> to vector<16x1xf32>
    %16 = vector.broadcast %15 : vector<16x1xf32> to vector<16x5xf32>
    %17 = vector.extract_strided_slice %4 {offsets = [0, 4], sizes = [32, 1], strides = [1, 1]} : vector<32x8xf32> to vector<32x1xf32>
    %18 = vector.shape_cast %17 : vector<32x1xf32> to vector<32x1xf32>
    %19 = vector.broadcast %18 : vector<32x1xf32> to vector<32x3xf32>
    %20 = vector.extract_strided_slice %4 {offsets = [0, 5], sizes = [32, 1], strides = [1, 1]} : vector<32x8xf32> to vector<32x1xf32>
    %21 = vector.shape_cast %20 : vector<32x1xf32> to vector<32x1xf32>
    %22 = vector.broadcast %21 : vector<32x1xf32> to vector<32x3xf32>
    %23 = vector.extract_strided_slice %4 {offsets = [0, 6], sizes = [6, 1], strides = [1, 1]} : vector<32x8xf32> to vector<6x1xf32>
    %24 = vector.shape_cast %23 : vector<6x1xf32> to vector<6x1xf32>
    %25 = vector.broadcast %24 : vector<6x1xf32> to vector<6x3xf32>
    %26 = tpu.iota {dimensions = array<i32: 0>} : vector<14x7xi32>
    %27 = tpu.iota {dimensions = array<i32: 1>} : vector<14x7xi32>
    %c2_i32 = arith.constant 2 : i32
    %28 = vector.broadcast %c2_i32 : i32 to vector<14x7xi32>
    %29 = arith.muli %28, %27 : vector<14x7xi32>
    %30 = arith.cmpi eq, %26, %29 : vector<14x7xi32>
    %31 = arith.extui %30 : vector<14x7xi1> to vector<14x7xi32>
    %32 = arith.sitofp %31 : vector<14x7xi32> to vector<14x7xf32>
    %c0_i32 = arith.constant 0 : i32
    %c1_i32 = arith.constant 1 : i32
    %33 = arith.muli %c0_i32, %c1_i32 : i32
    %c0_i32_9 = arith.constant 0 : i32
    %34 = arith.addi %c0_i32_9, %33 : i32
    %c2_i32_10 = arith.constant 2 : i32
    %35 = arith.muli %34, %c2_i32_10 : i32
    %c1_i32_11 = arith.constant 1 : i32
    %36 = arith.addi %35, %c1_i32_11 : i32
    %c13_i32 = arith.constant 13 : i32
    %37 = arith.minsi %36, %c13_i32 : i32
    %c0_12 = arith.constant 0 : index
    %38 = arith.index_cast %35 : i32 to index
    %c0_13 = arith.constant 0 : index
    %c0_14 = arith.constant 0 : index
    %39 = vector.load %arg1[%c0_12, %38, %c0_13, %c0_14] : memref<1x16x3x16xf32, #tpu.memory_space<vmem>>, vector<1x3x3x16xf32>
    %40 = vector.shape_cast %39 : vector<1x3x3x16xf32> to vector<3x3x16xf32>
    %41 = vector.extract_strided_slice %40 {offsets = [0, 0, 0], sizes = [1, 3, 16], strides = [1, 1, 1]} : vector<3x3x16xf32> to vector<1x3x16xf32>
    %42 = vector.shape_cast %41 : vector<1x3x16xf32> to vector<3x16xf32>
    %43 = vector.extract_strided_slice %42 {offsets = [0, 0], sizes = [3, 14], strides = [1, 1]} : vector<3x16xf32> to vector<3x14xf32>
    %44 = vector.extract_strided_slice %42 {offsets = [0, 1], sizes = [3, 14], strides = [1, 1]} : vector<3x16xf32> to vector<3x14xf32>
    %45 = vector.extract_strided_slice %42 {offsets = [0, 2], sizes = [3, 14], strides = [1, 1]} : vector<3x16xf32> to vector<3x14xf32>
    %46 = vector.extract_strided_slice %40 {offsets = [1, 0, 0], sizes = [1, 3, 16], strides = [1, 1, 1]} : vector<3x3x16xf32> to vector<1x3x16xf32>
    %47 = vector.shape_cast %46 : vector<1x3x16xf32> to vector<3x16xf32>
    %48 = vector.extract_strided_slice %47 {offsets = [0, 0], sizes = [3, 14], strides = [1, 1]} : vector<3x16xf32> to vector<3x14xf32>
    %49 = vector.extract_strided_slice %47 {offsets = [0, 1], sizes = [3, 14], strides = [1, 1]} : vector<3x16xf32> to vector<3x14xf32>
    %50 = vector.extract_strided_slice %47 {offsets = [0, 2], sizes = [3, 14], strides = [1, 1]} : vector<3x16xf32> to vector<3x14xf32>
    %51 = vector.extract_strided_slice %40 {offsets = [2, 0, 0], sizes = [1, 3, 16], strides = [1, 1, 1]} : vector<3x3x16xf32> to vector<1x3x16xf32>
    %52 = vector.shape_cast %51 : vector<1x3x16xf32> to vector<3x16xf32>
    %53 = vector.extract_strided_slice %52 {offsets = [0, 0], sizes = [3, 14], strides = [1, 1]} : vector<3x16xf32> to vector<3x14xf32>
    %54 = vector.extract_strided_slice %52 {offsets = [0, 1], sizes = [3, 14], strides = [1, 1]} : vector<3x16xf32> to vector<3x14xf32>
    %55 = vector.extract_strided_slice %52 {offsets = [0, 2], sizes = [3, 14], strides = [1, 1]} : vector<3x16xf32> to vector<3x14xf32>
    %56 = tpu.concatenate %43, %44, %45, %48, %49, %50, %53, %54, %55 in 0 : vector<3x14xf32>, vector<3x14xf32>, vector<3x14xf32>, vector<3x14xf32>, vector<3x14xf32>, vector<3x14xf32>, vector<3x14xf32>, vector<3x14xf32>, vector<3x14xf32> -> vector<27x14xf32>
    %cst = arith.constant dense<0.000000e+00> : vector<10x14xf32>
    %57 = tpu.matmul %0, %56, %cst {dimension_numbers = #tpu.dot_dimension_numbers<[1], [0], [0], [1], [0, 0, 1, 1], [], []>} : vector<10x27xf32>, vector<27x14xf32>, vector<10x14xf32> -> vector<10x14xf32>
    %58 = arith.addf %57, %7 : vector<10x14xf32>
    %cst_15 = arith.constant 0.000000e+00 : f32
    %59 = vector.broadcast %cst_15 : f32 to vector<10x14xf32>
    %60 = arith.cmpf ogt, %58, %59 : vector<10x14xf32>
    %61 = arith.mulf %58, %10 : vector<10x14xf32>
    %62 = arith.select %60, %58, %61 : vector<10x14xi1>, vector<10x14xf32>
    %c0_16 = arith.constant 0 : index
    %63 = arith.index_cast %37 : i32 to index
    %c0_17 = arith.constant 0 : index
    %c0_18 = arith.constant 0 : index
    %64 = vector.load %arg1[%c0_16, %63, %c0_17, %c0_18] : memref<1x16x3x16xf32, #tpu.memory_space<vmem>>, vector<1x3x3x16xf32>
    %65 = vector.shape_cast %64 : vector<1x3x3x16xf32> to vector<3x3x16xf32>
    %66 = vector.extract_strided_slice %65 {offsets = [0, 0, 0], sizes = [1, 3, 16], strides = [1, 1, 1]} : vector<3x3x16xf32> to vector<1x3x16xf32>
    %67 = vector.shape_cast %66 : vector<1x3x16xf32> to vector<3x16xf32>
    %68 = vector.extract_strided_slice %67 {offsets = [0, 0], sizes = [3, 14], strides = [1, 1]} : vector<3x16xf32> to vector<3x14xf32>
    %69 = vector.extract_strided_slice %67 {offsets = [0, 1], sizes = [3, 14], strides = [1, 1]} : vector<3x16xf32> to vector<3x14xf32>
    %70 = vector.extract_strided_slice %67 {offsets = [0, 2], sizes = [3, 14], strides = [1, 1]} : vector<3x16xf32> to vector<3x14xf32>
    %71 = vector.extract_strided_slice %65 {offsets = [1, 0, 0], sizes = [1, 3, 16], strides = [1, 1, 1]} : vector<3x3x16xf32> to vector<1x3x16xf32>
    %72 = vector.shape_cast %71 : vector<1x3x16xf32> to vector<3x16xf32>
    %73 = vector.extract_strided_slice %72 {offsets = [0, 0], sizes = [3, 14], strides = [1, 1]} : vector<3x16xf32> to vector<3x14xf32>
    %74 = vector.extract_strided_slice %72 {offsets = [0, 1], sizes = [3, 14], strides = [1, 1]} : vector<3x16xf32> to vector<3x14xf32>
    %75 = vector.extract_strided_slice %72 {offsets = [0, 2], sizes = [3, 14], strides = [1, 1]} : vector<3x16xf32> to vector<3x14xf32>
    %76 = vector.extract_strided_slice %65 {offsets = [2, 0, 0], sizes = [1, 3, 16], strides = [1, 1, 1]} : vector<3x3x16xf32> to vector<1x3x16xf32>
    %77 = vector.shape_cast %76 : vector<1x3x16xf32> to vector<3x16xf32>
    %78 = vector.extract_strided_slice %77 {offsets = [0, 0], sizes = [3, 14], strides = [1, 1]} : vector<3x16xf32> to vector<3x14xf32>
    %79 = vector.extract_strided_slice %77 {offsets = [0, 1], sizes = [3, 14], strides = [1, 1]} : vector<3x16xf32> to vector<3x14xf32>
    %80 = vector.extract_strided_slice %77 {offsets = [0, 2], sizes = [3, 14], strides = [1, 1]} : vector<3x16xf32> to vector<3x14xf32>
    %81 = tpu.concatenate %68, %69, %70, %73, %74, %75, %78, %79, %80 in 0 : vector<3x14xf32>, vector<3x14xf32>, vector<3x14xf32>, vector<3x14xf32>, vector<3x14xf32>, vector<3x14xf32>, vector<3x14xf32>, vector<3x14xf32>, vector<3x14xf32> -> vector<27x14xf32>
    %cst_19 = arith.constant dense<0.000000e+00> : vector<10x14xf32>
    %82 = tpu.matmul %0, %81, %cst_19 {dimension_numbers = #tpu.dot_dimension_numbers<[1], [0], [0], [1], [0, 0, 1, 1], [], []>} : vector<10x27xf32>, vector<27x14xf32>, vector<10x14xf32> -> vector<10x14xf32>
    %83 = arith.addf %82, %7 : vector<10x14xf32>
    %cst_20 = arith.constant 0.000000e+00 : f32
    %84 = vector.broadcast %cst_20 : f32 to vector<10x14xf32>
    %85 = arith.cmpf ogt, %83, %84 : vector<10x14xf32>
    %86 = arith.mulf %83, %10 : vector<10x14xf32>
    %87 = arith.select %85, %83, %86 : vector<10x14xi1>, vector<10x14xf32>
    %88 = arith.maximumf %62, %87 : vector<10x14xf32>
    %89 = vector.extract_strided_slice %88 {offsets = [0, 1], sizes = [10, 13], strides = [1, 1]} : vector<10x14xf32> to vector<10x13xf32>
    %90 = vector.extract_strided_slice %88 {offsets = [0, 13], sizes = [10, 1], strides = [1, 1]} : vector<10x14xf32> to vector<10x1xf32>
    %91 = tpu.concatenate %89, %90 in 1 : vector<10x13xf32>, vector<10x1xf32> -> vector<10x14xf32>
    %92 = arith.maximumf %88, %91 : vector<10x14xf32>
    %cst_21 = arith.constant dense<0.000000e+00> : vector<10x7xf32>
    %93 = tpu.matmul %92, %32, %cst_21 {dimension_numbers = #tpu.dot_dimension_numbers<[1], [0], [0], [1], [0, 0, 1, 1], [], []>} : vector<10x14xf32>, vector<14x7xf32>, vector<10x7xf32> -> vector<10x7xf32>
    %94 = vector.shape_cast %93 : vector<10x7xf32> to vector<1x10x7xf32>
    %95 = arith.index_cast %34 : i32 to index
    %c0_22 = arith.constant 0 : index
    %c0_23 = arith.constant 0 : index
    %96 = vector.load %arg8[%95, %c0_22, %c0_23] : memref<7x10x7xf32, #tpu.memory_space<vmem>>, vector<1x10x7xf32>
    tpu.vector_store %arg8[%95, %c0_22, %c0_23], %94 {strides = array<i32>} : memref<7x10x7xf32, #tpu.memory_space<vmem>>, vector<1x10x7xf32>,
    %c1_i32_24 = arith.constant 1 : i32
    %c1_i32_25 = arith.constant 1 : i32
    %97 = arith.muli %c1_i32_24, %c1_i32_25 : i32
    %c0_i32_26 = arith.constant 0 : i32
    %98 = arith.addi %c0_i32_26, %97 : i32
    %c2_i32_27 = arith.constant 2 : i32
    %99 = arith.muli %98, %c2_i32_27 : i32
    %c1_i32_28 = arith.constant 1 : i32
    %100 = arith.addi %99, %c1_i32_28 : i32
    %c13_i32_29 = arith.constant 13 : i32
    %101 = arith.minsi %100, %c13_i32_29 : i32
    %c0_30 = arith.constant 0 : index
    %102 = arith.index_cast %99 : i32 to index
    %c0_31 = arith.constant 0 : index
    %c0_32 = arith.constant 0 : index
    %103 = vector.load %arg1[%c0_30, %102, %c0_31, %c0_32] : memref<1x16x3x16xf32, #tpu.memory_space<vmem>>, vector<1x3x3x16xf32>
    %104 = vector.shape_cast %103 : vector<1x3x3x16xf32> to vector<3x3x16xf32>
    %105 = vector.extract_strided_slice %104 {offsets = [0, 0, 0], sizes = [1, 3, 16], strides = [1, 1, 1]} : vector<3x3x16xf32> to vector<1x3x16xf32>
    %106 = vector.shape_cast %105 : vector<1x3x16xf32> to vector<3x16xf32>
    %107 = vector.extract_strided_slice %106 {offsets = [0, 0], sizes = [3, 14], strides = [1, 1]} : vector<3x16xf32> to vector<3x14xf32>
    %108 = vector.extract_strided_slice %106 {offsets = [0, 1], sizes = [3, 14], strides = [1, 1]} : vector<3x16xf32> to vector<3x14xf32>
    %109 = vector.extract_strided_slice %106 {offsets = [0, 2], sizes = [3, 14], strides = [1, 1]} : vector<3x16xf32> to vector<3x14xf32>
    %110 = vector.extract_strided_slice %104 {offsets = [1, 0, 0], sizes = [1, 3, 16], strides = [1, 1, 1]} : vector<3x3x16xf32> to vector<1x3x16xf32>
    %111 = vector.shape_cast %110 : vector<1x3x16xf32> to vector<3x16xf32>
    %112 = vector.extract_strided_slice %111 {offsets = [0, 0], sizes = [3, 14], strides = [1, 1]} : vector<3x16xf32> to vector<3x14xf32>
    %113 = vector.extract_strided_slice %111 {offsets = [0, 1], sizes = [3, 14], strides = [1, 1]} : vector<3x16xf32> to vector<3x14xf32>
    %114 = vector.extract_strided_slice %111 {offsets = [0, 2], sizes = [3, 14], strides = [1, 1]} : vector<3x16xf32> to vector<3x14xf32>
    %115 = vector.extract_strided_slice %104 {offsets = [2, 0, 0], sizes = [1, 3, 16], strides = [1, 1, 1]} : vector<3x3x16xf32> to vector<1x3x16xf32>
    %116 = vector.shape_cast %115 : vector<1x3x16xf32> to vector<3x16xf32>
    %117 = vector.extract_strided_slice %116 {offsets = [0, 0], sizes = [3, 14], strides = [1, 1]} : vector<3x16xf32> to vector<3x14xf32>
    %118 = vector.extract_strided_slice %116 {offsets = [0, 1], sizes = [3, 14], strides = [1, 1]} : vector<3x16xf32> to vector<3x14xf32>
    %119 = vector.extract_strided_slice %116 {offsets = [0, 2], sizes = [3, 14], strides = [1, 1]} : vector<3x16xf32> to vector<3x14xf32>
    %120 = tpu.concatenate %107, %108, %109, %112, %113, %114, %117, %118, %119 in 0 : vector<3x14xf32>, vector<3x14xf32>, vector<3x14xf32>, vector<3x14xf32>, vector<3x14xf32>, vector<3x14xf32>, vector<3x14xf32>, vector<3x14xf32>, vector<3x14xf32> -> vector<27x14xf32>
    %cst_33 = arith.constant dense<0.000000e+00> : vector<10x14xf32>
    %121 = tpu.matmul %0, %120, %cst_33 {dimension_numbers = #tpu.dot_dimension_numbers<[1], [0], [0], [1], [0, 0, 1, 1], [], []>} : vector<10x27xf32>, vector<27x14xf32>, vector<10x14xf32> -> vector<10x14xf32>
    %122 = arith.addf %121, %7 : vector<10x14xf32>
    %cst_34 = arith.constant 0.000000e+00 : f32
    %123 = vector.broadcast %cst_34 : f32 to vector<10x14xf32>
    %124 = arith.cmpf ogt, %122, %123 : vector<10x14xf32>
    %125 = arith.mulf %122, %10 : vector<10x14xf32>
    %126 = arith.select %124, %122, %125 : vector<10x14xi1>, vector<10x14xf32>
    %c0_35 = arith.constant 0 : index
    %127 = arith.index_cast %101 : i32 to index
    %c0_36 = arith.constant 0 : index
    %c0_37 = arith.constant 0 : index
    %128 = vector.load %arg1[%c0_35, %127, %c0_36, %c0_37] : memref<1x16x3x16xf32, #tpu.memory_space<vmem>>, vector<1x3x3x16xf32>
    %129 = vector.shape_cast %128 : vector<1x3x3x16xf32> to vector<3x3x16xf32>
    %130 = vector.extract_strided_slice %129 {offsets = [0, 0, 0], sizes = [1, 3, 16], strides = [1, 1, 1]} : vector<3x3x16xf32> to vector<1x3x16xf32>
    %131 = vector.shape_cast %130 : vector<1x3x16xf32> to vector<3x16xf32>
    %132 = vector.extract_strided_slice %131 {offsets = [0, 0], sizes = [3, 14], strides = [1, 1]} : vector<3x16xf32> to vector<3x14xf32>
    %133 = vector.extract_strided_slice %131 {offsets = [0, 1], sizes = [3, 14], strides = [1, 1]} : vector<3x16xf32> to vector<3x14xf32>
    %134 = vector.extract_strided_slice %131 {offsets = [0, 2], sizes = [3, 14], strides = [1, 1]} : vector<3x16xf32> to vector<3x14xf32>
    %135 = vector.extract_strided_slice %129 {offsets = [1, 0, 0], sizes = [1, 3, 16], strides = [1, 1, 1]} : vector<3x3x16xf32> to vector<1x3x16xf32>
    %136 = vector.shape_cast %135 : vector<1x3x16xf32> to vector<3x16xf32>
    %137 = vector.extract_strided_slice %136 {offsets = [0, 0], sizes = [3, 14], strides = [1, 1]} : vector<3x16xf32> to vector<3x14xf32>
    %138 = vector.extract_strided_slice %136 {offsets = [0, 1], sizes = [3, 14], strides = [1, 1]} : vector<3x16xf32> to vector<3x14xf32>
    %139 = vector.extract_strided_slice %136 {offsets = [0, 2], sizes = [3, 14], strides = [1, 1]} : vector<3x16xf32> to vector<3x14xf32>
    %140 = vector.extract_strided_slice %129 {offsets = [2, 0, 0], sizes = [1, 3, 16], strides = [1, 1, 1]} : vector<3x3x16xf32> to vector<1x3x16xf32>
    %141 = vector.shape_cast %140 : vector<1x3x16xf32> to vector<3x16xf32>
    %142 = vector.extract_strided_slice %141 {offsets = [0, 0], sizes = [3, 14], strides = [1, 1]} : vector<3x16xf32> to vector<3x14xf32>
    %143 = vector.extract_strided_slice %141 {offsets = [0, 1], sizes = [3, 14], strides = [1, 1]} : vector<3x16xf32> to vector<3x14xf32>
    %144 = vector.extract_strided_slice %141 {offsets = [0, 2], sizes = [3, 14], strides = [1, 1]} : vector<3x16xf32> to vector<3x14xf32>
    %145 = tpu.concatenate %132, %133, %134, %137, %138, %139, %142, %143, %144 in 0 : vector<3x14xf32>, vector<3x14xf32>, vector<3x14xf32>, vector<3x14xf32>, vector<3x14xf32>, vector<3x14xf32>, vector<3x14xf32>, vector<3x14xf32>, vector<3x14xf32> -> vector<27x14xf32>
    %cst_38 = arith.constant dense<0.000000e+00> : vector<10x14xf32>
    %146 = tpu.matmul %0, %145, %cst_38 {dimension_numbers = #tpu.dot_dimension_numbers<[1], [0], [0], [1], [0, 0, 1, 1], [], []>} : vector<10x27xf32>, vector<27x14xf32>, vector<10x14xf32> -> vector<10x14xf32>
    %147 = arith.addf %146, %7 : vector<10x14xf32>
    %cst_39 = arith.constant 0.000000e+00 : f32
    %148 = vector.broadcast %cst_39 : f32 to vector<10x14xf32>
    %149 = arith.cmpf ogt, %147, %148 : vector<10x14xf32>
    %150 = arith.mulf %147, %10 : vector<10x14xf32>
    %151 = arith.select %149, %147, %150 : vector<10x14xi1>, vector<10x14xf32>
    %152 = arith.maximumf %126, %151 : vector<10x14xf32>
    %153 = vector.extract_strided_slice %152 {offsets = [0, 1], sizes = [10, 13], strides = [1, 1]} : vector<10x14xf32> to vector<10x13xf32>
    %154 = vector.extract_strided_slice %152 {offsets = [0, 13], sizes = [10, 1], strides = [1, 1]} : vector<10x14xf32> to vector<10x1xf32>
    %155 = tpu.concatenate %153, %154 in 1 : vector<10x13xf32>, vector<10x1xf32> -> vector<10x14xf32>
    %156 = arith.maximumf %152, %155 : vector<10x14xf32>
    %cst_40 = arith.constant dense<0.000000e+00> : vector<10x7xf32>
    %157 = tpu.matmul %156, %32, %cst_40 {dimension_numbers = #tpu.dot_dimension_numbers<[1], [0], [0], [1], [0, 0, 1, 1], [], []>} : vector<10x14xf32>, vector<14x7xf32>, vector<10x7xf32> -> vector<10x7xf32>
    %158 = vector.shape_cast %157 : vector<10x7xf32> to vector<1x10x7xf32>
    %159 = arith.index_cast %98 : i32 to index
    %c0_41 = arith.constant 0 : index
    %c0_42 = arith.constant 0 : index
    %160 = vector.load %arg8[%159, %c0_41, %c0_42] : memref<7x10x7xf32, #tpu.memory_space<vmem>>, vector<1x10x7xf32>
    tpu.vector_store %arg8[%159, %c0_41, %c0_42], %158 {strides = array<i32>} : memref<7x10x7xf32, #tpu.memory_space<vmem>>, vector<1x10x7xf32>,
    %c2_i32_43 = arith.constant 2 : i32
    %c1_i32_44 = arith.constant 1 : i32
    %161 = arith.muli %c2_i32_43, %c1_i32_44 : i32
    %c0_i32_45 = arith.constant 0 : i32
    %162 = arith.addi %c0_i32_45, %161 : i32
    %c2_i32_46 = arith.constant 2 : i32
    %163 = arith.muli %162, %c2_i32_46 : i32
    %c1_i32_47 = arith.constant 1 : i32
    %164 = arith.addi %163, %c1_i32_47 : i32
    %c13_i32_48 = arith.constant 13 : i32
    %165 = arith.minsi %164, %c13_i32_48 : i32
    %c0_49 = arith.constant 0 : index
    %166 = arith.index_cast %163 : i32 to index
    %c0_50 = arith.constant 0 : index
    %c0_51 = arith.constant 0 : index
    %167 = vector.load %arg1[%c0_49, %166, %c0_50, %c0_51] : memref<1x16x3x16xf32, #tpu.memory_space<vmem>>, vector<1x3x3x16xf32>
    %168 = vector.shape_cast %167 : vector<1x3x3x16xf32> to vector<3x3x16xf32>
    %169 = vector.extract_strided_slice %168 {offsets = [0, 0, 0], sizes = [1, 3, 16], strides = [1, 1, 1]} : vector<3x3x16xf32> to vector<1x3x16xf32>
    %170 = vector.shape_cast %169 : vector<1x3x16xf32> to vector<3x16xf32>
    %171 = vector.extract_strided_slice %170 {offsets = [0, 0], sizes = [3, 14], strides = [1, 1]} : vector<3x16xf32> to vector<3x14xf32>
    %172 = vector.extract_strided_slice %170 {offsets = [0, 1], sizes = [3, 14], strides = [1, 1]} : vector<3x16xf32> to vector<3x14xf32>
    %173 = vector.extract_strided_slice %170 {offsets = [0, 2], sizes = [3, 14], strides = [1, 1]} : vector<3x16xf32> to vector<3x14xf32>
    %174 = vector.extract_strided_slice %168 {offsets = [1, 0, 0], sizes = [1, 3, 16], strides = [1, 1, 1]} : vector<3x3x16xf32> to vector<1x3x16xf32>
    %175 = vector.shape_cast %174 : vector<1x3x16xf32> to vector<3x16xf32>
    %176 = vector.extract_strided_slice %175 {offsets = [0, 0], sizes = [3, 14], strides = [1, 1]} : vector<3x16xf32> to vector<3x14xf32>
    %177 = vector.extract_strided_slice %175 {offsets = [0, 1], sizes = [3, 14], strides = [1, 1]} : vector<3x16xf32> to vector<3x14xf32>
    %178 = vector.extract_strided_slice %175 {offsets = [0, 2], sizes = [3, 14], strides = [1, 1]} : vector<3x16xf32> to vector<3x14xf32>
    %179 = vector.extract_strided_slice %168 {offsets = [2, 0, 0], sizes = [1, 3, 16], strides = [1, 1, 1]} : vector<3x3x16xf32> to vector<1x3x16xf32>
    %180 = vector.shape_cast %179 : vector<1x3x16xf32> to vector<3x16xf32>
    %181 = vector.extract_strided_slice %180 {offsets = [0, 0], sizes = [3, 14], strides = [1, 1]} : vector<3x16xf32> to vector<3x14xf32>
    %182 = vector.extract_strided_slice %180 {offsets = [0, 1], sizes = [3, 14], strides = [1, 1]} : vector<3x16xf32> to vector<3x14xf32>
    %183 = vector.extract_strided_slice %180 {offsets = [0, 2], sizes = [3, 14], strides = [1, 1]} : vector<3x16xf32> to vector<3x14xf32>
    %184 = tpu.concatenate %171, %172, %173, %176, %177, %178, %181, %182, %183 in 0 : vector<3x14xf32>, vector<3x14xf32>, vector<3x14xf32>, vector<3x14xf32>, vector<3x14xf32>, vector<3x14xf32>, vector<3x14xf32>, vector<3x14xf32>, vector<3x14xf32> -> vector<27x14xf32>
    %cst_52 = arith.constant dense<0.000000e+00> : vector<10x14xf32>
    %185 = tpu.matmul %0, %184, %cst_52 {dimension_numbers = #tpu.dot_dimension_numbers<[1], [0], [0], [1], [0, 0, 1, 1], [], []>} : vector<10x27xf32>, vector<27x14xf32>, vector<10x14xf32> -> vector<10x14xf32>
    %186 = arith.addf %185, %7 : vector<10x14xf32>
    %cst_53 = arith.constant 0.000000e+00 : f32
    %187 = vector.broadcast %cst_53 : f32 to vector<10x14xf32>
    %188 = arith.cmpf ogt, %186, %187 : vector<10x14xf32>
    %189 = arith.mulf %186, %10 : vector<10x14xf32>
    %190 = arith.select %188, %186, %189 : vector<10x14xi1>, vector<10x14xf32>
    %c0_54 = arith.constant 0 : index
    %191 = arith.index_cast %165 : i32 to index
    %c0_55 = arith.constant 0 : index
    %c0_56 = arith.constant 0 : index
    %192 = vector.load %arg1[%c0_54, %191, %c0_55, %c0_56] : memref<1x16x3x16xf32, #tpu.memory_space<vmem>>, vector<1x3x3x16xf32>
    %193 = vector.shape_cast %192 : vector<1x3x3x16xf32> to vector<3x3x16xf32>
    %194 = vector.extract_strided_slice %193 {offsets = [0, 0, 0], sizes = [1, 3, 16], strides = [1, 1, 1]} : vector<3x3x16xf32> to vector<1x3x16xf32>
    %195 = vector.shape_cast %194 : vector<1x3x16xf32> to vector<3x16xf32>
    %196 = vector.extract_strided_slice %195 {offsets = [0, 0], sizes = [3, 14], strides = [1, 1]} : vector<3x16xf32> to vector<3x14xf32>
    %197 = vector.extract_strided_slice %195 {offsets = [0, 1], sizes = [3, 14], strides = [1, 1]} : vector<3x16xf32> to vector<3x14xf32>
    %198 = vector.extract_strided_slice %195 {offsets = [0, 2], sizes = [3, 14], strides = [1, 1]} : vector<3x16xf32> to vector<3x14xf32>
    %199 = vector.extract_strided_slice %193 {offsets = [1, 0, 0], sizes = [1, 3, 16], strides = [1, 1, 1]} : vector<3x3x16xf32> to vector<1x3x16xf32>
    %200 = vector.shape_cast %199 : vector<1x3x16xf32> to vector<3x16xf32>
    %201 = vector.extract_strided_slice %200 {offsets = [0, 0], sizes = [3, 14], strides = [1, 1]} : vector<3x16xf32> to vector<3x14xf32>
    %202 = vector.extract_strided_slice %200 {offsets = [0, 1], sizes = [3, 14], strides = [1, 1]} : vector<3x16xf32> to vector<3x14xf32>
    %203 = vector.extract_strided_slice %200 {offsets = [0, 2], sizes = [3, 14], strides = [1, 1]} : vector<3x16xf32> to vector<3x14xf32>
    %204 = vector.extract_strided_slice %193 {offsets = [2, 0, 0], sizes = [1, 3, 16], strides = [1, 1, 1]} : vector<3x3x16xf32> to vector<1x3x16xf32>
    %205 = vector.shape_cast %204 : vector<1x3x16xf32> to vector<3x16xf32>
    %206 = vector.extract_strided_slice %205 {offsets = [0, 0], sizes = [3, 14], strides = [1, 1]} : vector<3x16xf32> to vector<3x14xf32>
    %207 = vector.extract_strided_slice %205 {offsets = [0, 1], sizes = [3, 14], strides = [1, 1]} : vector<3x16xf32> to vector<3x14xf32>
    %208 = vector.extract_strided_slice %205 {offsets = [0, 2], sizes = [3, 14], strides = [1, 1]} : vector<3x16xf32> to vector<3x14xf32>
    %209 = tpu.concatenate %196, %197, %198, %201, %202, %203, %206, %207, %208 in 0 : vector<3x14xf32>, vector<3x14xf32>, vector<3x14xf32>, vector<3x14xf32>, vector<3x14xf32>, vector<3x14xf32>, vector<3x14xf32>, vector<3x14xf32>, vector<3x14xf32> -> vector<27x14xf32>
    %cst_57 = arith.constant dense<0.000000e+00> : vector<10x14xf32>
    %210 = tpu.matmul %0, %209, %cst_57 {dimension_numbers = #tpu.dot_dimension_numbers<[1], [0], [0], [1], [0, 0, 1, 1], [], []>} : vector<10x27xf32>, vector<27x14xf32>, vector<10x14xf32> -> vector<10x14xf32>
    %211 = arith.addf %210, %7 : vector<10x14xf32>
    %cst_58 = arith.constant 0.000000e+00 : f32
    %212 = vector.broadcast %cst_58 : f32 to vector<10x14xf32>
    %213 = arith.cmpf ogt, %211, %212 : vector<10x14xf32>
    %214 = arith.mulf %211, %10 : vector<10x14xf32>
    %215 = arith.select %213, %211, %214 : vector<10x14xi1>, vector<10x14xf32>
    %216 = arith.maximumf %190, %215 : vector<10x14xf32>
    %217 = vector.extract_strided_slice %216 {offsets = [0, 1], sizes = [10, 13], strides = [1, 1]} : vector<10x14xf32> to vector<10x13xf32>
    %218 = vector.extract_strided_slice %216 {offsets = [0, 13], sizes = [10, 1], strides = [1, 1]} : vector<10x14xf32> to vector<10x1xf32>
    %219 = tpu.concatenate %217, %218 in 1 : vector<10x13xf32>, vector<10x1xf32> -> vector<10x14xf32>
    %220 = arith.maximumf %216, %219 : vector<10x14xf32>
    %cst_59 = arith.constant dense<0.000000e+00> : vector<10x7xf32>
    %221 = tpu.matmul %220, %32, %cst_59 {dimension_numbers = #tpu.dot_dimension_numbers<[1], [0], [0], [1], [0, 0, 1, 1], [], []>} : vector<10x14xf32>, vector<14x7xf32>, vector<10x7xf32> -> vector<10x7xf32>
    %222 = vector.shape_cast %221 : vector<10x7xf32> to vector<1x10x7xf32>
    %223 = arith.index_cast %162 : i32 to index
    %c0_60 = arith.constant 0 : index
    %c0_61 = arith.constant 0 : index
    %224 = vector.load %arg8[%223, %c0_60, %c0_61] : memref<7x10x7xf32, #tpu.memory_space<vmem>>, vector<1x10x7xf32>
    tpu.vector_store %arg8[%223, %c0_60, %c0_61], %222 {strides = array<i32>} : memref<7x10x7xf32, #tpu.memory_space<vmem>>, vector<1x10x7xf32>,
    %c3_i32 = arith.constant 3 : i32
    %c1_i32_62 = arith.constant 1 : i32
    %225 = arith.muli %c3_i32, %c1_i32_62 : i32
    %c0_i32_63 = arith.constant 0 : i32
    %226 = arith.addi %c0_i32_63, %225 : i32
    %c2_i32_64 = arith.constant 2 : i32
    %227 = arith.muli %226, %c2_i32_64 : i32
    %c1_i32_65 = arith.constant 1 : i32
    %228 = arith.addi %227, %c1_i32_65 : i32
    %c13_i32_66 = arith.constant 13 : i32
    %229 = arith.minsi %228, %c13_i32_66 : i32
    %c0_67 = arith.constant 0 : index
    %230 = arith.index_cast %227 : i32 to index
    %c0_68 = arith.constant 0 : index
    %c0_69 = arith.constant 0 : index
    %231 = vector.load %arg1[%c0_67, %230, %c0_68, %c0_69] : memref<1x16x3x16xf32, #tpu.memory_space<vmem>>, vector<1x3x3x16xf32>
    %232 = vector.shape_cast %231 : vector<1x3x3x16xf32> to vector<3x3x16xf32>
    %233 = vector.extract_strided_slice %232 {offsets = [0, 0, 0], sizes = [1, 3, 16], strides = [1, 1, 1]} : vector<3x3x16xf32> to vector<1x3x16xf32>
    %234 = vector.shape_cast %233 : vector<1x3x16xf32> to vector<3x16xf32>
    %235 = vector.extract_strided_slice %234 {offsets = [0, 0], sizes = [3, 14], strides = [1, 1]} : vector<3x16xf32> to vector<3x14xf32>
    %236 = vector.extract_strided_slice %234 {offsets = [0, 1], sizes = [3, 14], strides = [1, 1]} : vector<3x16xf32> to vector<3x14xf32>
    %237 = vector.extract_strided_slice %234 {offsets = [0, 2], sizes = [3, 14], strides = [1, 1]} : vector<3x16xf32> to vector<3x14xf32>
    %238 = vector.extract_strided_slice %232 {offsets = [1, 0, 0], sizes = [1, 3, 16], strides = [1, 1, 1]} : vector<3x3x16xf32> to vector<1x3x16xf32>
    %239 = vector.shape_cast %238 : vector<1x3x16xf32> to vector<3x16xf32>
    %240 = vector.extract_strided_slice %239 {offsets = [0, 0], sizes = [3, 14], strides = [1, 1]} : vector<3x16xf32> to vector<3x14xf32>
    %241 = vector.extract_strided_slice %239 {offsets = [0, 1], sizes = [3, 14], strides = [1, 1]} : vector<3x16xf32> to vector<3x14xf32>
    %242 = vector.extract_strided_slice %239 {offsets = [0, 2], sizes = [3, 14], strides = [1, 1]} : vector<3x16xf32> to vector<3x14xf32>
    %243 = vector.extract_strided_slice %232 {offsets = [2, 0, 0], sizes = [1, 3, 16], strides = [1, 1, 1]} : vector<3x3x16xf32> to vector<1x3x16xf32>
    %244 = vector.shape_cast %243 : vector<1x3x16xf32> to vector<3x16xf32>
    %245 = vector.extract_strided_slice %244 {offsets = [0, 0], sizes = [3, 14], strides = [1, 1]} : vector<3x16xf32> to vector<3x14xf32>
    %246 = vector.extract_strided_slice %244 {offsets = [0, 1], sizes = [3, 14], strides = [1, 1]} : vector<3x16xf32> to vector<3x14xf32>
    %247 = vector.extract_strided_slice %244 {offsets = [0, 2], sizes = [3, 14], strides = [1, 1]} : vector<3x16xf32> to vector<3x14xf32>
    %248 = tpu.concatenate %235, %236, %237, %240, %241, %242, %245, %246, %247 in 0 : vector<3x14xf32>, vector<3x14xf32>, vector<3x14xf32>, vector<3x14xf32>, vector<3x14xf32>, vector<3x14xf32>, vector<3x14xf32>, vector<3x14xf32>, vector<3x14xf32> -> vector<27x14xf32>
    %cst_70 = arith.constant dense<0.000000e+00> : vector<10x14xf32>
    %249 = tpu.matmul %0, %248, %cst_70 {dimension_numbers = #tpu.dot_dimension_numbers<[1], [0], [0], [1], [0, 0, 1, 1], [], []>} : vector<10x27xf32>, vector<27x14xf32>, vector<10x14xf32> -> vector<10x14xf32>
    %250 = arith.addf %249, %7 : vector<10x14xf32>
    %cst_71 = arith.constant 0.000000e+00 : f32
    %251 = vector.broadcast %cst_71 : f32 to vector<10x14xf32>
    %252 = arith.cmpf ogt, %250, %251 : vector<10x14xf32>
    %253 = arith.mulf %250, %10 : vector<10x14xf32>
    %254 = arith.select %252, %250, %253 : vector<10x14xi1>, vector<10x14xf32>
    %c0_72 = arith.constant 0 : index
    %255 = arith.index_cast %229 : i32 to index
    %c0_73 = arith.constant 0 : index
    %c0_74 = arith.constant 0 : index
    %256 = vector.load %arg1[%c0_72, %255, %c0_73, %c0_74] : memref<1x16x3x16xf32, #tpu.memory_space<vmem>>, vector<1x3x3x16xf32>
    %257 = vector.shape_cast %256 : vector<1x3x3x16xf32> to vector<3x3x16xf32>
    %258 = vector.extract_strided_slice %257 {offsets = [0, 0, 0], sizes = [1, 3, 16], strides = [1, 1, 1]} : vector<3x3x16xf32> to vector<1x3x16xf32>
    %259 = vector.shape_cast %258 : vector<1x3x16xf32> to vector<3x16xf32>
    %260 = vector.extract_strided_slice %259 {offsets = [0, 0], sizes = [3, 14], strides = [1, 1]} : vector<3x16xf32> to vector<3x14xf32>
    %261 = vector.extract_strided_slice %259 {offsets = [0, 1], sizes = [3, 14], strides = [1, 1]} : vector<3x16xf32> to vector<3x14xf32>
    %262 = vector.extract_strided_slice %259 {offsets = [0, 2], sizes = [3, 14], strides = [1, 1]} : vector<3x16xf32> to vector<3x14xf32>
    %263 = vector.extract_strided_slice %257 {offsets = [1, 0, 0], sizes = [1, 3, 16], strides = [1, 1, 1]} : vector<3x3x16xf32> to vector<1x3x16xf32>
    %264 = vector.shape_cast %263 : vector<1x3x16xf32> to vector<3x16xf32>
    %265 = vector.extract_strided_slice %264 {offsets = [0, 0], sizes = [3, 14], strides = [1, 1]} : vector<3x16xf32> to vector<3x14xf32>
    %266 = vector.extract_strided_slice %264 {offsets = [0, 1], sizes = [3, 14], strides = [1, 1]} : vector<3x16xf32> to vector<3x14xf32>
    %267 = vector.extract_strided_slice %264 {offsets = [0, 2], sizes = [3, 14], strides = [1, 1]} : vector<3x16xf32> to vector<3x14xf32>
    %268 = vector.extract_strided_slice %257 {offsets = [2, 0, 0], sizes = [1, 3, 16], strides = [1, 1, 1]} : vector<3x3x16xf32> to vector<1x3x16xf32>
    %269 = vector.shape_cast %268 : vector<1x3x16xf32> to vector<3x16xf32>
    %270 = vector.extract_strided_slice %269 {offsets = [0, 0], sizes = [3, 14], strides = [1, 1]} : vector<3x16xf32> to vector<3x14xf32>
    %271 = vector.extract_strided_slice %269 {offsets = [0, 1], sizes = [3, 14], strides = [1, 1]} : vector<3x16xf32> to vector<3x14xf32>
    %272 = vector.extract_strided_slice %269 {offsets = [0, 2], sizes = [3, 14], strides = [1, 1]} : vector<3x16xf32> to vector<3x14xf32>
    %273 = tpu.concatenate %260, %261, %262, %265, %266, %267, %270, %271, %272 in 0 : vector<3x14xf32>, vector<3x14xf32>, vector<3x14xf32>, vector<3x14xf32>, vector<3x14xf32>, vector<3x14xf32>, vector<3x14xf32>, vector<3x14xf32>, vector<3x14xf32> -> vector<27x14xf32>
    %cst_75 = arith.constant dense<0.000000e+00> : vector<10x14xf32>
    %274 = tpu.matmul %0, %273, %cst_75 {dimension_numbers = #tpu.dot_dimension_numbers<[1], [0], [0], [1], [0, 0, 1, 1], [], []>} : vector<10x27xf32>, vector<27x14xf32>, vector<10x14xf32> -> vector<10x14xf32>
    %275 = arith.addf %274, %7 : vector<10x14xf32>
    %cst_76 = arith.constant 0.000000e+00 : f32
    %276 = vector.broadcast %cst_76 : f32 to vector<10x14xf32>
    %277 = arith.cmpf ogt, %275, %276 : vector<10x14xf32>
    %278 = arith.mulf %275, %10 : vector<10x14xf32>
    %279 = arith.select %277, %275, %278 : vector<10x14xi1>, vector<10x14xf32>
    %280 = arith.maximumf %254, %279 : vector<10x14xf32>
    %281 = vector.extract_strided_slice %280 {offsets = [0, 1], sizes = [10, 13], strides = [1, 1]} : vector<10x14xf32> to vector<10x13xf32>
    %282 = vector.extract_strided_slice %280 {offsets = [0, 13], sizes = [10, 1], strides = [1, 1]} : vector<10x14xf32> to vector<10x1xf32>
    %283 = tpu.concatenate %281, %282 in 1 : vector<10x13xf32>, vector<10x1xf32> -> vector<10x14xf32>
    %284 = arith.maximumf %280, %283 : vector<10x14xf32>
    %cst_77 = arith.constant dense<0.000000e+00> : vector<10x7xf32>
    %285 = tpu.matmul %284, %32, %cst_77 {dimension_numbers = #tpu.dot_dimension_numbers<[1], [0], [0], [1], [0, 0, 1, 1], [], []>} : vector<10x14xf32>, vector<14x7xf32>, vector<10x7xf32> -> vector<10x7xf32>
    %286 = vector.shape_cast %285 : vector<10x7xf32> to vector<1x10x7xf32>
    %287 = arith.index_cast %226 : i32 to index
    %c0_78 = arith.constant 0 : index
    %c0_79 = arith.constant 0 : index
    %288 = vector.load %arg8[%287, %c0_78, %c0_79] : memref<7x10x7xf32, #tpu.memory_space<vmem>>, vector<1x10x7xf32>
    tpu.vector_store %arg8[%287, %c0_78, %c0_79], %286 {strides = array<i32>} : memref<7x10x7xf32, #tpu.memory_space<vmem>>, vector<1x10x7xf32>,
    %c4_i32 = arith.constant 4 : i32
    %c1_i32_80 = arith.constant 1 : i32
    %289 = arith.muli %c4_i32, %c1_i32_80 : i32
    %c0_i32_81 = arith.constant 0 : i32
    %290 = arith.addi %c0_i32_81, %289 : i32
    %c2_i32_82 = arith.constant 2 : i32
    %291 = arith.muli %290, %c2_i32_82 : i32
    %c1_i32_83 = arith.constant 1 : i32
    %292 = arith.addi %291, %c1_i32_83 : i32
    %c13_i32_84 = arith.constant 13 : i32
    %293 = arith.minsi %292, %c13_i32_84 : i32
    %c0_85 = arith.constant 0 : index
    %294 = arith.index_cast %291 : i32 to index
    %c0_86 = arith.constant 0 : index
    %c0_87 = arith.constant 0 : index
    %295 = vector.load %arg1[%c0_85, %294, %c0_86, %c0_87] : memref<1x16x3x16xf32, #tpu.memory_space<vmem>>, vector<1x3x3x16xf32>
    %296 = vector.shape_cast %295 : vector<1x3x3x16xf32> to vector<3x3x16xf32>
    %297 = vector.extract_strided_slice %296 {offsets = [0, 0, 0], sizes = [1, 3, 16], strides = [1, 1, 1]} : vector<3x3x16xf32> to vector<1x3x16xf32>
    %298 = vector.shape_cast %297 : vector<1x3x16xf32> to vector<3x16xf32>
    %299 = vector.extract_strided_slice %298 {offsets = [0, 0], sizes = [3, 14], strides = [1, 1]} : vector<3x16xf32> to vector<3x14xf32>
    %300 = vector.extract_strided_slice %298 {offsets = [0, 1], sizes = [3, 14], strides = [1, 1]} : vector<3x16xf32> to vector<3x14xf32>
    %301 = vector.extract_strided_slice %298 {offsets = [0, 2], sizes = [3, 14], strides = [1, 1]} : vector<3x16xf32> to vector<3x14xf32>
    %302 = vector.extract_strided_slice %296 {offsets = [1, 0, 0], sizes = [1, 3, 16], strides = [1, 1, 1]} : vector<3x3x16xf32> to vector<1x3x16xf32>
    %303 = vector.shape_cast %302 : vector<1x3x16xf32> to vector<3x16xf32>
    %304 = vector.extract_strided_slice %303 {offsets = [0, 0], sizes = [3, 14], strides = [1, 1]} : vector<3x16xf32> to vector<3x14xf32>
    %305 = vector.extract_strided_slice %303 {offsets = [0, 1], sizes = [3, 14], strides = [1, 1]} : vector<3x16xf32> to vector<3x14xf32>
    %306 = vector.extract_strided_slice %303 {offsets = [0, 2], sizes = [3, 14], strides = [1, 1]} : vector<3x16xf32> to vector<3x14xf32>
    %307 = vector.extract_strided_slice %296 {offsets = [2, 0, 0], sizes = [1, 3, 16], strides = [1, 1, 1]} : vector<3x3x16xf32> to vector<1x3x16xf32>
    %308 = vector.shape_cast %307 : vector<1x3x16xf32> to vector<3x16xf32>
    %309 = vector.extract_strided_slice %308 {offsets = [0, 0], sizes = [3, 14], strides = [1, 1]} : vector<3x16xf32> to vector<3x14xf32>
    %310 = vector.extract_strided_slice %308 {offsets = [0, 1], sizes = [3, 14], strides = [1, 1]} : vector<3x16xf32> to vector<3x14xf32>
    %311 = vector.extract_strided_slice %308 {offsets = [0, 2], sizes = [3, 14], strides = [1, 1]} : vector<3x16xf32> to vector<3x14xf32>
    %312 = tpu.concatenate %299, %300, %301, %304, %305, %306, %309, %310, %311 in 0 : vector<3x14xf32>, vector<3x14xf32>, vector<3x14xf32>, vector<3x14xf32>, vector<3x14xf32>, vector<3x14xf32>, vector<3x14xf32>, vector<3x14xf32>, vector<3x14xf32> -> vector<27x14xf32>
    %cst_88 = arith.constant dense<0.000000e+00> : vector<10x14xf32>
    %313 = tpu.matmul %0, %312, %cst_88 {dimension_numbers = #tpu.dot_dimension_numbers<[1], [0], [0], [1], [0, 0, 1, 1], [], []>} : vector<10x27xf32>, vector<27x14xf32>, vector<10x14xf32> -> vector<10x14xf32>
    %314 = arith.addf %313, %7 : vector<10x14xf32>
    %cst_89 = arith.constant 0.000000e+00 : f32
    %315 = vector.broadcast %cst_89 : f32 to vector<10x14xf32>
    %316 = arith.cmpf ogt, %314, %315 : vector<10x14xf32>
    %317 = arith.mulf %314, %10 : vector<10x14xf32>
    %318 = arith.select %316, %314, %317 : vector<10x14xi1>, vector<10x14xf32>
    %c0_90 = arith.constant 0 : index
    %319 = arith.index_cast %293 : i32 to index
    %c0_91 = arith.constant 0 : index
    %c0_92 = arith.constant 0 : index
    %320 = vector.load %arg1[%c0_90, %319, %c0_91, %c0_92] : memref<1x16x3x16xf32, #tpu.memory_space<vmem>>, vector<1x3x3x16xf32>
    %321 = vector.shape_cast %320 : vector<1x3x3x16xf32> to vector<3x3x16xf32>
    %322 = vector.extract_strided_slice %321 {offsets = [0, 0, 0], sizes = [1, 3, 16], strides = [1, 1, 1]} : vector<3x3x16xf32> to vector<1x3x16xf32>
    %323 = vector.shape_cast %322 : vector<1x3x16xf32> to vector<3x16xf32>
    %324 = vector.extract_strided_slice %323 {offsets = [0, 0], sizes = [3, 14], strides = [1, 1]} : vector<3x16xf32> to vector<3x14xf32>
    %325 = vector.extract_strided_slice %323 {offsets = [0, 1], sizes = [3, 14], strides = [1, 1]} : vector<3x16xf32> to vector<3x14xf32>
    %326 = vector.extract_strided_slice %323 {offsets = [0, 2], sizes = [3, 14], strides = [1, 1]} : vector<3x16xf32> to vector<3x14xf32>
    %327 = vector.extract_strided_slice %321 {offsets = [1, 0, 0], sizes = [1, 3, 16], strides = [1, 1, 1]} : vector<3x3x16xf32> to vector<1x3x16xf32>
    %328 = vector.shape_cast %327 : vector<1x3x16xf32> to vector<3x16xf32>
    %329 = vector.extract_strided_slice %328 {offsets = [0, 0], sizes = [3, 14], strides = [1, 1]} : vector<3x16xf32> to vector<3x14xf32>
    %330 = vector.extract_strided_slice %328 {offsets = [0, 1], sizes = [3, 14], strides = [1, 1]} : vector<3x16xf32> to vector<3x14xf32>
    %331 = vector.extract_strided_slice %328 {offsets = [0, 2], sizes = [3, 14], strides = [1, 1]} : vector<3x16xf32> to vector<3x14xf32>
    %332 = vector.extract_strided_slice %321 {offsets = [2, 0, 0], sizes = [1, 3, 16], strides = [1, 1, 1]} : vector<3x3x16xf32> to vector<1x3x16xf32>
    %333 = vector.shape_cast %332 : vector<1x3x16xf32> to vector<3x16xf32>
    %334 = vector.extract_strided_slice %333 {offsets = [0, 0], sizes = [3, 14], strides = [1, 1]} : vector<3x16xf32> to vector<3x14xf32>
    %335 = vector.extract_strided_slice %333 {offsets = [0, 1], sizes = [3, 14], strides = [1, 1]} : vector<3x16xf32> to vector<3x14xf32>
    %336 = vector.extract_strided_slice %333 {offsets = [0, 2], sizes = [3, 14], strides = [1, 1]} : vector<3x16xf32> to vector<3x14xf32>
    %337 = tpu.concatenate %324, %325, %326, %329, %330, %331, %334, %335, %336 in 0 : vector<3x14xf32>, vector<3x14xf32>, vector<3x14xf32>, vector<3x14xf32>, vector<3x14xf32>, vector<3x14xf32>, vector<3x14xf32>, vector<3x14xf32>, vector<3x14xf32> -> vector<27x14xf32>
    %cst_93 = arith.constant dense<0.000000e+00> : vector<10x14xf32>
    %338 = tpu.matmul %0, %337, %cst_93 {dimension_numbers = #tpu.dot_dimension_numbers<[1], [0], [0], [1], [0, 0, 1, 1], [], []>} : vector<10x27xf32>, vector<27x14xf32>, vector<10x14xf32> -> vector<10x14xf32>
    %339 = arith.addf %338, %7 : vector<10x14xf32>
    %cst_94 = arith.constant 0.000000e+00 : f32
    %340 = vector.broadcast %cst_94 : f32 to vector<10x14xf32>
    %341 = arith.cmpf ogt, %339, %340 : vector<10x14xf32>
    %342 = arith.mulf %339, %10 : vector<10x14xf32>
    %343 = arith.select %341, %339, %342 : vector<10x14xi1>, vector<10x14xf32>
    %344 = arith.maximumf %318, %343 : vector<10x14xf32>
    %345 = vector.extract_strided_slice %344 {offsets = [0, 1], sizes = [10, 13], strides = [1, 1]} : vector<10x14xf32> to vector<10x13xf32>
    %346 = vector.extract_strided_slice %344 {offsets = [0, 13], sizes = [10, 1], strides = [1, 1]} : vector<10x14xf32> to vector<10x1xf32>
    %347 = tpu.concatenate %345, %346 in 1 : vector<10x13xf32>, vector<10x1xf32> -> vector<10x14xf32>
    %348 = arith.maximumf %344, %347 : vector<10x14xf32>
    %cst_95 = arith.constant dense<0.000000e+00> : vector<10x7xf32>
    %349 = tpu.matmul %348, %32, %cst_95 {dimension_numbers = #tpu.dot_dimension_numbers<[1], [0], [0], [1], [0, 0, 1, 1], [], []>} : vector<10x14xf32>, vector<14x7xf32>, vector<10x7xf32> -> vector<10x7xf32>
    %350 = vector.shape_cast %349 : vector<10x7xf32> to vector<1x10x7xf32>
    %351 = arith.index_cast %290 : i32 to index
    %c0_96 = arith.constant 0 : index
    %c0_97 = arith.constant 0 : index
    %352 = vector.load %arg8[%351, %c0_96, %c0_97] : memref<7x10x7xf32, #tpu.memory_space<vmem>>, vector<1x10x7xf32>
    tpu.vector_store %arg8[%351, %c0_96, %c0_97], %350 {strides = array<i32>} : memref<7x10x7xf32, #tpu.memory_space<vmem>>, vector<1x10x7xf32>,
    %c5_i32 = arith.constant 5 : i32
    %c1_i32_98 = arith.constant 1 : i32
    %353 = arith.muli %c5_i32, %c1_i32_98 : i32
    %c0_i32_99 = arith.constant 0 : i32
    %354 = arith.addi %c0_i32_99, %353 : i32
    %c2_i32_100 = arith.constant 2 : i32
    %355 = arith.muli %354, %c2_i32_100 : i32
    %c1_i32_101 = arith.constant 1 : i32
    %356 = arith.addi %355, %c1_i32_101 : i32
    %c13_i32_102 = arith.constant 13 : i32
    %357 = arith.minsi %356, %c13_i32_102 : i32
    %c0_103 = arith.constant 0 : index
    %358 = arith.index_cast %355 : i32 to index
    %c0_104 = arith.constant 0 : index
    %c0_105 = arith.constant 0 : index
    %359 = vector.load %arg1[%c0_103, %358, %c0_104, %c0_105] : memref<1x16x3x16xf32, #tpu.memory_space<vmem>>, vector<1x3x3x16xf32>
    %360 = vector.shape_cast %359 : vector<1x3x3x16xf32> to vector<3x3x16xf32>
    %361 = vector.extract_strided_slice %360 {offsets = [0, 0, 0], sizes = [1, 3, 16], strides = [1, 1, 1]} : vector<3x3x16xf32> to vector<1x3x16xf32>
    %362 = vector.shape_cast %361 : vector<1x3x16xf32> to vector<3x16xf32>
    %363 = vector.extract_strided_slice %362 {offsets = [0, 0], sizes = [3, 14], strides = [1, 1]} : vector<3x16xf32> to vector<3x14xf32>
    %364 = vector.extract_strided_slice %362 {offsets = [0, 1], sizes = [3, 14], strides = [1, 1]} : vector<3x16xf32> to vector<3x14xf32>
    %365 = vector.extract_strided_slice %362 {offsets = [0, 2], sizes = [3, 14], strides = [1, 1]} : vector<3x16xf32> to vector<3x14xf32>
    %366 = vector.extract_strided_slice %360 {offsets = [1, 0, 0], sizes = [1, 3, 16], strides = [1, 1, 1]} : vector<3x3x16xf32> to vector<1x3x16xf32>
    %367 = vector.shape_cast %366 : vector<1x3x16xf32> to vector<3x16xf32>
    %368 = vector.extract_strided_slice %367 {offsets = [0, 0], sizes = [3, 14], strides = [1, 1]} : vector<3x16xf32> to vector<3x14xf32>
    %369 = vector.extract_strided_slice %367 {offsets = [0, 1], sizes = [3, 14], strides = [1, 1]} : vector<3x16xf32> to vector<3x14xf32>
    %370 = vector.extract_strided_slice %367 {offsets = [0, 2], sizes = [3, 14], strides = [1, 1]} : vector<3x16xf32> to vector<3x14xf32>
    %371 = vector.extract_strided_slice %360 {offsets = [2, 0, 0], sizes = [1, 3, 16], strides = [1, 1, 1]} : vector<3x3x16xf32> to vector<1x3x16xf32>
    %372 = vector.shape_cast %371 : vector<1x3x16xf32> to vector<3x16xf32>
    %373 = vector.extract_strided_slice %372 {offsets = [0, 0], sizes = [3, 14], strides = [1, 1]} : vector<3x16xf32> to vector<3x14xf32>
    %374 = vector.extract_strided_slice %372 {offsets = [0, 1], sizes = [3, 14], strides = [1, 1]} : vector<3x16xf32> to vector<3x14xf32>
    %375 = vector.extract_strided_slice %372 {offsets = [0, 2], sizes = [3, 14], strides = [1, 1]} : vector<3x16xf32> to vector<3x14xf32>
    %376 = tpu.concatenate %363, %364, %365, %368, %369, %370, %373, %374, %375 in 0 : vector<3x14xf32>, vector<3x14xf32>, vector<3x14xf32>, vector<3x14xf32>, vector<3x14xf32>, vector<3x14xf32>, vector<3x14xf32>, vector<3x14xf32>, vector<3x14xf32> -> vector<27x14xf32>
    %cst_106 = arith.constant dense<0.000000e+00> : vector<10x14xf32>
    %377 = tpu.matmul %0, %376, %cst_106 {dimension_numbers = #tpu.dot_dimension_numbers<[1], [0], [0], [1], [0, 0, 1, 1], [], []>} : vector<10x27xf32>, vector<27x14xf32>, vector<10x14xf32> -> vector<10x14xf32>
    %378 = arith.addf %377, %7 : vector<10x14xf32>
    %cst_107 = arith.constant 0.000000e+00 : f32
    %379 = vector.broadcast %cst_107 : f32 to vector<10x14xf32>
    %380 = arith.cmpf ogt, %378, %379 : vector<10x14xf32>
    %381 = arith.mulf %378, %10 : vector<10x14xf32>
    %382 = arith.select %380, %378, %381 : vector<10x14xi1>, vector<10x14xf32>
    %c0_108 = arith.constant 0 : index
    %383 = arith.index_cast %357 : i32 to index
    %c0_109 = arith.constant 0 : index
    %c0_110 = arith.constant 0 : index
    %384 = vector.load %arg1[%c0_108, %383, %c0_109, %c0_110] : memref<1x16x3x16xf32, #tpu.memory_space<vmem>>, vector<1x3x3x16xf32>
    %385 = vector.shape_cast %384 : vector<1x3x3x16xf32> to vector<3x3x16xf32>
    %386 = vector.extract_strided_slice %385 {offsets = [0, 0, 0], sizes = [1, 3, 16], strides = [1, 1, 1]} : vector<3x3x16xf32> to vector<1x3x16xf32>
    %387 = vector.shape_cast %386 : vector<1x3x16xf32> to vector<3x16xf32>
    %388 = vector.extract_strided_slice %387 {offsets = [0, 0], sizes = [3, 14], strides = [1, 1]} : vector<3x16xf32> to vector<3x14xf32>
    %389 = vector.extract_strided_slice %387 {offsets = [0, 1], sizes = [3, 14], strides = [1, 1]} : vector<3x16xf32> to vector<3x14xf32>
    %390 = vector.extract_strided_slice %387 {offsets = [0, 2], sizes = [3, 14], strides = [1, 1]} : vector<3x16xf32> to vector<3x14xf32>
    %391 = vector.extract_strided_slice %385 {offsets = [1, 0, 0], sizes = [1, 3, 16], strides = [1, 1, 1]} : vector<3x3x16xf32> to vector<1x3x16xf32>
    %392 = vector.shape_cast %391 : vector<1x3x16xf32> to vector<3x16xf32>
    %393 = vector.extract_strided_slice %392 {offsets = [0, 0], sizes = [3, 14], strides = [1, 1]} : vector<3x16xf32> to vector<3x14xf32>
    %394 = vector.extract_strided_slice %392 {offsets = [0, 1], sizes = [3, 14], strides = [1, 1]} : vector<3x16xf32> to vector<3x14xf32>
    %395 = vector.extract_strided_slice %392 {offsets = [0, 2], sizes = [3, 14], strides = [1, 1]} : vector<3x16xf32> to vector<3x14xf32>
    %396 = vector.extract_strided_slice %385 {offsets = [2, 0, 0], sizes = [1, 3, 16], strides = [1, 1, 1]} : vector<3x3x16xf32> to vector<1x3x16xf32>
    %397 = vector.shape_cast %396 : vector<1x3x16xf32> to vector<3x16xf32>
    %398 = vector.extract_strided_slice %397 {offsets = [0, 0], sizes = [3, 14], strides = [1, 1]} : vector<3x16xf32> to vector<3x14xf32>
    %399 = vector.extract_strided_slice %397 {offsets = [0, 1], sizes = [3, 14], strides = [1, 1]} : vector<3x16xf32> to vector<3x14xf32>
    %400 = vector.extract_strided_slice %397 {offsets = [0, 2], sizes = [3, 14], strides = [1, 1]} : vector<3x16xf32> to vector<3x14xf32>
    %401 = tpu.concatenate %388, %389, %390, %393, %394, %395, %398, %399, %400 in 0 : vector<3x14xf32>, vector<3x14xf32>, vector<3x14xf32>, vector<3x14xf32>, vector<3x14xf32>, vector<3x14xf32>, vector<3x14xf32>, vector<3x14xf32>, vector<3x14xf32> -> vector<27x14xf32>
    %cst_111 = arith.constant dense<0.000000e+00> : vector<10x14xf32>
    %402 = tpu.matmul %0, %401, %cst_111 {dimension_numbers = #tpu.dot_dimension_numbers<[1], [0], [0], [1], [0, 0, 1, 1], [], []>} : vector<10x27xf32>, vector<27x14xf32>, vector<10x14xf32> -> vector<10x14xf32>
    %403 = arith.addf %402, %7 : vector<10x14xf32>
    %cst_112 = arith.constant 0.000000e+00 : f32
    %404 = vector.broadcast %cst_112 : f32 to vector<10x14xf32>
    %405 = arith.cmpf ogt, %403, %404 : vector<10x14xf32>
    %406 = arith.mulf %403, %10 : vector<10x14xf32>
    %407 = arith.select %405, %403, %406 : vector<10x14xi1>, vector<10x14xf32>
    %408 = arith.maximumf %382, %407 : vector<10x14xf32>
    %409 = vector.extract_strided_slice %408 {offsets = [0, 1], sizes = [10, 13], strides = [1, 1]} : vector<10x14xf32> to vector<10x13xf32>
    %410 = vector.extract_strided_slice %408 {offsets = [0, 13], sizes = [10, 1], strides = [1, 1]} : vector<10x14xf32> to vector<10x1xf32>
    %411 = tpu.concatenate %409, %410 in 1 : vector<10x13xf32>, vector<10x1xf32> -> vector<10x14xf32>
    %412 = arith.maximumf %408, %411 : vector<10x14xf32>
    %cst_113 = arith.constant dense<0.000000e+00> : vector<10x7xf32>
    %413 = tpu.matmul %412, %32, %cst_113 {dimension_numbers = #tpu.dot_dimension_numbers<[1], [0], [0], [1], [0, 0, 1, 1], [], []>} : vector<10x14xf32>, vector<14x7xf32>, vector<10x7xf32> -> vector<10x7xf32>
    %414 = vector.shape_cast %413 : vector<10x7xf32> to vector<1x10x7xf32>
    %415 = arith.index_cast %354 : i32 to index
    %c0_114 = arith.constant 0 : index
    %c0_115 = arith.constant 0 : index
    %416 = vector.load %arg8[%415, %c0_114, %c0_115] : memref<7x10x7xf32, #tpu.memory_space<vmem>>, vector<1x10x7xf32>
    tpu.vector_store %arg8[%415, %c0_114, %c0_115], %414 {strides = array<i32>} : memref<7x10x7xf32, #tpu.memory_space<vmem>>, vector<1x10x7xf32>,
    %c6_i32 = arith.constant 6 : i32
    %c1_i32_116 = arith.constant 1 : i32
    %417 = arith.muli %c6_i32, %c1_i32_116 : i32
    %c0_i32_117 = arith.constant 0 : i32
    %418 = arith.addi %c0_i32_117, %417 : i32
    %c2_i32_118 = arith.constant 2 : i32
    %419 = arith.muli %418, %c2_i32_118 : i32
    %c1_i32_119 = arith.constant 1 : i32
    %420 = arith.addi %419, %c1_i32_119 : i32
    %c13_i32_120 = arith.constant 13 : i32
    %421 = arith.minsi %420, %c13_i32_120 : i32
    %c0_121 = arith.constant 0 : index
    %422 = arith.index_cast %419 : i32 to index
    %c0_122 = arith.constant 0 : index
    %c0_123 = arith.constant 0 : index
    %423 = vector.load %arg1[%c0_121, %422, %c0_122, %c0_123] : memref<1x16x3x16xf32, #tpu.memory_space<vmem>>, vector<1x3x3x16xf32>
    %424 = vector.shape_cast %423 : vector<1x3x3x16xf32> to vector<3x3x16xf32>
    %425 = vector.extract_strided_slice %424 {offsets = [0, 0, 0], sizes = [1, 3, 16], strides = [1, 1, 1]} : vector<3x3x16xf32> to vector<1x3x16xf32>
    %426 = vector.shape_cast %425 : vector<1x3x16xf32> to vector<3x16xf32>
    %427 = vector.extract_strided_slice %426 {offsets = [0, 0], sizes = [3, 14], strides = [1, 1]} : vector<3x16xf32> to vector<3x14xf32>
    %428 = vector.extract_strided_slice %426 {offsets = [0, 1], sizes = [3, 14], strides = [1, 1]} : vector<3x16xf32> to vector<3x14xf32>
    %429 = vector.extract_strided_slice %426 {offsets = [0, 2], sizes = [3, 14], strides = [1, 1]} : vector<3x16xf32> to vector<3x14xf32>
    %430 = vector.extract_strided_slice %424 {offsets = [1, 0, 0], sizes = [1, 3, 16], strides = [1, 1, 1]} : vector<3x3x16xf32> to vector<1x3x16xf32>
    %431 = vector.shape_cast %430 : vector<1x3x16xf32> to vector<3x16xf32>
    %432 = vector.extract_strided_slice %431 {offsets = [0, 0], sizes = [3, 14], strides = [1, 1]} : vector<3x16xf32> to vector<3x14xf32>
    %433 = vector.extract_strided_slice %431 {offsets = [0, 1], sizes = [3, 14], strides = [1, 1]} : vector<3x16xf32> to vector<3x14xf32>
    %434 = vector.extract_strided_slice %431 {offsets = [0, 2], sizes = [3, 14], strides = [1, 1]} : vector<3x16xf32> to vector<3x14xf32>
    %435 = vector.extract_strided_slice %424 {offsets = [2, 0, 0], sizes = [1, 3, 16], strides = [1, 1, 1]} : vector<3x3x16xf32> to vector<1x3x16xf32>
    %436 = vector.shape_cast %435 : vector<1x3x16xf32> to vector<3x16xf32>
    %437 = vector.extract_strided_slice %436 {offsets = [0, 0], sizes = [3, 14], strides = [1, 1]} : vector<3x16xf32> to vector<3x14xf32>
    %438 = vector.extract_strided_slice %436 {offsets = [0, 1], sizes = [3, 14], strides = [1, 1]} : vector<3x16xf32> to vector<3x14xf32>
    %439 = vector.extract_strided_slice %436 {offsets = [0, 2], sizes = [3, 14], strides = [1, 1]} : vector<3x16xf32> to vector<3x14xf32>
    %440 = tpu.concatenate %427, %428, %429, %432, %433, %434, %437, %438, %439 in 0 : vector<3x14xf32>, vector<3x14xf32>, vector<3x14xf32>, vector<3x14xf32>, vector<3x14xf32>, vector<3x14xf32>, vector<3x14xf32>, vector<3x14xf32>, vector<3x14xf32> -> vector<27x14xf32>
    %cst_124 = arith.constant dense<0.000000e+00> : vector<10x14xf32>
    %441 = tpu.matmul %0, %440, %cst_124 {dimension_numbers = #tpu.dot_dimension_numbers<[1], [0], [0], [1], [0, 0, 1, 1], [], []>} : vector<10x27xf32>, vector<27x14xf32>, vector<10x14xf32> -> vector<10x14xf32>
    %442 = arith.addf %441, %7 : vector<10x14xf32>
    %cst_125 = arith.constant 0.000000e+00 : f32
    %443 = vector.broadcast %cst_125 : f32 to vector<10x14xf32>
    %444 = arith.cmpf ogt, %442, %443 : vector<10x14xf32>
    %445 = arith.mulf %442, %10 : vector<10x14xf32>
    %446 = arith.select %444, %442, %445 : vector<10x14xi1>, vector<10x14xf32>
    %c0_126 = arith.constant 0 : index
    %447 = arith.index_cast %421 : i32 to index
    %c0_127 = arith.constant 0 : index
    %c0_128 = arith.constant 0 : index
    %448 = vector.load %arg1[%c0_126, %447, %c0_127, %c0_128] : memref<1x16x3x16xf32, #tpu.memory_space<vmem>>, vector<1x3x3x16xf32>
    %449 = vector.shape_cast %448 : vector<1x3x3x16xf32> to vector<3x3x16xf32>
    %450 = vector.extract_strided_slice %449 {offsets = [0, 0, 0], sizes = [1, 3, 16], strides = [1, 1, 1]} : vector<3x3x16xf32> to vector<1x3x16xf32>
    %451 = vector.shape_cast %450 : vector<1x3x16xf32> to vector<3x16xf32>
    %452 = vector.extract_strided_slice %451 {offsets = [0, 0], sizes = [3, 14], strides = [1, 1]} : vector<3x16xf32> to vector<3x14xf32>
    %453 = vector.extract_strided_slice %451 {offsets = [0, 1], sizes = [3, 14], strides = [1, 1]} : vector<3x16xf32> to vector<3x14xf32>
    %454 = vector.extract_strided_slice %451 {offsets = [0, 2], sizes = [3, 14], strides = [1, 1]} : vector<3x16xf32> to vector<3x14xf32>
    %455 = vector.extract_strided_slice %449 {offsets = [1, 0, 0], sizes = [1, 3, 16], strides = [1, 1, 1]} : vector<3x3x16xf32> to vector<1x3x16xf32>
    %456 = vector.shape_cast %455 : vector<1x3x16xf32> to vector<3x16xf32>
    %457 = vector.extract_strided_slice %456 {offsets = [0, 0], sizes = [3, 14], strides = [1, 1]} : vector<3x16xf32> to vector<3x14xf32>
    %458 = vector.extract_strided_slice %456 {offsets = [0, 1], sizes = [3, 14], strides = [1, 1]} : vector<3x16xf32> to vector<3x14xf32>
    %459 = vector.extract_strided_slice %456 {offsets = [0, 2], sizes = [3, 14], strides = [1, 1]} : vector<3x16xf32> to vector<3x14xf32>
    %460 = vector.extract_strided_slice %449 {offsets = [2, 0, 0], sizes = [1, 3, 16], strides = [1, 1, 1]} : vector<3x3x16xf32> to vector<1x3x16xf32>
    %461 = vector.shape_cast %460 : vector<1x3x16xf32> to vector<3x16xf32>
    %462 = vector.extract_strided_slice %461 {offsets = [0, 0], sizes = [3, 14], strides = [1, 1]} : vector<3x16xf32> to vector<3x14xf32>
    %463 = vector.extract_strided_slice %461 {offsets = [0, 1], sizes = [3, 14], strides = [1, 1]} : vector<3x16xf32> to vector<3x14xf32>
    %464 = vector.extract_strided_slice %461 {offsets = [0, 2], sizes = [3, 14], strides = [1, 1]} : vector<3x16xf32> to vector<3x14xf32>
    %465 = tpu.concatenate %452, %453, %454, %457, %458, %459, %462, %463, %464 in 0 : vector<3x14xf32>, vector<3x14xf32>, vector<3x14xf32>, vector<3x14xf32>, vector<3x14xf32>, vector<3x14xf32>, vector<3x14xf32>, vector<3x14xf32>, vector<3x14xf32> -> vector<27x14xf32>
    %cst_129 = arith.constant dense<0.000000e+00> : vector<10x14xf32>
    %466 = tpu.matmul %0, %465, %cst_129 {dimension_numbers = #tpu.dot_dimension_numbers<[1], [0], [0], [1], [0, 0, 1, 1], [], []>} : vector<10x27xf32>, vector<27x14xf32>, vector<10x14xf32> -> vector<10x14xf32>
    %467 = arith.addf %466, %7 : vector<10x14xf32>
    %cst_130 = arith.constant 0.000000e+00 : f32
    %468 = vector.broadcast %cst_130 : f32 to vector<10x14xf32>
    %469 = arith.cmpf ogt, %467, %468 : vector<10x14xf32>
    %470 = arith.mulf %467, %10 : vector<10x14xf32>
    %471 = arith.select %469, %467, %470 : vector<10x14xi1>, vector<10x14xf32>
    %472 = arith.maximumf %446, %471 : vector<10x14xf32>
    %473 = vector.extract_strided_slice %472 {offsets = [0, 1], sizes = [10, 13], strides = [1, 1]} : vector<10x14xf32> to vector<10x13xf32>
    %474 = vector.extract_strided_slice %472 {offsets = [0, 13], sizes = [10, 1], strides = [1, 1]} : vector<10x14xf32> to vector<10x1xf32>
    %475 = tpu.concatenate %473, %474 in 1 : vector<10x13xf32>, vector<10x1xf32> -> vector<10x14xf32>
    %476 = arith.maximumf %472, %475 : vector<10x14xf32>
    %cst_131 = arith.constant dense<0.000000e+00> : vector<10x7xf32>
    %477 = tpu.matmul %476, %32, %cst_131 {dimension_numbers = #tpu.dot_dimension_numbers<[1], [0], [0], [1], [0, 0, 1, 1], [], []>} : vector<10x14xf32>, vector<14x7xf32>, vector<10x7xf32> -> vector<10x7xf32>
    %478 = vector.shape_cast %477 : vector<10x7xf32> to vector<1x10x7xf32>
    %479 = arith.index_cast %418 : i32 to index
    %c0_132 = arith.constant 0 : index
    %c0_133 = arith.constant 0 : index
    %480 = vector.load %arg8[%479, %c0_132, %c0_133] : memref<7x10x7xf32, #tpu.memory_space<vmem>>, vector<1x10x7xf32>
    tpu.vector_store %arg8[%479, %c0_132, %c0_133], %478 {strides = array<i32>} : memref<7x10x7xf32, #tpu.memory_space<vmem>>, vector<1x10x7xf32>,
    %c7_i32 = arith.constant 7 : i32
    %c0_i32_134 = arith.constant 0 : i32
    %c1_i32_135 = arith.constant 1 : i32
    %481 = arith.muli %c0_i32_134, %c1_i32_135 : i32
    %c0_i32_136 = arith.constant 0 : i32
    %482 = arith.addi %c0_i32_136, %481 : i32
    %483 = arith.index_cast %482 : i32 to index
    %c0_137 = arith.constant 0 : index
    %c0_138 = arith.constant 0 : index
    %484 = vector.load %arg8[%483, %c0_137, %c0_138] : memref<7x10x7xf32, #tpu.memory_space<vmem>>, vector<3x10x7xf32>
    %485 = vector.extract_strided_slice %484 {offsets = [0, 0, 0], sizes = [1, 10, 7], strides = [1, 1, 1]} : vector<3x10x7xf32> to vector<1x10x7xf32>
    %486 = vector.shape_cast %485 : vector<1x10x7xf32> to vector<10x7xf32>
    %487 = vector.extract_strided_slice %486 {offsets = [0, 0], sizes = [10, 5], strides = [1, 1]} : vector<10x7xf32> to vector<10x5xf32>
    %488 = vector.extract_strided_slice %486 {offsets = [0, 1], sizes = [10, 5], strides = [1, 1]} : vector<10x7xf32> to vector<10x5xf32>
    %489 = vector.extract_strided_slice %486 {offsets = [0, 2], sizes = [10, 5], strides = [1, 1]} : vector<10x7xf32> to vector<10x5xf32>
    %490 = vector.extract_strided_slice %484 {offsets = [1, 0, 0], sizes = [1, 10, 7], strides = [1, 1, 1]} : vector<3x10x7xf32> to vector<1x10x7xf32>
    %491 = vector.shape_cast %490 : vector<1x10x7xf32> to vector<10x7xf32>
    %492 = vector.extract_strided_slice %491 {offsets = [0, 0], sizes = [10, 5], strides = [1, 1]} : vector<10x7xf32> to vector<10x5xf32>
    %493 = vector.extract_strided_slice %491 {offsets = [0, 1], sizes = [10, 5], strides = [1, 1]} : vector<10x7xf32> to vector<10x5xf32>
    %494 = vector.extract_strided_slice %491 {offsets = [0, 2], sizes = [10, 5], strides = [1, 1]} : vector<10x7xf32> to vector<10x5xf32>
    %495 = vector.extract_strided_slice %484 {offsets = [2, 0, 0], sizes = [1, 10, 7], strides = [1, 1, 1]} : vector<3x10x7xf32> to vector<1x10x7xf32>
    %496 = vector.shape_cast %495 : vector<1x10x7xf32> to vector<10x7xf32>
    %497 = vector.extract_strided_slice %496 {offsets = [0, 0], sizes = [10, 5], strides = [1, 1]} : vector<10x7xf32> to vector<10x5xf32>
    %498 = vector.extract_strided_slice %496 {offsets = [0, 1], sizes = [10, 5], strides = [1, 1]} : vector<10x7xf32> to vector<10x5xf32>
    %499 = vector.extract_strided_slice %496 {offsets = [0, 2], sizes = [10, 5], strides = [1, 1]} : vector<10x7xf32> to vector<10x5xf32>
    %500 = tpu.concatenate %487, %488, %489, %492, %493, %494, %497, %498, %499 in 0 : vector<10x5xf32>, vector<10x5xf32>, vector<10x5xf32>, vector<10x5xf32>, vector<10x5xf32>, vector<10x5xf32>, vector<10x5xf32>, vector<10x5xf32>, vector<10x5xf32> -> vector<90x5xf32>
    %cst_139 = arith.constant dense<0.000000e+00> : vector<16x5xf32>
    %501 = tpu.matmul %1, %500, %cst_139 {dimension_numbers = #tpu.dot_dimension_numbers<[1], [0], [0], [1], [0, 0, 1, 1], [], []>} : vector<16x90xf32>, vector<90x5xf32>, vector<16x5xf32> -> vector<16x5xf32>
    %502 = arith.addf %501, %13 : vector<16x5xf32>
    %cst_140 = arith.constant 0.000000e+00 : f32
    %503 = vector.broadcast %cst_140 : f32 to vector<16x5xf32>
    %504 = arith.cmpf ogt, %502, %503 : vector<16x5xf32>
    %505 = arith.mulf %502, %16 : vector<16x5xf32>
    %506 = arith.select %504, %502, %505 : vector<16x5xi1>, vector<16x5xf32>
    %507 = vector.shape_cast %506 : vector<16x5xf32> to vector<1x16x5xf32>
    %508 = arith.index_cast %482 : i32 to index
    %c0_141 = arith.constant 0 : index
    %c0_142 = arith.constant 0 : index
    %509 = vector.load %arg9[%508, %c0_141, %c0_142] : memref<5x16x5xf32, #tpu.memory_space<vmem>>, vector<1x16x5xf32>
    tpu.vector_store %arg9[%508, %c0_141, %c0_142], %507 {strides = array<i32>} : memref<5x16x5xf32, #tpu.memory_space<vmem>>, vector<1x16x5xf32>,
    %c1_i32_143 = arith.constant 1 : i32
    %c1_i32_144 = arith.constant 1 : i32
    %510 = arith.muli %c1_i32_143, %c1_i32_144 : i32
    %c0_i32_145 = arith.constant 0 : i32
    %511 = arith.addi %c0_i32_145, %510 : i32
    %512 = arith.index_cast %511 : i32 to index
    %c0_146 = arith.constant 0 : index
    %c0_147 = arith.constant 0 : index
    %513 = vector.load %arg8[%512, %c0_146, %c0_147] : memref<7x10x7xf32, #tpu.memory_space<vmem>>, vector<3x10x7xf32>
    %514 = vector.extract_strided_slice %513 {offsets = [0, 0, 0], sizes = [1, 10, 7], strides = [1, 1, 1]} : vector<3x10x7xf32> to vector<1x10x7xf32>
    %515 = vector.shape_cast %514 : vector<1x10x7xf32> to vector<10x7xf32>
    %516 = vector.extract_strided_slice %515 {offsets = [0, 0], sizes = [10, 5], strides = [1, 1]} : vector<10x7xf32> to vector<10x5xf32>
    %517 = vector.extract_strided_slice %515 {offsets = [0, 1], sizes = [10, 5], strides = [1, 1]} : vector<10x7xf32> to vector<10x5xf32>
    %518 = vector.extract_strided_slice %515 {offsets = [0, 2], sizes = [10, 5], strides = [1, 1]} : vector<10x7xf32> to vector<10x5xf32>
    %519 = vector.extract_strided_slice %513 {offsets = [1, 0, 0], sizes = [1, 10, 7], strides = [1, 1, 1]} : vector<3x10x7xf32> to vector<1x10x7xf32>
    %520 = vector.shape_cast %519 : vector<1x10x7xf32> to vector<10x7xf32>
    %521 = vector.extract_strided_slice %520 {offsets = [0, 0], sizes = [10, 5], strides = [1, 1]} : vector<10x7xf32> to vector<10x5xf32>
    %522 = vector.extract_strided_slice %520 {offsets = [0, 1], sizes = [10, 5], strides = [1, 1]} : vector<10x7xf32> to vector<10x5xf32>
    %523 = vector.extract_strided_slice %520 {offsets = [0, 2], sizes = [10, 5], strides = [1, 1]} : vector<10x7xf32> to vector<10x5xf32>
    %524 = vector.extract_strided_slice %513 {offsets = [2, 0, 0], sizes = [1, 10, 7], strides = [1, 1, 1]} : vector<3x10x7xf32> to vector<1x10x7xf32>
    %525 = vector.shape_cast %524 : vector<1x10x7xf32> to vector<10x7xf32>
    %526 = vector.extract_strided_slice %525 {offsets = [0, 0], sizes = [10, 5], strides = [1, 1]} : vector<10x7xf32> to vector<10x5xf32>
    %527 = vector.extract_strided_slice %525 {offsets = [0, 1], sizes = [10, 5], strides = [1, 1]} : vector<10x7xf32> to vector<10x5xf32>
    %528 = vector.extract_strided_slice %525 {offsets = [0, 2], sizes = [10, 5], strides = [1, 1]} : vector<10x7xf32> to vector<10x5xf32>
    %529 = tpu.concatenate %516, %517, %518, %521, %522, %523, %526, %527, %528 in 0 : vector<10x5xf32>, vector<10x5xf32>, vector<10x5xf32>, vector<10x5xf32>, vector<10x5xf32>, vector<10x5xf32>, vector<10x5xf32>, vector<10x5xf32>, vector<10x5xf32> -> vector<90x5xf32>
    %cst_148 = arith.constant dense<0.000000e+00> : vector<16x5xf32>
    %530 = tpu.matmul %1, %529, %cst_148 {dimension_numbers = #tpu.dot_dimension_numbers<[1], [0], [0], [1], [0, 0, 1, 1], [], []>} : vector<16x90xf32>, vector<90x5xf32>, vector<16x5xf32> -> vector<16x5xf32>
    %531 = arith.addf %530, %13 : vector<16x5xf32>
    %cst_149 = arith.constant 0.000000e+00 : f32
    %532 = vector.broadcast %cst_149 : f32 to vector<16x5xf32>
    %533 = arith.cmpf ogt, %531, %532 : vector<16x5xf32>
    %534 = arith.mulf %531, %16 : vector<16x5xf32>
    %535 = arith.select %533, %531, %534 : vector<16x5xi1>, vector<16x5xf32>
    %536 = vector.shape_cast %535 : vector<16x5xf32> to vector<1x16x5xf32>
    %537 = arith.index_cast %511 : i32 to index
    %c0_150 = arith.constant 0 : index
    %c0_151 = arith.constant 0 : index
    %538 = vector.load %arg9[%537, %c0_150, %c0_151] : memref<5x16x5xf32, #tpu.memory_space<vmem>>, vector<1x16x5xf32>
    tpu.vector_store %arg9[%537, %c0_150, %c0_151], %536 {strides = array<i32>} : memref<5x16x5xf32, #tpu.memory_space<vmem>>, vector<1x16x5xf32>,
    %c2_i32_152 = arith.constant 2 : i32
    %c1_i32_153 = arith.constant 1 : i32
    %539 = arith.muli %c2_i32_152, %c1_i32_153 : i32
    %c0_i32_154 = arith.constant 0 : i32
    %540 = arith.addi %c0_i32_154, %539 : i32
    %541 = arith.index_cast %540 : i32 to index
    %c0_155 = arith.constant 0 : index
    %c0_156 = arith.constant 0 : index
    %542 = vector.load %arg8[%541, %c0_155, %c0_156] : memref<7x10x7xf32, #tpu.memory_space<vmem>>, vector<3x10x7xf32>
    %543 = vector.extract_strided_slice %542 {offsets = [0, 0, 0], sizes = [1, 10, 7], strides = [1, 1, 1]} : vector<3x10x7xf32> to vector<1x10x7xf32>
    %544 = vector.shape_cast %543 : vector<1x10x7xf32> to vector<10x7xf32>
    %545 = vector.extract_strided_slice %544 {offsets = [0, 0], sizes = [10, 5], strides = [1, 1]} : vector<10x7xf32> to vector<10x5xf32>
    %546 = vector.extract_strided_slice %544 {offsets = [0, 1], sizes = [10, 5], strides = [1, 1]} : vector<10x7xf32> to vector<10x5xf32>
    %547 = vector.extract_strided_slice %544 {offsets = [0, 2], sizes = [10, 5], strides = [1, 1]} : vector<10x7xf32> to vector<10x5xf32>
    %548 = vector.extract_strided_slice %542 {offsets = [1, 0, 0], sizes = [1, 10, 7], strides = [1, 1, 1]} : vector<3x10x7xf32> to vector<1x10x7xf32>
    %549 = vector.shape_cast %548 : vector<1x10x7xf32> to vector<10x7xf32>
    %550 = vector.extract_strided_slice %549 {offsets = [0, 0], sizes = [10, 5], strides = [1, 1]} : vector<10x7xf32> to vector<10x5xf32>
    %551 = vector.extract_strided_slice %549 {offsets = [0, 1], sizes = [10, 5], strides = [1, 1]} : vector<10x7xf32> to vector<10x5xf32>
    %552 = vector.extract_strided_slice %549 {offsets = [0, 2], sizes = [10, 5], strides = [1, 1]} : vector<10x7xf32> to vector<10x5xf32>
    %553 = vector.extract_strided_slice %542 {offsets = [2, 0, 0], sizes = [1, 10, 7], strides = [1, 1, 1]} : vector<3x10x7xf32> to vector<1x10x7xf32>
    %554 = vector.shape_cast %553 : vector<1x10x7xf32> to vector<10x7xf32>
    %555 = vector.extract_strided_slice %554 {offsets = [0, 0], sizes = [10, 5], strides = [1, 1]} : vector<10x7xf32> to vector<10x5xf32>
    %556 = vector.extract_strided_slice %554 {offsets = [0, 1], sizes = [10, 5], strides = [1, 1]} : vector<10x7xf32> to vector<10x5xf32>
    %557 = vector.extract_strided_slice %554 {offsets = [0, 2], sizes = [10, 5], strides = [1, 1]} : vector<10x7xf32> to vector<10x5xf32>
    %558 = tpu.concatenate %545, %546, %547, %550, %551, %552, %555, %556, %557 in 0 : vector<10x5xf32>, vector<10x5xf32>, vector<10x5xf32>, vector<10x5xf32>, vector<10x5xf32>, vector<10x5xf32>, vector<10x5xf32>, vector<10x5xf32>, vector<10x5xf32> -> vector<90x5xf32>
    %cst_157 = arith.constant dense<0.000000e+00> : vector<16x5xf32>
    %559 = tpu.matmul %1, %558, %cst_157 {dimension_numbers = #tpu.dot_dimension_numbers<[1], [0], [0], [1], [0, 0, 1, 1], [], []>} : vector<16x90xf32>, vector<90x5xf32>, vector<16x5xf32> -> vector<16x5xf32>
    %560 = arith.addf %559, %13 : vector<16x5xf32>
    %cst_158 = arith.constant 0.000000e+00 : f32
    %561 = vector.broadcast %cst_158 : f32 to vector<16x5xf32>
    %562 = arith.cmpf ogt, %560, %561 : vector<16x5xf32>
    %563 = arith.mulf %560, %16 : vector<16x5xf32>
    %564 = arith.select %562, %560, %563 : vector<16x5xi1>, vector<16x5xf32>
    %565 = vector.shape_cast %564 : vector<16x5xf32> to vector<1x16x5xf32>
    %566 = arith.index_cast %540 : i32 to index
    %c0_159 = arith.constant 0 : index
    %c0_160 = arith.constant 0 : index
    %567 = vector.load %arg9[%566, %c0_159, %c0_160] : memref<5x16x5xf32, #tpu.memory_space<vmem>>, vector<1x16x5xf32>
    tpu.vector_store %arg9[%566, %c0_159, %c0_160], %565 {strides = array<i32>} : memref<5x16x5xf32, #tpu.memory_space<vmem>>, vector<1x16x5xf32>,
    %c3_i32_161 = arith.constant 3 : i32
    %c1_i32_162 = arith.constant 1 : i32
    %568 = arith.muli %c3_i32_161, %c1_i32_162 : i32
    %c0_i32_163 = arith.constant 0 : i32
    %569 = arith.addi %c0_i32_163, %568 : i32
    %570 = arith.index_cast %569 : i32 to index
    %c0_164 = arith.constant 0 : index
    %c0_165 = arith.constant 0 : index
    %571 = vector.load %arg8[%570, %c0_164, %c0_165] : memref<7x10x7xf32, #tpu.memory_space<vmem>>, vector<3x10x7xf32>
    %572 = vector.extract_strided_slice %571 {offsets = [0, 0, 0], sizes = [1, 10, 7], strides = [1, 1, 1]} : vector<3x10x7xf32> to vector<1x10x7xf32>
    %573 = vector.shape_cast %572 : vector<1x10x7xf32> to vector<10x7xf32>
    %574 = vector.extract_strided_slice %573 {offsets = [0, 0], sizes = [10, 5], strides = [1, 1]} : vector<10x7xf32> to vector<10x5xf32>
    %575 = vector.extract_strided_slice %573 {offsets = [0, 1], sizes = [10, 5], strides = [1, 1]} : vector<10x7xf32> to vector<10x5xf32>
    %576 = vector.extract_strided_slice %573 {offsets = [0, 2], sizes = [10, 5], strides = [1, 1]} : vector<10x7xf32> to vector<10x5xf32>
    %577 = vector.extract_strided_slice %571 {offsets = [1, 0, 0], sizes = [1, 10, 7], strides = [1, 1, 1]} : vector<3x10x7xf32> to vector<1x10x7xf32>
    %578 = vector.shape_cast %577 : vector<1x10x7xf32> to vector<10x7xf32>
    %579 = vector.extract_strided_slice %578 {offsets = [0, 0], sizes = [10, 5], strides = [1, 1]} : vector<10x7xf32> to vector<10x5xf32>
    %580 = vector.extract_strided_slice %578 {offsets = [0, 1], sizes = [10, 5], strides = [1, 1]} : vector<10x7xf32> to vector<10x5xf32>
    %581 = vector.extract_strided_slice %578 {offsets = [0, 2], sizes = [10, 5], strides = [1, 1]} : vector<10x7xf32> to vector<10x5xf32>
    %582 = vector.extract_strided_slice %571 {offsets = [2, 0, 0], sizes = [1, 10, 7], strides = [1, 1, 1]} : vector<3x10x7xf32> to vector<1x10x7xf32>
    %583 = vector.shape_cast %582 : vector<1x10x7xf32> to vector<10x7xf32>
    %584 = vector.extract_strided_slice %583 {offsets = [0, 0], sizes = [10, 5], strides = [1, 1]} : vector<10x7xf32> to vector<10x5xf32>
    %585 = vector.extract_strided_slice %583 {offsets = [0, 1], sizes = [10, 5], strides = [1, 1]} : vector<10x7xf32> to vector<10x5xf32>
    %586 = vector.extract_strided_slice %583 {offsets = [0, 2], sizes = [10, 5], strides = [1, 1]} : vector<10x7xf32> to vector<10x5xf32>
    %587 = tpu.concatenate %574, %575, %576, %579, %580, %581, %584, %585, %586 in 0 : vector<10x5xf32>, vector<10x5xf32>, vector<10x5xf32>, vector<10x5xf32>, vector<10x5xf32>, vector<10x5xf32>, vector<10x5xf32>, vector<10x5xf32>, vector<10x5xf32> -> vector<90x5xf32>
    %cst_166 = arith.constant dense<0.000000e+00> : vector<16x5xf32>
    %588 = tpu.matmul %1, %587, %cst_166 {dimension_numbers = #tpu.dot_dimension_numbers<[1], [0], [0], [1], [0, 0, 1, 1], [], []>} : vector<16x90xf32>, vector<90x5xf32>, vector<16x5xf32> -> vector<16x5xf32>
    %589 = arith.addf %588, %13 : vector<16x5xf32>
    %cst_167 = arith.constant 0.000000e+00 : f32
    %590 = vector.broadcast %cst_167 : f32 to vector<16x5xf32>
    %591 = arith.cmpf ogt, %589, %590 : vector<16x5xf32>
    %592 = arith.mulf %589, %16 : vector<16x5xf32>
    %593 = arith.select %591, %589, %592 : vector<16x5xi1>, vector<16x5xf32>
    %594 = vector.shape_cast %593 : vector<16x5xf32> to vector<1x16x5xf32>
    %595 = arith.index_cast %569 : i32 to index
    %c0_168 = arith.constant 0 : index
    %c0_169 = arith.constant 0 : index
    %596 = vector.load %arg9[%595, %c0_168, %c0_169] : memref<5x16x5xf32, #tpu.memory_space<vmem>>, vector<1x16x5xf32>
    tpu.vector_store %arg9[%595, %c0_168, %c0_169], %594 {strides = array<i32>} : memref<5x16x5xf32, #tpu.memory_space<vmem>>, vector<1x16x5xf32>,
    %c4_i32_170 = arith.constant 4 : i32
    %c1_i32_171 = arith.constant 1 : i32
    %597 = arith.muli %c4_i32_170, %c1_i32_171 : i32
    %c0_i32_172 = arith.constant 0 : i32
    %598 = arith.addi %c0_i32_172, %597 : i32
    %599 = arith.index_cast %598 : i32 to index
    %c0_173 = arith.constant 0 : index
    %c0_174 = arith.constant 0 : index
    %600 = vector.load %arg8[%599, %c0_173, %c0_174] : memref<7x10x7xf32, #tpu.memory_space<vmem>>, vector<3x10x7xf32>
    %601 = vector.extract_strided_slice %600 {offsets = [0, 0, 0], sizes = [1, 10, 7], strides = [1, 1, 1]} : vector<3x10x7xf32> to vector<1x10x7xf32>
    %602 = vector.shape_cast %601 : vector<1x10x7xf32> to vector<10x7xf32>
    %603 = vector.extract_strided_slice %602 {offsets = [0, 0], sizes = [10, 5], strides = [1, 1]} : vector<10x7xf32> to vector<10x5xf32>
    %604 = vector.extract_strided_slice %602 {offsets = [0, 1], sizes = [10, 5], strides = [1, 1]} : vector<10x7xf32> to vector<10x5xf32>
    %605 = vector.extract_strided_slice %602 {offsets = [0, 2], sizes = [10, 5], strides = [1, 1]} : vector<10x7xf32> to vector<10x5xf32>
    %606 = vector.extract_strided_slice %600 {offsets = [1, 0, 0], sizes = [1, 10, 7], strides = [1, 1, 1]} : vector<3x10x7xf32> to vector<1x10x7xf32>
    %607 = vector.shape_cast %606 : vector<1x10x7xf32> to vector<10x7xf32>
    %608 = vector.extract_strided_slice %607 {offsets = [0, 0], sizes = [10, 5], strides = [1, 1]} : vector<10x7xf32> to vector<10x5xf32>
    %609 = vector.extract_strided_slice %607 {offsets = [0, 1], sizes = [10, 5], strides = [1, 1]} : vector<10x7xf32> to vector<10x5xf32>
    %610 = vector.extract_strided_slice %607 {offsets = [0, 2], sizes = [10, 5], strides = [1, 1]} : vector<10x7xf32> to vector<10x5xf32>
    %611 = vector.extract_strided_slice %600 {offsets = [2, 0, 0], sizes = [1, 10, 7], strides = [1, 1, 1]} : vector<3x10x7xf32> to vector<1x10x7xf32>
    %612 = vector.shape_cast %611 : vector<1x10x7xf32> to vector<10x7xf32>
    %613 = vector.extract_strided_slice %612 {offsets = [0, 0], sizes = [10, 5], strides = [1, 1]} : vector<10x7xf32> to vector<10x5xf32>
    %614 = vector.extract_strided_slice %612 {offsets = [0, 1], sizes = [10, 5], strides = [1, 1]} : vector<10x7xf32> to vector<10x5xf32>
    %615 = vector.extract_strided_slice %612 {offsets = [0, 2], sizes = [10, 5], strides = [1, 1]} : vector<10x7xf32> to vector<10x5xf32>
    %616 = tpu.concatenate %603, %604, %605, %608, %609, %610, %613, %614, %615 in 0 : vector<10x5xf32>, vector<10x5xf32>, vector<10x5xf32>, vector<10x5xf32>, vector<10x5xf32>, vector<10x5xf32>, vector<10x5xf32>, vector<10x5xf32>, vector<10x5xf32> -> vector<90x5xf32>
    %cst_175 = arith.constant dense<0.000000e+00> : vector<16x5xf32>
    %617 = tpu.matmul %1, %616, %cst_175 {dimension_numbers = #tpu.dot_dimension_numbers<[1], [0], [0], [1], [0, 0, 1, 1], [], []>} : vector<16x90xf32>, vector<90x5xf32>, vector<16x5xf32> -> vector<16x5xf32>
    %618 = arith.addf %617, %13 : vector<16x5xf32>
    %cst_176 = arith.constant 0.000000e+00 : f32
    %619 = vector.broadcast %cst_176 : f32 to vector<16x5xf32>
    %620 = arith.cmpf ogt, %618, %619 : vector<16x5xf32>
    %621 = arith.mulf %618, %16 : vector<16x5xf32>
    %622 = arith.select %620, %618, %621 : vector<16x5xi1>, vector<16x5xf32>
    %623 = vector.shape_cast %622 : vector<16x5xf32> to vector<1x16x5xf32>
    %624 = arith.index_cast %598 : i32 to index
    %c0_177 = arith.constant 0 : index
    %c0_178 = arith.constant 0 : index
    %625 = vector.load %arg9[%624, %c0_177, %c0_178] : memref<5x16x5xf32, #tpu.memory_space<vmem>>, vector<1x16x5xf32>
    tpu.vector_store %arg9[%624, %c0_177, %c0_178], %623 {strides = array<i32>} : memref<5x16x5xf32, #tpu.memory_space<vmem>>, vector<1x16x5xf32>,
    %c5_i32_179 = arith.constant 5 : i32
    %c0_i32_180 = arith.constant 0 : i32
    %c1_i32_181 = arith.constant 1 : i32
    %626 = arith.muli %c0_i32_180, %c1_i32_181 : i32
    %c0_i32_182 = arith.constant 0 : i32
    %627 = arith.addi %c0_i32_182, %626 : i32
    %628 = arith.index_cast %627 : i32 to index
    %c0_183 = arith.constant 0 : index
    %c0_184 = arith.constant 0 : index
    %629 = vector.load %arg9[%628, %c0_183, %c0_184] : memref<5x16x5xf32, #tpu.memory_space<vmem>>, vector<3x16x5xf32>
    %630 = vector.extract_strided_slice %629 {offsets = [0, 0, 0], sizes = [1, 16, 5], strides = [1, 1, 1]} : vector<3x16x5xf32> to vector<1x16x5xf32>
    %631 = vector.shape_cast %630 : vector<1x16x5xf32> to vector<16x5xf32>
    %632 = vector.extract_strided_slice %631 {offsets = [0, 0], sizes = [16, 3], strides = [1, 1]} : vector<16x5xf32> to vector<16x3xf32>
    %633 = vector.extract_strided_slice %631 {offsets = [0, 1], sizes = [16, 3], strides = [1, 1]} : vector<16x5xf32> to vector<16x3xf32>
    %634 = vector.extract_strided_slice %631 {offsets = [0, 2], sizes = [16, 3], strides = [1, 1]} : vector<16x5xf32> to vector<16x3xf32>
    %635 = vector.extract_strided_slice %629 {offsets = [1, 0, 0], sizes = [1, 16, 5], strides = [1, 1, 1]} : vector<3x16x5xf32> to vector<1x16x5xf32>
    %636 = vector.shape_cast %635 : vector<1x16x5xf32> to vector<16x5xf32>
    %637 = vector.extract_strided_slice %636 {offsets = [0, 0], sizes = [16, 3], strides = [1, 1]} : vector<16x5xf32> to vector<16x3xf32>
    %638 = vector.extract_strided_slice %636 {offsets = [0, 1], sizes = [16, 3], strides = [1, 1]} : vector<16x5xf32> to vector<16x3xf32>
    %639 = vector.extract_strided_slice %636 {offsets = [0, 2], sizes = [16, 3], strides = [1, 1]} : vector<16x5xf32> to vector<16x3xf32>
    %640 = vector.extract_strided_slice %629 {offsets = [2, 0, 0], sizes = [1, 16, 5], strides = [1, 1, 1]} : vector<3x16x5xf32> to vector<1x16x5xf32>
    %641 = vector.shape_cast %640 : vector<1x16x5xf32> to vector<16x5xf32>
    %642 = vector.extract_strided_slice %641 {offsets = [0, 0], sizes = [16, 3], strides = [1, 1]} : vector<16x5xf32> to vector<16x3xf32>
    %643 = vector.extract_strided_slice %641 {offsets = [0, 1], sizes = [16, 3], strides = [1, 1]} : vector<16x5xf32> to vector<16x3xf32>
    %644 = vector.extract_strided_slice %641 {offsets = [0, 2], sizes = [16, 3], strides = [1, 1]} : vector<16x5xf32> to vector<16x3xf32>
    %645 = tpu.concatenate %632, %633, %634, %637, %638, %639, %642, %643, %644 in 0 : vector<16x3xf32>, vector<16x3xf32>, vector<16x3xf32>, vector<16x3xf32>, vector<16x3xf32>, vector<16x3xf32>, vector<16x3xf32>, vector<16x3xf32>, vector<16x3xf32> -> vector<144x3xf32>
    %cst_185 = arith.constant dense<0.000000e+00> : vector<32x3xf32>
    %646 = tpu.matmul %2, %645, %cst_185 {dimension_numbers = #tpu.dot_dimension_numbers<[1], [0], [0], [1], [0, 0, 1, 1], [], []>} : vector<32x144xf32>, vector<144x3xf32>, vector<32x3xf32> -> vector<32x3xf32>
    %647 = arith.addf %646, %19 : vector<32x3xf32>
    %cst_186 = arith.constant 0.000000e+00 : f32
    %648 = vector.broadcast %cst_186 : f32 to vector<32x3xf32>
    %649 = arith.cmpf ogt, %647, %648 : vector<32x3xf32>
    %650 = arith.mulf %647, %22 : vector<32x3xf32>
    %651 = arith.select %649, %647, %650 : vector<32x3xi1>, vector<32x3xf32>
    %cst_187 = arith.constant dense<0.000000e+00> : vector<6x3xf32>
    %652 = tpu.matmul %3, %651, %cst_187 {dimension_numbers = #tpu.dot_dimension_numbers<[1], [0], [0], [1], [0, 0, 1, 1], [], []>} : vector<6x32xf32>, vector<32x3xf32>, vector<6x3xf32> -> vector<6x3xf32>
    %653 = arith.addf %652, %25 : vector<6x3xf32>
    %654 = vector.extract_strided_slice %653 {offsets = [5, 0], sizes = [1, 3], strides = [1, 1]} : vector<6x3xf32> to vector<1x3xf32>
    %655 = vector.extract_strided_slice %653 {offsets = [4, 0], sizes = [1, 3], strides = [1, 1]} : vector<6x3xf32> to vector<1x3xf32>
    %656 = arith.subf %654, %655 : vector<1x3xf32>
    %657 = math.exp %656 : vector<1x3xf32>
    %cst_188 = arith.constant 1.000000e+00 : f32
    %658 = vector.broadcast %cst_188 : f32 to vector<1x3xf32>
    %659 = arith.addf %658, %657 : vector<1x3xf32>
    %cst_189 = arith.constant 1.000000e+00 : f32
    %660 = vector.broadcast %cst_189 : f32 to vector<1x3xf32>
    %661 = arith.divf %660, %659 : vector<1x3xf32>
    %662 = vector.extract_strided_slice %653 {offsets = [0, 0], sizes = [4, 3], strides = [1, 1]} : vector<6x3xf32> to vector<4x3xf32>
    %cst_190 = arith.constant 1.000000e+00 : f32
    %663 = vector.broadcast %cst_190 : f32 to vector<1x3xf32>
    %664 = arith.subf %663, %661 : vector<1x3xf32>
    %665 = tpu.concatenate %662, %661, %664 in 0 : vector<4x3xf32>, vector<1x3xf32>, vector<1x3xf32> -> vector<6x3xf32>
    %666 = vector.shape_cast %665 : vector<6x3xf32> to vector<1x6x3xf32>
    %c0_191 = arith.constant 0 : index
    %667 = arith.index_cast %627 : i32 to index
    %c0_192 = arith.constant 0 : index
    %c0_193 = arith.constant 0 : index
    %668 = vector.load %arg7[%c0_191, %667, %c0_192, %c0_193] : memref<1x3x6x3xf32, #tpu.memory_space<vmem>>, vector<1x1x6x3xf32>
    %669 = vector.shape_cast %668 : vector<1x1x6x3xf32> to vector<1x6x3xf32>
    %670 = vector.shape_cast %666 : vector<1x6x3xf32> to vector<1x1x6x3xf32>
    tpu.vector_store %arg7[%c0_191, %667, %c0_192, %c0_193], %670 {strides = array<i32>} : memref<1x3x6x3xf32, #tpu.memory_space<vmem>>, vector<1x1x6x3xf32>,
    %c1_i32_194 = arith.constant 1 : i32
    %c1_i32_195 = arith.constant 1 : i32
    %671 = arith.muli %c1_i32_194, %c1_i32_195 : i32
    %c0_i32_196 = arith.constant 0 : i32
    %672 = arith.addi %c0_i32_196, %671 : i32
    %673 = arith.index_cast %672 : i32 to index
    %c0_197 = arith.constant 0 : index
    %c0_198 = arith.constant 0 : index
    %674 = vector.load %arg9[%673, %c0_197, %c0_198] : memref<5x16x5xf32, #tpu.memory_space<vmem>>, vector<3x16x5xf32>
    %675 = vector.extract_strided_slice %674 {offsets = [0, 0, 0], sizes = [1, 16, 5], strides = [1, 1, 1]} : vector<3x16x5xf32> to vector<1x16x5xf32>
    %676 = vector.shape_cast %675 : vector<1x16x5xf32> to vector<16x5xf32>
    %677 = vector.extract_strided_slice %676 {offsets = [0, 0], sizes = [16, 3], strides = [1, 1]} : vector<16x5xf32> to vector<16x3xf32>
    %678 = vector.extract_strided_slice %676 {offsets = [0, 1], sizes = [16, 3], strides = [1, 1]} : vector<16x5xf32> to vector<16x3xf32>
    %679 = vector.extract_strided_slice %676 {offsets = [0, 2], sizes = [16, 3], strides = [1, 1]} : vector<16x5xf32> to vector<16x3xf32>
    %680 = vector.extract_strided_slice %674 {offsets = [1, 0, 0], sizes = [1, 16, 5], strides = [1, 1, 1]} : vector<3x16x5xf32> to vector<1x16x5xf32>
    %681 = vector.shape_cast %680 : vector<1x16x5xf32> to vector<16x5xf32>
    %682 = vector.extract_strided_slice %681 {offsets = [0, 0], sizes = [16, 3], strides = [1, 1]} : vector<16x5xf32> to vector<16x3xf32>
    %683 = vector.extract_strided_slice %681 {offsets = [0, 1], sizes = [16, 3], strides = [1, 1]} : vector<16x5xf32> to vector<16x3xf32>
    %684 = vector.extract_strided_slice %681 {offsets = [0, 2], sizes = [16, 3], strides = [1, 1]} : vector<16x5xf32> to vector<16x3xf32>
    %685 = vector.extract_strided_slice %674 {offsets = [2, 0, 0], sizes = [1, 16, 5], strides = [1, 1, 1]} : vector<3x16x5xf32> to vector<1x16x5xf32>
    %686 = vector.shape_cast %685 : vector<1x16x5xf32> to vector<16x5xf32>
    %687 = vector.extract_strided_slice %686 {offsets = [0, 0], sizes = [16, 3], strides = [1, 1]} : vector<16x5xf32> to vector<16x3xf32>
    %688 = vector.extract_strided_slice %686 {offsets = [0, 1], sizes = [16, 3], strides = [1, 1]} : vector<16x5xf32> to vector<16x3xf32>
    %689 = vector.extract_strided_slice %686 {offsets = [0, 2], sizes = [16, 3], strides = [1, 1]} : vector<16x5xf32> to vector<16x3xf32>
    %690 = tpu.concatenate %677, %678, %679, %682, %683, %684, %687, %688, %689 in 0 : vector<16x3xf32>, vector<16x3xf32>, vector<16x3xf32>, vector<16x3xf32>, vector<16x3xf32>, vector<16x3xf32>, vector<16x3xf32>, vector<16x3xf32>, vector<16x3xf32> -> vector<144x3xf32>
    %cst_199 = arith.constant dense<0.000000e+00> : vector<32x3xf32>
    %691 = tpu.matmul %2, %690, %cst_199 {dimension_numbers = #tpu.dot_dimension_numbers<[1], [0], [0], [1], [0, 0, 1, 1], [], []>} : vector<32x144xf32>, vector<144x3xf32>, vector<32x3xf32> -> vector<32x3xf32>
    %692 = arith.addf %691, %19 : vector<32x3xf32>
    %cst_200 = arith.constant 0.000000e+00 : f32
    %693 = vector.broadcast %cst_200 : f32 to vector<32x3xf32>
    %694 = arith.cmpf ogt, %692, %693 : vector<32x3xf32>
    %695 = arith.mulf %692, %22 : vector<32x3xf32>
    %696 = arith.select %694, %692, %695 : vector<32x3xi1>, vector<32x3xf32>
    %cst_201 = arith.constant dense<0.000000e+00> : vector<6x3xf32>
    %697 = tpu.matmul %3, %696, %cst_201 {dimension_numbers = #tpu.dot_dimension_numbers<[1], [0], [0], [1], [0, 0, 1, 1], [], []>} : vector<6x32xf32>, vector<32x3xf32>, vector<6x3xf32> -> vector<6x3xf32>
    %698 = arith.addf %697, %25 : vector<6x3xf32>
    %699 = vector.extract_strided_slice %698 {offsets = [5, 0], sizes = [1, 3], strides = [1, 1]} : vector<6x3xf32> to vector<1x3xf32>
    %700 = vector.extract_strided_slice %698 {offsets = [4, 0], sizes = [1, 3], strides = [1, 1]} : vector<6x3xf32> to vector<1x3xf32>
    %701 = arith.subf %699, %700 : vector<1x3xf32>
    %702 = math.exp %701 : vector<1x3xf32>
    %cst_202 = arith.constant 1.000000e+00 : f32
    %703 = vector.broadcast %cst_202 : f32 to vector<1x3xf32>
    %704 = arith.addf %703, %702 : vector<1x3xf32>
    %cst_203 = arith.constant 1.000000e+00 : f32
    %705 = vector.broadcast %cst_203 : f32 to vector<1x3xf32>
    %706 = arith.divf %705, %704 : vector<1x3xf32>
    %707 = vector.extract_strided_slice %698 {offsets = [0, 0], sizes = [4, 3], strides = [1, 1]} : vector<6x3xf32> to vector<4x3xf32>
    %cst_204 = arith.constant 1.000000e+00 : f32
    %708 = vector.broadcast %cst_204 : f32 to vector<1x3xf32>
    %709 = arith.subf %708, %706 : vector<1x3xf32>
    %710 = tpu.concatenate %707, %706, %709 in 0 : vector<4x3xf32>, vector<1x3xf32>, vector<1x3xf32> -> vector<6x3xf32>
    %711 = vector.shape_cast %710 : vector<6x3xf32> to vector<1x6x3xf32>
    %c0_205 = arith.constant 0 : index
    %712 = arith.index_cast %672 : i32 to index
    %c0_206 = arith.constant 0 : index
    %c0_207 = arith.constant 0 : index
    %713 = vector.load %arg7[%c0_205, %712, %c0_206, %c0_207] : memref<1x3x6x3xf32, #tpu.memory_space<vmem>>, vector<1x1x6x3xf32>
    %714 = vector.shape_cast %713 : vector<1x1x6x3xf32> to vector<1x6x3xf32>
    %715 = vector.shape_cast %711 : vector<1x6x3xf32> to vector<1x1x6x3xf32>
    tpu.vector_store %arg7[%c0_205, %712, %c0_206, %c0_207], %715 {strides = array<i32>} : memref<1x3x6x3xf32, #tpu.memory_space<vmem>>, vector<1x1x6x3xf32>,
    %c2_i32_208 = arith.constant 2 : i32
    %c1_i32_209 = arith.constant 1 : i32
    %716 = arith.muli %c2_i32_208, %c1_i32_209 : i32
    %c0_i32_210 = arith.constant 0 : i32
    %717 = arith.addi %c0_i32_210, %716 : i32
    %718 = arith.index_cast %717 : i32 to index
    %c0_211 = arith.constant 0 : index
    %c0_212 = arith.constant 0 : index
    %719 = vector.load %arg9[%718, %c0_211, %c0_212] : memref<5x16x5xf32, #tpu.memory_space<vmem>>, vector<3x16x5xf32>
    %720 = vector.extract_strided_slice %719 {offsets = [0, 0, 0], sizes = [1, 16, 5], strides = [1, 1, 1]} : vector<3x16x5xf32> to vector<1x16x5xf32>
    %721 = vector.shape_cast %720 : vector<1x16x5xf32> to vector<16x5xf32>
    %722 = vector.extract_strided_slice %721 {offsets = [0, 0], sizes = [16, 3], strides = [1, 1]} : vector<16x5xf32> to vector<16x3xf32>
    %723 = vector.extract_strided_slice %721 {offsets = [0, 1], sizes = [16, 3], strides = [1, 1]} : vector<16x5xf32> to vector<16x3xf32>
    %724 = vector.extract_strided_slice %721 {offsets = [0, 2], sizes = [16, 3], strides = [1, 1]} : vector<16x5xf32> to vector<16x3xf32>
    %725 = vector.extract_strided_slice %719 {offsets = [1, 0, 0], sizes = [1, 16, 5], strides = [1, 1, 1]} : vector<3x16x5xf32> to vector<1x16x5xf32>
    %726 = vector.shape_cast %725 : vector<1x16x5xf32> to vector<16x5xf32>
    %727 = vector.extract_strided_slice %726 {offsets = [0, 0], sizes = [16, 3], strides = [1, 1]} : vector<16x5xf32> to vector<16x3xf32>
    %728 = vector.extract_strided_slice %726 {offsets = [0, 1], sizes = [16, 3], strides = [1, 1]} : vector<16x5xf32> to vector<16x3xf32>
    %729 = vector.extract_strided_slice %726 {offsets = [0, 2], sizes = [16, 3], strides = [1, 1]} : vector<16x5xf32> to vector<16x3xf32>
    %730 = vector.extract_strided_slice %719 {offsets = [2, 0, 0], sizes = [1, 16, 5], strides = [1, 1, 1]} : vector<3x16x5xf32> to vector<1x16x5xf32>
    %731 = vector.shape_cast %730 : vector<1x16x5xf32> to vector<16x5xf32>
    %732 = vector.extract_strided_slice %731 {offsets = [0, 0], sizes = [16, 3], strides = [1, 1]} : vector<16x5xf32> to vector<16x3xf32>
    %733 = vector.extract_strided_slice %731 {offsets = [0, 1], sizes = [16, 3], strides = [1, 1]} : vector<16x5xf32> to vector<16x3xf32>
    %734 = vector.extract_strided_slice %731 {offsets = [0, 2], sizes = [16, 3], strides = [1, 1]} : vector<16x5xf32> to vector<16x3xf32>
    %735 = tpu.concatenate %722, %723, %724, %727, %728, %729, %732, %733, %734 in 0 : vector<16x3xf32>, vector<16x3xf32>, vector<16x3xf32>, vector<16x3xf32>, vector<16x3xf32>, vector<16x3xf32>, vector<16x3xf32>, vector<16x3xf32>, vector<16x3xf32> -> vector<144x3xf32>
    %cst_213 = arith.constant dense<0.000000e+00> : vector<32x3xf32>
    %736 = tpu.matmul %2, %735, %cst_213 {dimension_numbers = #tpu.dot_dimension_numbers<[1], [0], [0], [1], [0, 0, 1, 1], [], []>} : vector<32x144xf32>, vector<144x3xf32>, vector<32x3xf32> -> vector<32x3xf32>
    %737 = arith.addf %736, %19 : vector<32x3xf32>
    %cst_214 = arith.constant 0.000000e+00 : f32
    %738 = vector.broadcast %cst_214 : f32 to vector<32x3xf32>
    %739 = arith.cmpf ogt, %737, %738 : vector<32x3xf32>
    %740 = arith.mulf %737, %22 : vector<32x3xf32>
    %741 = arith.select %739, %737, %740 : vector<32x3xi1>, vector<32x3xf32>
    %cst_215 = arith.constant dense<0.000000e+00> : vector<6x3xf32>
    %742 = tpu.matmul %3, %741, %cst_215 {dimension_numbers = #tpu.dot_dimension_numbers<[1], [0], [0], [1], [0, 0, 1, 1], [], []>} : vector<6x32xf32>, vector<32x3xf32>, vector<6x3xf32> -> vector<6x3xf32>
    %743 = arith.addf %742, %25 : vector<6x3xf32>
    %744 = vector.extract_strided_slice %743 {offsets = [5, 0], sizes = [1, 3], strides = [1, 1]} : vector<6x3xf32> to vector<1x3xf32>
    %745 = vector.extract_strided_slice %743 {offsets = [4, 0], sizes = [1, 3], strides = [1, 1]} : vector<6x3xf32> to vector<1x3xf32>
    %746 = arith.subf %744, %745 : vector<1x3xf32>
    %747 = math.exp %746 : vector<1x3xf32>
    %cst_216 = arith.constant 1.000000e+00 : f32
    %748 = vector.broadcast %cst_216 : f32 to vector<1x3xf32>
    %749 = arith.addf %748, %747 : vector<1x3xf32>
    %cst_217 = arith.constant 1.000000e+00 : f32
    %750 = vector.broadcast %cst_217 : f32 to vector<1x3xf32>
    %751 = arith.divf %750, %749 : vector<1x3xf32>
    %752 = vector.extract_strided_slice %743 {offsets = [0, 0], sizes = [4, 3], strides = [1, 1]} : vector<6x3xf32> to vector<4x3xf32>
    %cst_218 = arith.constant 1.000000e+00 : f32
    %753 = vector.broadcast %cst_218 : f32 to vector<1x3xf32>
    %754 = arith.subf %753, %751 : vector<1x3xf32>
    %755 = tpu.concatenate %752, %751, %754 in 0 : vector<4x3xf32>, vector<1x3xf32>, vector<1x3xf32> -> vector<6x3xf32>
    %756 = vector.shape_cast %755 : vector<6x3xf32> to vector<1x6x3xf32>
    %c0_219 = arith.constant 0 : index
    %757 = arith.index_cast %717 : i32 to index
    %c0_220 = arith.constant 0 : index
    %c0_221 = arith.constant 0 : index
    %758 = vector.load %arg7[%c0_219, %757, %c0_220, %c0_221] : memref<1x3x6x3xf32, #tpu.memory_space<vmem>>, vector<1x1x6x3xf32>
    %759 = vector.shape_cast %758 : vector<1x1x6x3xf32> to vector<1x6x3xf32>
    %760 = vector.shape_cast %756 : vector<1x6x3xf32> to vector<1x1x6x3xf32>
    tpu.vector_store %arg7[%c0_219, %757, %c0_220, %c0_221], %760 {strides = array<i32>} : memref<1x3x6x3xf32, #tpu.memory_space<vmem>>, vector<1x1x6x3xf32>,
    %c3_i32_222 = arith.constant 3 : i32
    return
  }
  func.func @transform_0(%arg0: i32) -> (i32, i32, i32, i32) {
    %c0_i32 = arith.constant 0 : i32
    %c0_i32_0 = arith.constant 0 : i32
    %c0_i32_1 = arith.constant 0 : i32
    %c0_i32_2 = arith.constant 0 : i32
    return %arg0, %c0_i32, %c0_i32_0, %c0_i32_1 : i32, i32, i32, i32
  }
  func.func @transform_1(%arg0: i32) -> (i32, i32) {
    %c0_i32 = arith.constant 0 : i32
    %c0_i32_0 = arith.constant 0 : i32
    %c0_i32_1 = arith.constant 0 : i32
    return %c0_i32, %c0_i32_0 : i32, i32
  }
  func.func @transform_2(%arg0: i32) -> (i32, i32) {
    %c0_i32 = arith.constant 0 : i32
    %c0_i32_0 = arith.constant 0 : i32
    %c0_i32_1 = arith.constant 0 : i32
    return %c0_i32, %c0_i32_0 : i32, i32
  }
  func.func @transform_3(%arg0: i32) -> (i32, i32) {
    %c0_i32 = arith.constant 0 : i32
    %c0_i32_0 = arith.constant 0 : i32
    %c0_i32_1 = arith.constant 0 : i32
    return %c0_i32, %c0_i32_0 : i32, i32
  }
  func.func @transform_4(%arg0: i32) -> (i32, i32) {
    %c0_i32 = arith.constant 0 : i32
    %c0_i32_0 = arith.constant 0 : i32
    %c0_i32_1 = arith.constant 0 : i32
    return %c0_i32, %c0_i32_0 : i32, i32
  }
  func.func @transform_5(%arg0: i32) -> (i32, i32) {
    %c0_i32 = arith.constant 0 : i32
    %c0_i32_0 = arith.constant 0 : i32
    %c0_i32_1 = arith.constant 0 : i32
    return %c0_i32, %c0_i32_0 : i32, i32
  }
  func.func @transform_6(%arg0: i32) -> (i32, i32, i32, i32) {
    %c0_i32 = arith.constant 0 : i32
    %c0_i32_0 = arith.constant 0 : i32
    %c0_i32_1 = arith.constant 0 : i32
    %c0_i32_2 = arith.constant 0 : i32
    return %arg0, %c0_i32, %c0_i32_0, %c0_i32_1 : i32, i32, i32, i32
  }
}

</mosaic_0001>

<llo_original>
// kernel: pnet_forward.1
$region0: #{pnet_forward.1}
  #allocation0 [shape = 'u32[]', space=smem, size = 0x4, offset = 0x4, fixed_abs, tag = 'smem constant byte address 0x4 - core index']
  #allocation1 [shape = 'u32[72,128]{1,0:T(1,128)}', space=vmem, size = 0x9000, scoped, tag = 'internal scratch']
  #allocation2 [shape = 'f32[7,10,7]{2,1,0:T(8,128)}', space=vmem, size = 0xe000, scoped, tag = 'scratch operand']
  #allocation3 [shape = 'f32[5,16,5]{2,1,0:T(8,128)}', space=vmem, size = 0xa000, scoped, tag = 'scratch operand']
  %s0 = inlined_call_operand.vmem [shape: f32[2,16,3,16], index: 0, kind: input, shape index: {}]
  %s1 = inlined_call_operand.vmem [shape: f32[10,27], index: 1, kind: input, shape index: {}]
  %s2 = inlined_call_operand.vmem [shape: f32[16,90], index: 2, kind: input, shape index: {}]
  %s3 = inlined_call_operand.vmem [shape: f32[32,144], index: 3, kind: input, shape index: {}]
  %s4 = inlined_call_operand.vmem [shape: f32[6,32], index: 4, kind: input, shape index: {}]
  %s5 = inlined_call_operand.vmem [shape: f32[32,8], index: 5, kind: input, shape index: {}]
  %s6 = inlined_call_operand.vmem [shape: f32[2,3,6,3], index: 6, kind: output, shape index: {}]
  %s7 = sld [smem:[#allocation0]]
  $region57: #{pnet_forward.1} parent=0
    _
  %s9 = ssub.s32 1, %s7
  %s10 = scalar_select 0, %s9, %s7
  loop: start=0, step=1, limit=4
  $region2: #{pnet_forward.1} parent=0 // loop_pre_header
    _
  $region3: #{pnet_forward.1} parent=0 // loop_header
    %s12 = sphi 0, %s16
    %p13 = scmp.ge.s32.totalorder %s12, 4
    %s22 = sphi 0, %s24
    %s25 = sphi 0, %s22
    %s26 = sphi 0, %s25
    %s42 = sphi 0, %s26
    %s46 = sphi 0, %s46
    %s48 = sphi 0, %s46
    %s49 = sphi 0, %s48
    %s63 = sphi 0, %s49
    %s67 = sphi 0, %s67
    %s69 = sphi 0, %s67
    %s70 = sphi 0, %s69
    %s84 = sphi 0, %s70
    %s88 = sphi 0, %s88
    %s90 = sphi 0, %s88
    %s91 = sphi 0, %s90
    %s105 = sphi 0, %s91
    %s109 = sphi 0, %s109
    %s111 = sphi 0, %s109
    %s112 = sphi 0, %s111
    %s126 = sphi 0, %s112
    %s130 = sphi 0, %s130
    %s132 = sphi 0, %s130
    %s133 = sphi 0, %s132
    %s147 = sphi 0, %s133
    %s153 = sphi 0, %s155
    %s156 = sphi 0, %s153
    %s157 = sphi 0, %s156
    %s173 = sphi 0, %s157
  $region4: #{pnet_forward.1} parent=0 // loop_header_branch
    %15 = sbr.rel (%p13) target = $region8
  $region5: #{pnet_forward.1} parent=0 // loop_body
    %s17 = ssub.s32 %s12, 1
    %s18 = ssub.s32 %s12, 2
    %s19 = sadd.s32 %s12, 1
    %s20 = ssub.s32 %s12, %s19
    %p21 = scmp.eq.s32.totalorder %s20, 0
    %s23 = sadd.s32 %s22, 1
    %s24 = scalar_select %p21, %s22, %s23
    %p27 = pneg %p21
    %p28 = scmp.eq.s32.totalorder %s12, 1
    %p29 = por %p27, %p28
    %p30 = scmp.ne.s32.totalorder %s22, %s25
    %p31 = scmp.eq.s32.totalorder %s12, 0
    %p32 = por %p30, %p31
    %p33 = scmp.ne.s32.totalorder %s22, %s25
    %p34 = scmp.eq.s32.totalorder %s17, 1
    %p35 = por %p33, %p34
    %p36 = scmp.ne.s32.totalorder %s25, %s26
    %p37 = scmp.eq.s32.totalorder %s17, 0
    %p38 = por %p36, %p37
    %p39 = scmp.ne.s32.totalorder %s25, %s26
    %p40 = scmp.eq.s32.totalorder %s18, 1
    %p41 = por %p39, %p40
    %p43 = scmp.ne.s32.totalorder %s26, %s42
    %p44 = scmp.eq.s32.totalorder %s18, 0
    %p45 = por %p43, %p44
    %s47 = sadd.s32 %s46, 1
    %p50 = scmp.eq.s32.totalorder %s12, 1
    %p51 = scmp.ne.s32.totalorder %s46, %s48
    %p52 = scmp.eq.s32.totalorder %s12, 0
    %p53 = por %p51, %p52
    %p54 = scmp.ne.s32.totalorder %s46, %s48
    %p55 = scmp.eq.s32.totalorder %s17, 1
    %p56 = por %p54, %p55
    %p57 = scmp.ne.s32.totalorder %s48, %s49
    %p58 = scmp.eq.s32.totalorder %s17, 0
    %p59 = por %p57, %p58
    %p60 = scmp.ne.s32.totalorder %s48, %s49
    %p61 = scmp.eq.s32.totalorder %s18, 1
    %p62 = por %p60, %p61
    %p64 = scmp.ne.s32.totalorder %s49, %s63
    %p65 = scmp.eq.s32.totalorder %s18, 0
    %p66 = por %p64, %p65
    %s68 = sadd.s32 %s67, 1
    %p71 = scmp.eq.s32.totalorder %s12, 1
    %p72 = scmp.ne.s32.totalorder %s67, %s69
    %p73 = scmp.eq.s32.totalorder %s12, 0
    %p74 = por %p72, %p73
    %p75 = scmp.ne.s32.totalorder %s67, %s69
    %p76 = scmp.eq.s32.totalorder %s17, 1
    %p77 = por %p75, %p76
    %p78 = scmp.ne.s32.totalorder %s69, %s70
    %p79 = scmp.eq.s32.totalorder %s17, 0
    %p80 = por %p78, %p79
    %p81 = scmp.ne.s32.totalorder %s69, %s70
    %p82 = scmp.eq.s32.totalorder %s18, 1
    %p83 = por %p81, %p82
    %p85 = scmp.ne.s32.totalorder %s70, %s84
    %p86 = scmp.eq.s32.totalorder %s18, 0
    %p87 = por %p85, %p86
    %s89 = sadd.s32 %s88, 1
    %p92 = scmp.eq.s32.totalorder %s12, 1
    %p93 = scmp.ne.s32.totalorder %s88, %s90
    %p94 = scmp.eq.s32.totalorder %s12, 0
    %p95 = por %p93, %p94
    %p96 = scmp.ne.s32.totalorder %s88, %s90
    %p97 = scmp.eq.s32.totalorder %s17, 1
    %p98 = por %p96, %p97
    %p99 = scmp.ne.s32.totalorder %s90, %s91
    %p100 = scmp.eq.s32.totalorder %s17, 0
    %p101 = por %p99, %p100
    %p102 = scmp.ne.s32.totalorder %s90, %s91
    %p103 = scmp.eq.s32.totalorder %s18, 1
    %p104 = por %p102, %p103
    %p106 = scmp.ne.s32.totalorder %s91, %s105
    %p107 = scmp.eq.s32.totalorder %s18, 0
    %p108 = por %p106, %p107
    %s110 = sadd.s32 %s109, 1
    %p113 = scmp.eq.s32.totalorder %s12, 1
    %p114 = scmp.ne.s32.totalorder %s109, %s111
    %p115 = scmp.eq.s32.totalorder %s12, 0
    %p116 = por %p114, %p115
    %p117 = scmp.ne.s32.totalorder %s109, %s111
    %p118 = scmp.eq.s32.totalorder %s17, 1
    %p119 = por %p117, %p118
    %p120 = scmp.ne.s32.totalorder %s111, %s112
    %p121 = scmp.eq.s32.totalorder %s17, 0
    %p122 = por %p120, %p121
    %p123 = scmp.ne.s32.totalorder %s111, %s112
    %p124 = scmp.eq.s32.totalorder %s18, 1
    %p125 = por %p123, %p124
    %p127 = scmp.ne.s32.totalorder %s112, %s126
    %p128 = scmp.eq.s32.totalorder %s18, 0
    %p129 = por %p127, %p128
    %s131 = sadd.s32 %s130, 1
    %p134 = scmp.eq.s32.totalorder %s12, 1
    %p135 = scmp.ne.s32.totalorder %s130, %s132
    %p136 = scmp.eq.s32.totalorder %s12, 0
    %p137 = por %p135, %p136
    %p138 = scmp.ne.s32.totalorder %s130, %s132
    %p139 = scmp.eq.s32.totalorder %s17, 1
    %p140 = por %p138, %p139
    %p141 = scmp.ne.s32.totalorder %s132, %s133
    %p142 = scmp.eq.s32.totalorder %s17, 0
    %p143 = por %p141, %p142
    %p144 = scmp.ne.s32.totalorder %s132, %s133
    %p145 = scmp.eq.s32.totalorder %s18, 1
    %p146 = por %p144, %p145
    %p148 = scmp.ne.s32.totalorder %s133, %s147
    %p149 = scmp.eq.s32.totalorder %s18, 0
    %p150 = por %p148, %p149
    %s151 = ssub.s32 %s12, %s19
    %p152 = scmp.eq.s32.totalorder %s151, 0
    %s154 = sadd.s32 %s153, 1
    %s155 = scalar_select %p152, %s153, %s154
    %p158 = pneg %p152
    %p159 = scmp.eq.s32.totalorder %s12, 1
    %p160 = por %p158, %p159
    %p161 = scmp.ne.s32.totalorder %s153, %s156
    %p162 = scmp.eq.s32.totalorder %s12, 0
    %p163 = por %p161, %p162
    %p164 = scmp.ne.s32.totalorder %s153, %s156
    %p165 = scmp.eq.s32.totalorder %s17, 1
    %p166 = por %p164, %p165
    %p167 = scmp.ne.s32.totalorder %s156, %s157
    %p168 = scmp.eq.s32.totalorder %s17, 0
    %p169 = por %p167, %p168
    %p170 = scmp.ne.s32.totalorder %s156, %s157
    %p171 = scmp.eq.s32.totalorder %s18, 1
    %p172 = por %p170, %p171
    %p174 = scmp.ne.s32.totalorder %s157, %s173
    %p175 = scmp.eq.s32.totalorder %s18, 0
    %p176 = por %p174, %p175
    %p177 = scmp.le.s32.totalorder 1, %s12
    %p178 = scmp.lt.s32.totalorder %s12, 3
    %p179 = pnand %p177, %p178
    %p180 = pneg %p179
    // Predicated region
    $region9: #{pnet_forward.1} parent=5 // pred_check
      _
    $region10: #{pnet_forward.1} parent=5 // pred_check_branch
      %182 = sbr.rel (%p179) target = $region12
    $region11: #{pnet_forward.1} parent=5 // pred_region
      %s183 = ssub.s32 %s12, 1
      // Predicated region
      $region13: #{pnet_forward.1} parent=11 // pred_check
        %p184 = pneg %p59
      $region14: #{pnet_forward.1} parent=11 // pred_check_branch
        %186 = sbr.rel (%p184) target = $region16
      $region15: #{pnet_forward.1} parent=11 // pred_region
        _
      $region16: #{pnet_forward.1} parent=11 // pred_fallthru
        _
      // Predicated region
      $region17: #{pnet_forward.1} parent=11 // pred_check
        %p187 = pneg %p80
      $region18: #{pnet_forward.1} parent=11 // pred_check_branch
        %189 = sbr.rel (%p187) target = $region20
      $region19: #{pnet_forward.1} parent=11 // pred_region
        _
      $region20: #{pnet_forward.1} parent=11 // pred_fallthru
        _
      // Predicated region
      $region21: #{pnet_forward.1} parent=11 // pred_check
        %p190 = pneg %p101
      $region22: #{pnet_forward.1} parent=11 // pred_check_branch
        %192 = sbr.rel (%p190) target = $region24
      $region23: #{pnet_forward.1} parent=11 // pred_region
        _
      $region24: #{pnet_forward.1} parent=11 // pred_fallthru
        _
      // Predicated region
      $region25: #{pnet_forward.1} parent=11 // pred_check
        %p193 = pneg %p122
      $region26: #{pnet_forward.1} parent=11 // pred_check_branch
        %195 = sbr.rel (%p193) target = $region28
      $region27: #{pnet_forward.1} parent=11 // pred_region
        _
      $region28: #{pnet_forward.1} parent=11 // pred_fallthru
        _
      // Predicated region
      $region29: #{pnet_forward.1} parent=11 // pred_check
        %p196 = pneg %p143
      $region30: #{pnet_forward.1} parent=11 // pred_check_branch
        %198 = sbr.rel (%p196) target = $region32
      $region31: #{pnet_forward.1} parent=11 // pred_region
        _
      $region32: #{pnet_forward.1} parent=11 // pred_fallthru
        _
    $region12: #{pnet_forward.1} parent=5 // pred_fallthru
      _
    %p199 = scmp.lt.s32.totalorder %s12, 2
    // Predicated region
    $region33: #{pnet_forward.1} parent=5 // pred_check
      %p200 = pneg %p199
    $region34: #{pnet_forward.1} parent=5 // pred_check_branch
      %202 = sbr.rel (%p200) target = $region36
    $region35: #{pnet_forward.1} parent=5 // pred_region
      // Predicated region
      $region37: #{pnet_forward.1} parent=35 // pred_check
        %p203 = pneg %p32
      $region38: #{pnet_forward.1} parent=35 // pred_check_branch
        %205 = sbr.rel (%p203) target = $region40
      $region39: #{pnet_forward.1} parent=35 // pred_region
        %p206 = scmp.lt.s32.totalorder %s12, 1
        %s207 = scalar_select %p206, %s12, 1
        %s208 = smul.addr %s207, 16
        %s209 = smul.addr %s208, 4
        %s210 = scalar_lea.vmem %s0, %s209
      $region40: #{pnet_forward.1} parent=35 // pred_fallthru
        _
    $region36: #{pnet_forward.1} parent=5 // pred_fallthru
      _
    %p211 = scmp.le.s32.totalorder 1, %s12
    %p212 = scmp.lt.s32.totalorder %s12, 3
    %p213 = pnand %p211, %p212
    %p214 = pneg %p213
    // Predicated region
    $region41: #{pnet_forward.1} parent=5 // pred_check
      _
    $region42: #{pnet_forward.1} parent=5 // pred_check_branch
      %216 = sbr.rel (%p213) target = $region44
    $region43: #{pnet_forward.1} parent=5 // pred_region
      %s217 = ssub.s32 %s12, 1
      %p218 = scmp.lt.s32.totalorder %s17, 1
      %s219 = scalar_select %p218, %s17, 1
      %s220 = smul.addr %s219, 16
      %s221 = smul.addr %s220, 4
      %s222 = scalar_lea.vmem %s0, %s221
      %p223 = pneg %p38
      %p224 = pneg %p35
      %p225 = pneg %p59
      %p226 = pneg %p56
      %p227 = pneg %p80
      %p228 = pneg %p77
      %p229 = pneg %p101
      %p230 = pneg %p98
      %p231 = pneg %p122
      %p232 = pneg %p119
      %p233 = pneg %p143
      %p234 = pneg %p140
      %p235 = pneg %p169
      %p236 = pneg %p166
      %p237 = scmp.lt.s32.totalorder %s17, 1
      %s238 = scalar_select %p237, %s17, 1
      %s239 = smul.addr %s238, 3
      %s240 = smul.addr %s239, 8
      %s241 = scalar_lea.vmem %s6, %s240
      %p242 = scmp.lt.s32.totalorder %s17, 1
      %s243 = scalar_select %p242, %s17, 1
      %s244 = smul.addr %s243, 16
      %s245 = smul.addr %s244, 4
      %s246 = scalar_lea.vmem %s0, %s245
      %p247 = scmp.lt.s32.totalorder %s17, 1
      %s248 = scalar_select %p247, %s17, 1
      %s249 = smul.addr %s248, 3
      %s250 = smul.addr %s249, 8
      %s251 = scalar_lea.vmem %s6, %s250
      %v252 = vld [vmem:[%s1] sm:$0xff]
      %v253 = vld [vmem:[%s1 + $0x8] sm:$0x3]
      %v254 = vld [vmem:[%s2] sm:$0xff]
      %v255 = vld [vmem:[%s2 + $0x8] sm:$0xff]
      %v256 = vld [vmem:[%s3] sm:$0xff]
      %v257 = vld [vmem:[%s3 + $0x8] sm:$0xff]
      %v258 = vld [vmem:[%s3 + $0x10] sm:$0xff]
      %v259 = vld [vmem:[%s3 + $0x18] sm:$0xff]
      %v260 = vld [vmem:[%s3 + $0x20] sm:$0xff]
      %v261 = vld [vmem:[%s3 + $0x28] sm:$0xff]
      %v262 = vld [vmem:[%s3 + $0x30] sm:$0xff]
      %v263 = vld [vmem:[%s3 + $0x38] sm:$0xff]
      %v264 = vld [vmem:[%s4] sm:$0x3f]
      %v265 = vld [vmem:[%s5] sm:$0xff]
      %v266 = vld [vmem:[%s5 + $0x8] sm:$0xff]
      %v267 = vld [vmem:[%s5 + $0x10] sm:$0xff]
      %v268 = vld [vmem:[%s5 + $0x18] sm:$0xff]
      %270 = vset.pattern.permute.xlu0 0
      %271 = vperm.xlu0 %270, %v265
      %v272 = vpop.permute.xlu0 %271
      %275 = vset.pattern.permute.xlu0 0
      %276 = vperm.xlu0 %275, %v266
      %v277 = vpop.permute.xlu0 %276
      %279 = vset.pattern.permute.xlu0 1
      %280 = vperm.xlu0 %279, %v265
      %v281 = vpop.permute.xlu0 %280
      %283 = vset.pattern.permute.xlu0 1
      %284 = vperm.xlu0 %283, %v266
      %v285 = vpop.permute.xlu0 %284
      %287 = vset.pattern.permute.xlu0 2
      %288 = vperm.xlu0 %287, %v265
      %v289 = vpop.permute.xlu0 %288
      %291 = vset.pattern.permute.xlu0 2
      %292 = vperm.xlu0 %291, %v266
      %v293 = vpop.permute.xlu0 %292
      %295 = vset.pattern.permute.xlu0 3
      %296 = vperm.xlu0 %295, %v265
      %v297 = vpop.permute.xlu0 %296
      %299 = vset.pattern.permute.xlu0 3
      %300 = vperm.xlu0 %299, %v266
      %v301 = vpop.permute.xlu0 %300
      %303 = vset.pattern.permute.xlu0 4
      %304 = vperm.xlu0 %303, %v265
      %v305 = vpop.permute.xlu0 %304
      %307 = vset.pattern.permute.xlu0 4
      %308 = vperm.xlu0 %307, %v266
      %v309 = vpop.permute.xlu0 %308
      %312 = vset.pattern.permute.xlu0 4
      %313 = vperm.xlu0 %312, %v267
      %v314 = vpop.permute.xlu0 %313
      %317 = vset.pattern.permute.xlu0 4
      %318 = vperm.xlu0 %317, %v268
      %v319 = vpop.permute.xlu0 %318
      %321 = vset.pattern.permute.xlu0 5
      %322 = vperm.xlu0 %321, %v265
      %v323 = vpop.permute.xlu0 %322
      %325 = vset.pattern.permute.xlu0 5
      %326 = vperm.xlu0 %325, %v266
      %v327 = vpop.permute.xlu0 %326
      %329 = vset.pattern.permute.xlu0 5
      %330 = vperm.xlu0 %329, %v267
      %v331 = vpop.permute.xlu0 %330
      %333 = vset.pattern.permute.xlu0 5
      %334 = vperm.xlu0 %333, %v268
      %v335 = vpop.permute.xlu0 %334
      %337 = vset.pattern.permute.xlu0 6
      %338 = vperm.xlu0 %337, %v265
      %v339 = vpop.permute.xlu0 %338
      %v341 = vlaneseq
      %v342 = vshrl.u32 %v341, 7
      %v343 = vadd.s32 %v342, 8
      %v344 = vlaneseq
      %v345 = vand.u32 %v344, 127
      %v346 = vmul.u32 %v345, 2
      %vm347 = vcmp.eq.s32.totalorder %v342, %v346
      %vm348 = vcmp.eq.s32.totalorder %v343, %v346
      %v349 = vsel %vm347, 1, 0
      %v350 = vsel %vm348, 1, 0
      %v351 = vcvt.s32.f32 %v349
      %v352 = vcvt.s32.f32 %v350
      %v353 = vld [vmem:[%s246] sm:$0x7]
      %v354 = vld [vmem:[%s246 + $0x4] sm:$0x7]
      %v355 = vld [vmem:[%s246 + $0x8] sm:$0x7]
      %v357 = vrot.slane %v353, 5
      %358 = vrot.lane.b32.xlu0 %v357, 127
      %v359 = vpop.permute.xlu0 %358
      %v361 = vrot.slane %v353, 2
      %362 = vrot.lane.b32.xlu0 %v361, 126
      %v363 = vpop.permute.xlu0 %362
      %v366 = vrot.slane %v354, 7
      %v368 = vrot.slane %v354, 4
      %369 = vrot.lane.b32.xlu0 %v368, 127
      %v370 = vpop.permute.xlu0 %369
      %v372 = vrot.slane %v354, 1
      %373 = vrot.lane.b32.xlu0 %v372, 126
      %v374 = vpop.permute.xlu0 %373
      %v377 = vrot.slane %v355, 6
      %v379 = vrot.slane %v355, 3
      %380 = vrot.lane.b32.xlu0 %v379, 127
      %v381 = vpop.permute.xlu0 %380
      %383 = vrot.lane.b32.xlu0 %v355, 126
      %v384 = vpop.permute.xlu0 %383
      %vm385 = vcmask 1042432
      %v386 = vsel %vm385, %v353, %v359
      %vm387 = vcmask 1045504
      %v388 = vsel %vm387, %v386, %v363
      %vm389 = vcmask 1040384
      %v390 = vsel %vm389, %v363, %v366
      %vm391 = vcmask 1043456
      %v392 = vsel %vm391, %v390, %v370
      %vm393 = vcmask 1046528
      %v394 = vsel %vm393, %v392, %v374
      %vm395 = vcmask 1041408
      %v396 = vsel %vm395, %v374, %v377
      %vm397 = vcmask 1044480
      %v398 = vsel %vm397, %v396, %v381
      %vm399 = vcmask 220160
      %v401 = vsel %vm399, %v252, 0
      %v404 = vsel %vm399, %v253, 0
      %v406 = vsel %vm385, %v384, 0
      %408 = vmatpush.msra.mxu0 0.0
      %409 = vmatpush.msra.mxu0 0.0
      %410 = vmatpush.msra.mxu0 0.0
      %411 = vmatpush.msra.mxu0 0.0
      %412 = vmatpush.msra.mxu0 0.0
      %413 = vmatpush.msra.mxu0 0.0
      %414 = vmatpush.msra.mxu0 0.0
      %415 = vmatpush.msra.mxu0 0.0
      %416 = vmatpush.msra.mxu0 0.0
      %417 = vmatpush.msra.mxu0 0.0
      %418 = vmatpush.msra.mxu0 0.0
      %419 = vmatpush.msra.mxu0 0.0
      %420 = vmatpush.msra.mxu0 %v406
      %421 = vmatpush.msra.mxu0 %v398
      %422 = vmatpush.msra.mxu0 %v394
      %423 = vmatpush.msra.mxu0 %v388
      %424 = vmatmul.f32.gmra.mxu0 %v401
      %v425 = vpop.f32.mrf.mxu0
      %v426 = vadd.f32 %v272, %v425
      %427 = vmatmul.f32.gmra.mxu0 %v404
      %v428 = vpop.f32.mrf.mxu0
      %v429 = vadd.f32 %v277, %v428
      %430 = vdwg.mxu0
      %vm431 = vcmp.gt.f32.partialorder %v426, 0.0
      %vm432 = vcmp.gt.f32.partialorder %v429, 0.0
      %v433 = vmul.f32 %v426, %v281
      %v434 = vmul.f32 %v429, %v285
      %v435 = vsel %vm431, %v426, %v433
      %v436 = vsel %vm432, %v429, %v434
      %s437 = scalar_lea.vmem %s246, 4
      %v438 = vld [vmem:[%s437] sm:$0x7]
      %v439 = vld [vmem:[%s437 + $0x4] sm:$0x7]
      %v440 = vld [vmem:[%s437 + $0x8] sm:$0x7]
      %v442 = vrot.slane %v438, 5
      %443 = vrot.lane.b32.xlu0 %v442, 127
      %v444 = vpop.permute.xlu0 %443
      %v446 = vrot.slane %v438, 2
      %447 = vrot.lane.b32.xlu0 %v446, 126
      %v448 = vpop.permute.xlu0 %447
      %v451 = vrot.slane %v439, 7
      %v453 = vrot.slane %v439, 4
      %454 = vrot.lane.b32.xlu0 %v453, 127
      %v455 = vpop.permute.xlu0 %454
      %v457 = vrot.slane %v439, 1
      %458 = vrot.lane.b32.xlu0 %v457, 126
      %v459 = vpop.permute.xlu0 %458
      %v462 = vrot.slane %v440, 6
      %v464 = vrot.slane %v440, 3
      %465 = vrot.lane.b32.xlu0 %v464, 127
      %v466 = vpop.permute.xlu0 %465
      %468 = vrot.lane.b32.xlu0 %v440, 126
      %v469 = vpop.permute.xlu0 %468
      %v470 = vsel %vm385, %v438, %v444
      %v471 = vsel %vm387, %v470, %v448
      %v472 = vsel %vm389, %v448, %v451
      %v473 = vsel %vm391, %v472, %v455
      %v474 = vsel %vm393, %v473, %v459
      %v475 = vsel %vm395, %v459, %v462
      %v476 = vsel %vm397, %v475, %v466
      %v477 = vsel %vm385, %v469, 0
      %479 = vmatpush.msra.mxu0 0.0
      %480 = vmatpush.msra.mxu0 0.0
      %481 = vmatpush.msra.mxu0 0.0
      %482 = vmatpush.msra.mxu0 0.0
      %483 = vmatpush.msra.mxu0 0.0
      %484 = vmatpush.msra.mxu0 0.0
      %485 = vmatpush.msra.mxu0 0.0
      %486 = vmatpush.msra.mxu0 0.0
      %487 = vmatpush.msra.mxu0 0.0
      %488 = vmatpush.msra.mxu0 0.0
      %489 = vmatpush.msra.mxu0 0.0
      %490 = vmatpush.msra.mxu0 0.0
      %491 = vmatpush.msra.mxu0 %v477
      %492 = vmatpush.msra.mxu0 %v476
      %493 = vmatpush.msra.mxu0 %v474
      %494 = vmatpush.msra.mxu0 %v471
      %495 = vmatmul.f32.gmra.mxu0 %v401
      %v496 = vpop.f32.mrf.mxu0
      %v497 = vadd.f32 %v272, %v496
      %498 = vmatmul.f32.gmra.mxu0 %v404
      %v499 = vpop.f32.mrf.mxu0
      %v500 = vadd.f32 %v277, %v499
      %501 = vdwg.mxu0
      %vm502 = vcmp.gt.f32.partialorder %v497, 0.0
      %vm503 = vcmp.gt.f32.partialorder %v500, 0.0
      %v504 = vmul.f32 %v497, %v281
      %v505 = vmul.f32 %v500, %v285
      %v506 = vsel %vm502, %v497, %v504
      %v507 = vsel %vm503, %v500, %v505
      %v508 = vmax.f32 %v435, %v506
      %v509 = vmax.f32 %v436, %v507
      %512 = vrot.lane.b32.xlu0 %v508, 127
      %v513 = vpop.permute.xlu0 %512
      %514 = vrot.lane.b32.xlu0 %v509, 127
      %v515 = vpop.permute.xlu0 %514
      %vm518 = vcmask 105472
      %v519 = vsel %vm518, %v513, %v508
      %v520 = vsel %vm518, %v515, %v509
      %v521 = vmax.f32 %v508, %v519
      %v522 = vmax.f32 %v509, %v520
      %vm523 = vcmask 113664
      %v525 = vsel %vm523, %v521, 0
      %v528 = vsel %vm523, %v522, 0
      %v531 = vsel %vm387, %v352, 0
      %533 = vmatpush.msra.mxu0 0.0
      %534 = vmatpush.msra.mxu0 0.0
      %535 = vmatpush.msra.mxu0 0.0
      %536 = vmatpush.msra.mxu0 0.0
      %537 = vmatpush.msra.mxu0 0.0
      %538 = vmatpush.msra.mxu0 0.0
      %539 = vmatpush.msra.mxu0 0.0
      %540 = vmatpush.msra.mxu0 0.0
      %541 = vmatpush.msra.mxu0 0.0
      %542 = vmatpush.msra.mxu0 0.0
      %543 = vmatpush.msra.mxu0 0.0
      %544 = vmatpush.msra.mxu0 0.0
      %545 = vmatpush.msra.mxu0 0.0
      %546 = vmatpush.msra.mxu0 0.0
      %547 = vmatpush.msra.mxu0 %v531
      %548 = vmatpush.msra.mxu0 %v351
      %549 = vmatmul.f32.gmra.mxu0 %v525
      %v550 = vpop.f32.mrf.mxu0
      %v551 = vadd.f32 0.0, %v550
      %552 = vmatmul.f32.gmra.mxu0 %v528
      %v553 = vpop.f32.mrf.mxu0
      %v554 = vadd.f32 0.0, %v553
      %555 = vdwg.mxu0
      %vm556 = vcmask 56320
      %557 = vst.msk [vmem:[#allocation2] sm:$0xff] %vm556, %v551
      %vm558 = vcmask 50176
      %559 = vst.msk [vmem:[#allocation2 + $0x8] sm:$0x3] %vm558, %v554
      %s560 = scalar_lea.vmem %s246, 8
      %v561 = vld [vmem:[%s560] sm:$0x7]
      %v562 = vld [vmem:[%s560 + $0x4] sm:$0x7]
      %v563 = vld [vmem:[%s560 + $0x8] sm:$0x7]
      %v565 = vrot.slane %v561, 5
      %566 = vrot.lane.b32.xlu0 %v565, 127
      %v567 = vpop.permute.xlu0 %566
      %v569 = vrot.slane %v561, 2
      %570 = vrot.lane.b32.xlu0 %v569, 126
      %v571 = vpop.permute.xlu0 %570
      %v574 = vrot.slane %v562, 7
      %v576 = vrot.slane %v562, 4
      %577 = vrot.lane.b32.xlu0 %v576, 127
      %v578 = vpop.permute.xlu0 %577
      %v580 = vrot.slane %v562, 1
      %581 = vrot.lane.b32.xlu0 %v580, 126
      %v582 = vpop.permute.xlu0 %581
      %v585 = vrot.slane %v563, 6
      %v587 = vrot.slane %v563, 3
      %588 = vrot.lane.b32.xlu0 %v587, 127
      %v589 = vpop.permute.xlu0 %588
      %591 = vrot.lane.b32.xlu0 %v563, 126
      %v592 = vpop.permute.xlu0 %591
      %v593 = vsel %vm385, %v561, %v567
      %v594 = vsel %vm387, %v593, %v571
      %v595 = vsel %vm389, %v571, %v574
      %v596 = vsel %vm391, %v595, %v578
      %v597 = vsel %vm393, %v596, %v582
      %v598 = vsel %vm395, %v582, %v585
      %v599 = vsel %vm397, %v598, %v589
      %v600 = vsel %vm385, %v592, 0
      %602 = vmatpush.msra.mxu0 0.0
      %603 = vmatpush.msra.mxu0 0.0
      %604 = vmatpush.msra.mxu0 0.0
      %605 = vmatpush.msra.mxu0 0.0
      %606 = vmatpush.msra.mxu0 0.0
      %607 = vmatpush.msra.mxu0 0.0
      %608 = vmatpush.msra.mxu0 0.0
      %609 = vmatpush.msra.mxu0 0.0
      %610 = vmatpush.msra.mxu0 0.0
      %611 = vmatpush.msra.mxu0 0.0
      %612 = vmatpush.msra.mxu0 0.0
      %613 = vmatpush.msra.mxu0 0.0
      %614 = vmatpush.msra.mxu0 %v600
      %615 = vmatpush.msra.mxu0 %v599
      %616 = vmatpush.msra.mxu0 %v597
      %617 = vmatpush.msra.mxu0 %v594
      %618 = vmatmul.f32.gmra.mxu0 %v401
      %v619 = vpop.f32.mrf.mxu0
      %v620 = vadd.f32 %v272, %v619
      %621 = vmatmul.f32.gmra.mxu0 %v404
      %v622 = vpop.f32.mrf.mxu0
      %v623 = vadd.f32 %v277, %v622
      %624 = vdwg.mxu0
      %vm625 = vcmp.gt.f32.partialorder %v620, 0.0
      %vm626 = vcmp.gt.f32.partialorder %v623, 0.0
      %v627 = vmul.f32 %v620, %v281
      %v628 = vmul.f32 %v623, %v285
      %v629 = vsel %vm625, %v620, %v627
      %v630 = vsel %vm626, %v623, %v628
      %s631 = scalar_lea.vmem %s246, 12
      %v632 = vld [vmem:[%s631] sm:$0x7]
      %v633 = vld [vmem:[%s631 + $0x4] sm:$0x7]
      %v634 = vld [vmem:[%s631 + $0x8] sm:$0x7]
      %v636 = vrot.slane %v632, 5
      %637 = vrot.lane.b32.xlu0 %v636, 127
      %v638 = vpop.permute.xlu0 %637
      %v640 = vrot.slane %v632, 2
      %641 = vrot.lane.b32.xlu0 %v640, 126
      %v642 = vpop.permute.xlu0 %641
      %v645 = vrot.slane %v633, 7
      %v647 = vrot.slane %v633, 4
      %648 = vrot.lane.b32.xlu0 %v647, 127
      %v649 = vpop.permute.xlu0 %648
      %v651 = vrot.slane %v633, 1
      %652 = vrot.lane.b32.xlu0 %v651, 126
      %v653 = vpop.permute.xlu0 %652
      %v656 = vrot.slane %v634, 6
      %v658 = vrot.slane %v634, 3
      %659 = vrot.lane.b32.xlu0 %v658, 127
      %v660 = vpop.permute.xlu0 %659
      %662 = vrot.lane.b32.xlu0 %v634, 126
      %v663 = vpop.permute.xlu0 %662
      %v664 = vsel %vm385, %v632, %v638
      %v665 = vsel %vm387, %v664, %v642
      %v666 = vsel %vm389, %v642, %v645
      %v667 = vsel %vm391, %v666, %v649
      %v668 = vsel %vm393, %v667, %v653
      %v669 = vsel %vm395, %v653, %v656
      %v670 = vsel %vm397, %v669, %v660
      %v671 = vsel %vm385, %v663, 0
      %673 = vmatpush.msra.mxu0 0.0
      %674 = vmatpush.msra.mxu0 0.0
      %675 = vmatpush.msra.mxu0 0.0
      %676 = vmatpush.msra.mxu0 0.0
      %677 = vmatpush.msra.mxu0 0.0
      %678 = vmatpush.msra.mxu0 0.0
      %679 = vmatpush.msra.mxu0 0.0
      %680 = vmatpush.msra.mxu0 0.0
      %681 = vmatpush.msra.mxu0 0.0
      %682 = vmatpush.msra.mxu0 0.0
      %683 = vmatpush.msra.mxu0 0.0
      %684 = vmatpush.msra.mxu0 0.0
      %685 = vmatpush.msra.mxu0 %v671
      %686 = vmatpush.msra.mxu0 %v670
      %687 = vmatpush.msra.mxu0 %v668
      %688 = vmatpush.msra.mxu0 %v665
      %689 = vmatmul.f32.gmra.mxu0 %v401
      %v690 = vpop.f32.mrf.mxu0
      %v691 = vadd.f32 %v272, %v690
      %692 = vmatmul.f32.gmra.mxu0 %v404
      %v693 = vpop.f32.mrf.mxu0
      %v694 = vadd.f32 %v277, %v693
      %695 = vdwg.mxu0
      %vm696 = vcmp.gt.f32.partialorder %v691, 0.0
      %vm697 = vcmp.gt.f32.partialorder %v694, 0.0
      %v698 = vmul.f32 %v691, %v281
      %v699 = vmul.f32 %v694, %v285
      %v700 = vsel %vm696, %v691, %v698
      %v701 = vsel %vm697, %v694, %v699
      %v702 = vmax.f32 %v629, %v700
      %v703 = vmax.f32 %v630, %v701
      %706 = vrot.lane.b32.xlu0 %v702, 127
      %v707 = vpop.permute.xlu0 %706
      %708 = vrot.lane.b32.xlu0 %v703, 127
      %v709 = vpop.permute.xlu0 %708
      %v712 = vsel %vm518, %v707, %v702
      %v713 = vsel %vm518, %v709, %v703
      %v714 = vmax.f32 %v702, %v712
      %v715 = vmax.f32 %v703, %v713
      %v717 = vsel %vm523, %v714, 0
      %v720 = vsel %vm523, %v715, 0
      %722 = vmatpush.msra.mxu0 0.0
      %723 = vmatpush.msra.mxu0 0.0
      %724 = vmatpush.msra.mxu0 0.0
      %725 = vmatpush.msra.mxu0 0.0
      %726 = vmatpush.msra.mxu0 0.0
      %727 = vmatpush.msra.mxu0 0.0
      %728 = vmatpush.msra.mxu0 0.0
      %729 = vmatpush.msra.mxu0 0.0
      %730 = vmatpush.msra.mxu0 0.0
      %731 = vmatpush.msra.mxu0 0.0
      %732 = vmatpush.msra.mxu0 0.0
      %733 = vmatpush.msra.mxu0 0.0
      %734 = vmatpush.msra.mxu0 0.0
      %735 = vmatpush.msra.mxu0 0.0
      %736 = vmatpush.msra.mxu0 %v531
      %737 = vmatpush.msra.mxu0 %v351
      %738 = vmatmul.f32.gmra.mxu0 %v717
      %v739 = vpop.f32.mrf.mxu0
      %v740 = vadd.f32 0.0, %v739
      %741 = vmatmul.f32.gmra.mxu0 %v720
      %v742 = vpop.f32.mrf.mxu0
      %v743 = vadd.f32 0.0, %v742
      %744 = vdwg.mxu0
      %s745 = scalar_lea.vmem [#allocation2], 16
      %746 = vst.msk [vmem:[%s745] sm:$0xff] %vm556, %v740
      %747 = vst.msk [vmem:[%s745 + $0x8] sm:$0x3] %vm558, %v743
      %s748 = scalar_lea.vmem %s246, 16
      %v749 = vld [vmem:[%s748] sm:$0x7]
      %v750 = vld [vmem:[%s748 + $0x4] sm:$0x7]
      %v751 = vld [vmem:[%s748 + $0x8] sm:$0x7]
      %v753 = vrot.slane %v749, 5
      %754 = vrot.lane.b32.xlu0 %v753, 127
      %v755 = vpop.permute.xlu0 %754
      %v757 = vrot.slane %v749, 2
      %758 = vrot.lane.b32.xlu0 %v757, 126
      %v759 = vpop.permute.xlu0 %758
      %v762 = vrot.slane %v750, 7
      %v764 = vrot.slane %v750, 4
      %765 = vrot.lane.b32.xlu0 %v764, 127
      %v766 = vpop.permute.xlu0 %765
      %v768 = vrot.slane %v750, 1
      %769 = vrot.lane.b32.xlu0 %v768, 126
      %v770 = vpop.permute.xlu0 %769
      %v773 = vrot.slane %v751, 6
      %v775 = vrot.slane %v751, 3
      %776 = vrot.lane.b32.xlu0 %v775, 127
      %v777 = vpop.permute.xlu0 %776
      %779 = vrot.lane.b32.xlu0 %v751, 126
      %v780 = vpop.permute.xlu0 %779
      %v781 = vsel %vm385, %v749, %v755
      %v782 = vsel %vm387, %v781, %v759
      %v783 = vsel %vm389, %v759, %v762
      %v784 = vsel %vm391, %v783, %v766
      %v785 = vsel %vm393, %v784, %v770
      %v786 = vsel %vm395, %v770, %v773
      %v787 = vsel %vm397, %v786, %v777
      %v788 = vsel %vm385, %v780, 0
      %790 = vmatpush.msra.mxu0 0.0
      %791 = vmatpush.msra.mxu0 0.0
      %792 = vmatpush.msra.mxu0 0.0
      %793 = vmatpush.msra.mxu0 0.0
      %794 = vmatpush.msra.mxu0 0.0
      %795 = vmatpush.msra.mxu0 0.0
      %796 = vmatpush.msra.mxu0 0.0
      %797 = vmatpush.msra.mxu0 0.0
      %798 = vmatpush.msra.mxu0 0.0
      %799 = vmatpush.msra.mxu0 0.0
      %800 = vmatpush.msra.mxu0 0.0
      %801 = vmatpush.msra.mxu0 0.0
      %802 = vmatpush.msra.mxu0 %v788
      %803 = vmatpush.msra.mxu0 %v787
      %804 = vmatpush.msra.mxu0 %v785
      %805 = vmatpush.msra.mxu0 %v782
      %806 = vmatmul.f32.gmra.mxu0 %v401
      %v807 = vpop.f32.mrf.mxu0
      %v808 = vadd.f32 %v272, %v807
      %809 = vmatmul.f32.gmra.mxu0 %v404
      %v810 = vpop.f32.mrf.mxu0
      %v811 = vadd.f32 %v277, %v810
      %812 = vdwg.mxu0
      %vm813 = vcmp.gt.f32.partialorder %v808, 0.0
      %vm814 = vcmp.gt.f32.partialorder %v811, 0.0
      %v815 = vmul.f32 %v808, %v281
      %v816 = vmul.f32 %v811, %v285
      %v817 = vsel %vm813, %v808, %v815
      %v818 = vsel %vm814, %v811, %v816
      %s819 = scalar_lea.vmem %s246, 20
      %v820 = vld [vmem:[%s819] sm:$0x7]
      %v821 = vld [vmem:[%s819 + $0x4] sm:$0x7]
      %v822 = vld [vmem:[%s819 + $0x8] sm:$0x7]
      %v824 = vrot.slane %v820, 5
      %825 = vrot.lane.b32.xlu0 %v824, 127
      %v826 = vpop.permute.xlu0 %825
      %v828 = vrot.slane %v820, 2
      %829 = vrot.lane.b32.xlu0 %v828, 126
      %v830 = vpop.permute.xlu0 %829
      %v833 = vrot.slane %v821, 7
      %v835 = vrot.slane %v821, 4
      %836 = vrot.lane.b32.xlu0 %v835, 127
      %v837 = vpop.permute.xlu0 %836
      %v839 = vrot.slane %v821, 1
      %840 = vrot.lane.b32.xlu0 %v839, 126
      %v841 = vpop.permute.xlu0 %840
      %v844 = vrot.slane %v822, 6
      %v846 = vrot.slane %v822, 3
      %847 = vrot.lane.b32.xlu0 %v846, 127
      %v848 = vpop.permute.xlu0 %847
      %850 = vrot.lane.b32.xlu0 %v822, 126
      %v851 = vpop.permute.xlu0 %850
      %v852 = vsel %vm385, %v820, %v826
      %v853 = vsel %vm387, %v852, %v830
      %v854 = vsel %vm389, %v830, %v833
      %v855 = vsel %vm391, %v854, %v837
      %v856 = vsel %vm393, %v855, %v841
      %v857 = vsel %vm395, %v841, %v844
      %v858 = vsel %vm397, %v857, %v848
      %v859 = vsel %vm385, %v851, 0
      %861 = vmatpush.msra.mxu0 0.0
      %862 = vmatpush.msra.mxu0 0.0
      %863 = vmatpush.msra.mxu0 0.0
      %864 = vmatpush.msra.mxu0 0.0
      %865 = vmatpush.msra.mxu0 0.0
      %866 = vmatpush.msra.mxu0 0.0
      %867 = vmatpush.msra.mxu0 0.0
      %868 = vmatpush.msra.mxu0 0.0
      %869 = vmatpush.msra.mxu0 0.0
      %870 = vmatpush.msra.mxu0 0.0
      %871 = vmatpush.msra.mxu0 0.0
      %872 = vmatpush.msra.mxu0 0.0
      %873 = vmatpush.msra.mxu0 %v859
      %874 = vmatpush.msra.mxu0 %v858
      %875 = vmatpush.msra.mxu0 %v856
      %876 = vmatpush.msra.mxu0 %v853
      %877 = vmatmul.f32.gmra.mxu0 %v401
      %v878 = vpop.f32.mrf.mxu0
      %v879 = vadd.f32 %v272, %v878
      %880 = vmatmul.f32.gmra.mxu0 %v404
      %v881 = vpop.f32.mrf.mxu0
      %v882 = vadd.f32 %v277, %v881
      %883 = vdwg.mxu0
      %vm884 = vcmp.gt.f32.partialorder %v879, 0.0
      %vm885 = vcmp.gt.f32.partialorder %v882, 0.0
      %v886 = vmul.f32 %v879, %v281
      %v887 = vmul.f32 %v882, %v285
      %v888 = vsel %vm884, %v879, %v886
      %v889 = vsel %vm885, %v882, %v887
      %v890 = vmax.f32 %v817, %v888
      %v891 = vmax.f32 %v818, %v889
      %894 = vrot.lane.b32.xlu0 %v890, 127
      %v895 = vpop.permute.xlu0 %894
      %896 = vrot.lane.b32.xlu0 %v891, 127
      %v897 = vpop.permute.xlu0 %896
      %v900 = vsel %vm518, %v895, %v890
      %v901 = vsel %vm518, %v897, %v891
      %v902 = vmax.f32 %v890, %v900
      %v903 = vmax.f32 %v891, %v901
      %v905 = vsel %vm523, %v902, 0
      %v908 = vsel %vm523, %v903, 0
      %910 = vmatpush.msra.mxu0 0.0
      %911 = vmatpush.msra.mxu0 0.0
      %912 = vmatpush.msra.mxu0 0.0
      %913 = vmatpush.msra.mxu0 0.0
      %914 = vmatpush.msra.mxu0 0.0
      %915 = vmatpush.msra.mxu0 0.0
      %916 = vmatpush.msra.mxu0 0.0
      %917 = vmatpush.msra.mxu0 0.0
      %918 = vmatpush.msra.mxu0 0.0
      %919 = vmatpush.msra.mxu0 0.0
      %920 = vmatpush.msra.mxu0 0.0
      %921 = vmatpush.msra.mxu0 0.0
      %922 = vmatpush.msra.mxu0 0.0
      %923 = vmatpush.msra.mxu0 0.0
      %924 = vmatpush.msra.mxu0 %v531
      %925 = vmatpush.msra.mxu0 %v351
      %926 = vmatmul.f32.gmra.mxu0 %v905
      %v927 = vpop.f32.mrf.mxu0
      %v928 = vadd.f32 0.0, %v927
      %929 = vmatmul.f32.gmra.mxu0 %v908
      %v930 = vpop.f32.mrf.mxu0
      %v931 = vadd.f32 0.0, %v930
      %932 = vdwg.mxu0
      %s933 = scalar_lea.vmem [#allocation2], 32
      %934 = vst.msk [vmem:[%s933] sm:$0xff] %vm556, %v928
      %935 = vst.msk [vmem:[%s933 + $0x8] sm:$0x3] %vm558, %v931
      %s936 = scalar_lea.vmem %s246, 24
      %v937 = vld [vmem:[%s936] sm:$0x7]
      %v938 = vld [vmem:[%s936 + $0x4] sm:$0x7]
      %v939 = vld [vmem:[%s936 + $0x8] sm:$0x7]
      %v941 = vrot.slane %v937, 5
      %942 = vrot.lane.b32.xlu0 %v941, 127
      %v943 = vpop.permute.xlu0 %942
      %v945 = vrot.slane %v937, 2
      %946 = vrot.lane.b32.xlu0 %v945, 126
      %v947 = vpop.permute.xlu0 %946
      %v950 = vrot.slane %v938, 7
      %v952 = vrot.slane %v938, 4
      %953 = vrot.lane.b32.xlu0 %v952, 127
      %v954 = vpop.permute.xlu0 %953
      %v956 = vrot.slane %v938, 1
      %957 = vrot.lane.b32.xlu0 %v956, 126
      %v958 = vpop.permute.xlu0 %957
      %v961 = vrot.slane %v939, 6
      %v963 = vrot.slane %v939, 3
      %964 = vrot.lane.b32.xlu0 %v963, 127
      %v965 = vpop.permute.xlu0 %964
      %967 = vrot.lane.b32.xlu0 %v939, 126
      %v968 = vpop.permute.xlu0 %967
      %v969 = vsel %vm385, %v937, %v943
      %v970 = vsel %vm387, %v969, %v947
      %v971 = vsel %vm389, %v947, %v950
      %v972 = vsel %vm391, %v971, %v954
      %v973 = vsel %vm393, %v972, %v958
      %v974 = vsel %vm395, %v958, %v961
      %v975 = vsel %vm397, %v974, %v965
      %v976 = vsel %vm385, %v968, 0
      %978 = vmatpush.msra.mxu0 0.0
      %979 = vmatpush.msra.mxu0 0.0
      %980 = vmatpush.msra.mxu0 0.0
      %981 = vmatpush.msra.mxu0 0.0
      %982 = vmatpush.msra.mxu0 0.0
      %983 = vmatpush.msra.mxu0 0.0
      %984 = vmatpush.msra.mxu0 0.0
      %985 = vmatpush.msra.mxu0 0.0
      %986 = vmatpush.msra.mxu0 0.0
      %987 = vmatpush.msra.mxu0 0.0
      %988 = vmatpush.msra.mxu0 0.0
      %989 = vmatpush.msra.mxu0 0.0
      %990 = vmatpush.msra.mxu0 %v976
      %991 = vmatpush.msra.mxu0 %v975
      %992 = vmatpush.msra.mxu0 %v973
      %993 = vmatpush.msra.mxu0 %v970
      %994 = vmatmul.f32.gmra.mxu0 %v401
      %v995 = vpop.f32.mrf.mxu0
      %v996 = vadd.f32 %v272, %v995
      %997 = vmatmul.f32.gmra.mxu0 %v404
      %v998 = vpop.f32.mrf.mxu0
      %v999 = vadd.f32 %v277, %v998
      %1000 = vdwg.mxu0
      %vm1001 = vcmp.gt.f32.partialorder %v996, 0.0
      %vm1002 = vcmp.gt.f32.partialorder %v999, 0.0
      %v1003 = vmul.f32 %v996, %v281
      %v1004 = vmul.f32 %v999, %v285
      %v1005 = vsel %vm1001, %v996, %v1003
      %v1006 = vsel %vm1002, %v999, %v1004
      %s1007 = scalar_lea.vmem %s246, 28
      %v1008 = vld [vmem:[%s1007] sm:$0x7]
      %v1009 = vld [vmem:[%s1007 + $0x4] sm:$0x7]
      %v1010 = vld [vmem:[%s1007 + $0x8] sm:$0x7]
      %v1012 = vrot.slane %v1008, 5
      %1013 = vrot.lane.b32.xlu0 %v1012, 127
      %v1014 = vpop.permute.xlu0 %1013
      %v1016 = vrot.slane %v1008, 2
      %1017 = vrot.lane.b32.xlu0 %v1016, 126
      %v1018 = vpop.permute.xlu0 %1017
      %v1021 = vrot.slane %v1009, 7
      %v1023 = vrot.slane %v1009, 4
      %1024 = vrot.lane.b32.xlu0 %v1023, 127
      %v1025 = vpop.permute.xlu0 %1024
      %v1027 = vrot.slane %v1009, 1
      %1028 = vrot.lane.b32.xlu0 %v1027, 126
      %v1029 = vpop.permute.xlu0 %1028
      %v1032 = vrot.slane %v1010, 6
      %v1034 = vrot.slane %v1010, 3
      %1035 = vrot.lane.b32.xlu0 %v1034, 127
      %v1036 = vpop.permute.xlu0 %1035
      %1038 = vrot.lane.b32.xlu0 %v1010, 126
      %v1039 = vpop.permute.xlu0 %1038
      %v1040 = vsel %vm385, %v1008, %v1014
      %v1041 = vsel %vm387, %v1040, %v1018
      %v1042 = vsel %vm389, %v1018, %v1021
      %v1043 = vsel %vm391, %v1042, %v1025
      %v1044 = vsel %vm393, %v1043, %v1029
      %v1045 = vsel %vm395, %v1029, %v1032
      %v1046 = vsel %vm397, %v1045, %v1036
      %v1047 = vsel %vm385, %v1039, 0
      %1049 = vmatpush.msra.mxu0 0.0
      %1050 = vmatpush.msra.mxu0 0.0
      %1051 = vmatpush.msra.mxu0 0.0
      %1052 = vmatpush.msra.mxu0 0.0
      %1053 = vmatpush.msra.mxu0 0.0
      %1054 = vmatpush.msra.mxu0 0.0
      %1055 = vmatpush.msra.mxu0 0.0
      %1056 = vmatpush.msra.mxu0 0.0
      %1057 = vmatpush.msra.mxu0 0.0
      %1058 = vmatpush.msra.mxu0 0.0
      %1059 = vmatpush.msra.mxu0 0.0
      %1060 = vmatpush.msra.mxu0 0.0
      %1061 = vmatpush.msra.mxu0 %v1047
      %1062 = vmatpush.msra.mxu0 %v1046
      %1063 = vmatpush.msra.mxu0 %v1044
      %1064 = vmatpush.msra.mxu0 %v1041
      %1065 = vmatmul.f32.gmra.mxu0 %v401
      %v1066 = vpop.f32.mrf.mxu0
      %v1067 = vadd.f32 %v272, %v1066
      %1068 = vmatmul.f32.gmra.mxu0 %v404
      %v1069 = vpop.f32.mrf.mxu0
      %v1070 = vadd.f32 %v277, %v1069
      %1071 = vdwg.mxu0
      %vm1072 = vcmp.gt.f32.partialorder %v1067, 0.0
      %vm1073 = vcmp.gt.f32.partialorder %v1070, 0.0
      %v1074 = vmul.f32 %v1067, %v281
      %v1075 = vmul.f32 %v1070, %v285
      %v1076 = vsel %vm1072, %v1067, %v1074
      %v1077 = vsel %vm1073, %v1070, %v1075
      %v1078 = vmax.f32 %v1005, %v1076
      %v1079 = vmax.f32 %v1006, %v1077
      %1082 = vrot.lane.b32.xlu0 %v1078, 127
      %v1083 = vpop.permute.xlu0 %1082
      %1084 = vrot.lane.b32.xlu0 %v1079, 127
      %v1085 = vpop.permute.xlu0 %1084
      %v1088 = vsel %vm518, %v1083, %v1078
      %v1089 = vsel %vm518, %v1085, %v1079
      %v1090 = vmax.f32 %v1078, %v1088
      %v1091 = vmax.f32 %v1079, %v1089
      %v1093 = vsel %vm523, %v1090, 0
      %v1096 = vsel %vm523, %v1091, 0
      %1098 = vmatpush.msra.mxu0 0.0
      %1099 = vmatpush.msra.mxu0 0.0
      %1100 = vmatpush.msra.mxu0 0.0
      %1101 = vmatpush.msra.mxu0 0.0
      %1102 = vmatpush.msra.mxu0 0.0
      %1103 = vmatpush.msra.mxu0 0.0
      %1104 = vmatpush.msra.mxu0 0.0
      %1105 = vmatpush.msra.mxu0 0.0
      %1106 = vmatpush.msra.mxu0 0.0
      %1107 = vmatpush.msra.mxu0 0.0
      %1108 = vmatpush.msra.mxu0 0.0
      %1109 = vmatpush.msra.mxu0 0.0
      %1110 = vmatpush.msra.mxu0 0.0
      %1111 = vmatpush.msra.mxu0 0.0
      %1112 = vmatpush.msra.mxu0 %v531
      %1113 = vmatpush.msra.mxu0 %v351
      %1114 = vmatmul.f32.gmra.mxu0 %v1093
      %v1115 = vpop.f32.mrf.mxu0
      %v1116 = vadd.f32 0.0, %v1115
      %1117 = vmatmul.f32.gmra.mxu0 %v1096
      %v1118 = vpop.f32.mrf.mxu0
      %v1119 = vadd.f32 0.0, %v1118
      %1120 = vdwg.mxu0
      %s1121 = scalar_lea.vmem [#allocation2], 48
      %1122 = vst.msk [vmem:[%s1121] sm:$0xff] %vm556, %v1116
      %1123 = vst.msk [vmem:[%s1121 + $0x8] sm:$0x3] %vm558, %v1119
      %s1124 = scalar_lea.vmem %s246, 32
      %v1125 = vld [vmem:[%s1124] sm:$0x7]
      %v1126 = vld [vmem:[%s1124 + $0x4] sm:$0x7]
      %v1127 = vld [vmem:[%s1124 + $0x8] sm:$0x7]
      %v1129 = vrot.slane %v1125, 5
      %1130 = vrot.lane.b32.xlu0 %v1129, 127
      %v1131 = vpop.permute.xlu0 %1130
      %v1133 = vrot.slane %v1125, 2
      %1134 = vrot.lane.b32.xlu0 %v1133, 126
      %v1135 = vpop.permute.xlu0 %1134
      %v1138 = vrot.slane %v1126, 7
      %v1140 = vrot.slane %v1126, 4
      %1141 = vrot.lane.b32.xlu0 %v1140, 127
      %v1142 = vpop.permute.xlu0 %1141
      %v1144 = vrot.slane %v1126, 1
      %1145 = vrot.lane.b32.xlu0 %v1144, 126
      %v1146 = vpop.permute.xlu0 %1145
      %v1149 = vrot.slane %v1127, 6
      %v1151 = vrot.slane %v1127, 3
      %1152 = vrot.lane.b32.xlu0 %v1151, 127
      %v1153 = vpop.permute.xlu0 %1152
      %1155 = vrot.lane.b32.xlu0 %v1127, 126
      %v1156 = vpop.permute.xlu0 %1155
      %v1157 = vsel %vm385, %v1125, %v1131
      %v1158 = vsel %vm387, %v1157, %v1135
      %v1159 = vsel %vm389, %v1135, %v1138
      %v1160 = vsel %vm391, %v1159, %v1142
      %v1161 = vsel %vm393, %v1160, %v1146
      %v1162 = vsel %vm395, %v1146, %v1149
      %v1163 = vsel %vm397, %v1162, %v1153
      %v1164 = vsel %vm385, %v1156, 0
      %1166 = vmatpush.msra.mxu0 0.0
      %1167 = vmatpush.msra.mxu0 0.0
      %1168 = vmatpush.msra.mxu0 0.0
      %1169 = vmatpush.msra.mxu0 0.0
      %1170 = vmatpush.msra.mxu0 0.0
      %1171 = vmatpush.msra.mxu0 0.0
      %1172 = vmatpush.msra.mxu0 0.0
      %1173 = vmatpush.msra.mxu0 0.0
      %1174 = vmatpush.msra.mxu0 0.0
      %1175 = vmatpush.msra.mxu0 0.0
      %1176 = vmatpush.msra.mxu0 0.0
      %1177 = vmatpush.msra.mxu0 0.0
      %1178 = vmatpush.msra.mxu0 %v1164
      %1179 = vmatpush.msra.mxu0 %v1163
      %1180 = vmatpush.msra.mxu0 %v1161
      %1181 = vmatpush.msra.mxu0 %v1158
      %1182 = vmatmul.f32.gmra.mxu0 %v401
      %v1183 = vpop.f32.mrf.mxu0
      %v1184 = vadd.f32 %v272, %v1183
      %1185 = vmatmul.f32.gmra.mxu0 %v404
      %v1186 = vpop.f32.mrf.mxu0
      %v1187 = vadd.f32 %v277, %v1186
      %1188 = vdwg.mxu0
      %vm1189 = vcmp.gt.f32.partialorder %v1184, 0.0
      %vm1190 = vcmp.gt.f32.partialorder %v1187, 0.0
      %v1191 = vmul.f32 %v1184, %v281
      %v1192 = vmul.f32 %v1187, %v285
      %v1193 = vsel %vm1189, %v1184, %v1191
      %v1194 = vsel %vm1190, %v1187, %v1192
      %s1195 = scalar_lea.vmem %s246, 36
      %v1196 = vld [vmem:[%s1195] sm:$0x7]
      %v1197 = vld [vmem:[%s1195 + $0x4] sm:$0x7]
      %v1198 = vld [vmem:[%s1195 + $0x8] sm:$0x7]
      %v1200 = vrot.slane %v1196, 5
      %1201 = vrot.lane.b32.xlu0 %v1200, 127
      %v1202 = vpop.permute.xlu0 %1201
      %v1204 = vrot.slane %v1196, 2
      %1205 = vrot.lane.b32.xlu0 %v1204, 126
      %v1206 = vpop.permute.xlu0 %1205
      %v1209 = vrot.slane %v1197, 7
      %v1211 = vrot.slane %v1197, 4
      %1212 = vrot.lane.b32.xlu0 %v1211, 127
      %v1213 = vpop.permute.xlu0 %1212
      %v1215 = vrot.slane %v1197, 1
      %1216 = vrot.lane.b32.xlu0 %v1215, 126
      %v1217 = vpop.permute.xlu0 %1216
      %v1220 = vrot.slane %v1198, 6
      %v1222 = vrot.slane %v1198, 3
      %1223 = vrot.lane.b32.xlu0 %v1222, 127
      %v1224 = vpop.permute.xlu0 %1223
      %1226 = vrot.lane.b32.xlu0 %v1198, 126
      %v1227 = vpop.permute.xlu0 %1226
      %v1228 = vsel %vm385, %v1196, %v1202
      %v1229 = vsel %vm387, %v1228, %v1206
      %v1230 = vsel %vm389, %v1206, %v1209
      %v1231 = vsel %vm391, %v1230, %v1213
      %v1232 = vsel %vm393, %v1231, %v1217
      %v1233 = vsel %vm395, %v1217, %v1220
      %v1234 = vsel %vm397, %v1233, %v1224
      %v1235 = vsel %vm385, %v1227, 0
      %1237 = vmatpush.msra.mxu0 0.0
      %1238 = vmatpush.msra.mxu0 0.0
      %1239 = vmatpush.msra.mxu0 0.0
      %1240 = vmatpush.msra.mxu0 0.0
      %1241 = vmatpush.msra.mxu0 0.0
      %1242 = vmatpush.msra.mxu0 0.0
      %1243 = vmatpush.msra.mxu0 0.0
      %1244 = vmatpush.msra.mxu0 0.0
      %1245 = vmatpush.msra.mxu0 0.0
      %1246 = vmatpush.msra.mxu0 0.0
      %1247 = vmatpush.msra.mxu0 0.0
      %1248 = vmatpush.msra.mxu0 0.0
      %1249 = vmatpush.msra.mxu0 %v1235
      %1250 = vmatpush.msra.mxu0 %v1234
      %1251 = vmatpush.msra.mxu0 %v1232
      %1252 = vmatpush.msra.mxu0 %v1229
      %1253 = vmatmul.f32.gmra.mxu0 %v401
      %v1254 = vpop.f32.mrf.mxu0
      %v1255 = vadd.f32 %v272, %v1254
      %1256 = vmatmul.f32.gmra.mxu0 %v404
      %v1257 = vpop.f32.mrf.mxu0
      %v1258 = vadd.f32 %v277, %v1257
      %1259 = vdwg.mxu0
      %vm1260 = vcmp.gt.f32.partialorder %v1255, 0.0
      %vm1261 = vcmp.gt.f32.partialorder %v1258, 0.0
      %v1262 = vmul.f32 %v1255, %v281
      %v1263 = vmul.f32 %v1258, %v285
      %v1264 = vsel %vm1260, %v1255, %v1262
      %v1265 = vsel %vm1261, %v1258, %v1263
      %v1266 = vmax.f32 %v1193, %v1264
      %v1267 = vmax.f32 %v1194, %v1265
      %1270 = vrot.lane.b32.xlu0 %v1266, 127
      %v1271 = vpop.permute.xlu0 %1270
      %1272 = vrot.lane.b32.xlu0 %v1267, 127
      %v1273 = vpop.permute.xlu0 %1272
      %v1276 = vsel %vm518, %v1271, %v1266
      %v1277 = vsel %vm518, %v1273, %v1267
      %v1278 = vmax.f32 %v1266, %v1276
      %v1279 = vmax.f32 %v1267, %v1277
      %v1281 = vsel %vm523, %v1278, 0
      %v1284 = vsel %vm523, %v1279, 0
      %1286 = vmatpush.msra.mxu0 0.0
      %1287 = vmatpush.msra.mxu0 0.0
      %1288 = vmatpush.msra.mxu0 0.0
      %1289 = vmatpush.msra.mxu0 0.0
      %1290 = vmatpush.msra.mxu0 0.0
      %1291 = vmatpush.msra.mxu0 0.0
      %1292 = vmatpush.msra.mxu0 0.0
      %1293 = vmatpush.msra.mxu0 0.0
      %1294 = vmatpush.msra.mxu0 0.0
      %1295 = vmatpush.msra.mxu0 0.0
      %1296 = vmatpush.msra.mxu0 0.0
      %1297 = vmatpush.msra.mxu0 0.0
      %1298 = vmatpush.msra.mxu0 0.0
      %1299 = vmatpush.msra.mxu0 0.0
      %1300 = vmatpush.msra.mxu0 %v531
      %1301 = vmatpush.msra.mxu0 %v351
      %1302 = vmatmul.f32.gmra.mxu0 %v1281
      %v1303 = vpop.f32.mrf.mxu0
      %v1304 = vadd.f32 0.0, %v1303
      %1305 = vmatmul.f32.gmra.mxu0 %v1284
      %v1306 = vpop.f32.mrf.mxu0
      %v1307 = vadd.f32 0.0, %v1306
      %1308 = vdwg.mxu0
      %s1309 = scalar_lea.vmem [#allocation2], 64
      %1310 = vst.msk [vmem:[%s1309] sm:$0xff] %vm556, %v1304
      %1311 = vst.msk [vmem:[%s1309 + $0x8] sm:$0x3] %vm558, %v1307
      %s1312 = scalar_lea.vmem %s246, 40
      %v1313 = vld [vmem:[%s1312] sm:$0x7]
      %v1314 = vld [vmem:[%s1312 + $0x4] sm:$0x7]
      %v1315 = vld [vmem:[%s1312 + $0x8] sm:$0x7]
      %v1317 = vrot.slane %v1313, 5
      %1318 = vrot.lane.b32.xlu0 %v1317, 127
      %v1319 = vpop.permute.xlu0 %1318
      %v1321 = vrot.slane %v1313, 2
      %1322 = vrot.lane.b32.xlu0 %v1321, 126
      %v1323 = vpop.permute.xlu0 %1322
      %v1326 = vrot.slane %v1314, 7
      %v1328 = vrot.slane %v1314, 4
      %1329 = vrot.lane.b32.xlu0 %v1328, 127
      %v1330 = vpop.permute.xlu0 %1329
      %v1332 = vrot.slane %v1314, 1
      %1333 = vrot.lane.b32.xlu0 %v1332, 126
      %v1334 = vpop.permute.xlu0 %1333
      %v1337 = vrot.slane %v1315, 6
      %v1339 = vrot.slane %v1315, 3
      %1340 = vrot.lane.b32.xlu0 %v1339, 127
      %v1341 = vpop.permute.xlu0 %1340
      %1343 = vrot.lane.b32.xlu0 %v1315, 126
      %v1344 = vpop.permute.xlu0 %1343
      %v1345 = vsel %vm385, %v1313, %v1319
      %v1346 = vsel %vm387, %v1345, %v1323
      %v1347 = vsel %vm389, %v1323, %v1326
      %v1348 = vsel %vm391, %v1347, %v1330
      %v1349 = vsel %vm393, %v1348, %v1334
      %v1350 = vsel %vm395, %v1334, %v1337
      %v1351 = vsel %vm397, %v1350, %v1341
      %v1352 = vsel %vm385, %v1344, 0
      %1354 = vmatpush.msra.mxu0 0.0
      %1355 = vmatpush.msra.mxu0 0.0
      %1356 = vmatpush.msra.mxu0 0.0
      %1357 = vmatpush.msra.mxu0 0.0
      %1358 = vmatpush.msra.mxu0 0.0
      %1359 = vmatpush.msra.mxu0 0.0
      %1360 = vmatpush.msra.mxu0 0.0
      %1361 = vmatpush.msra.mxu0 0.0
      %1362 = vmatpush.msra.mxu0 0.0
      %1363 = vmatpush.msra.mxu0 0.0
      %1364 = vmatpush.msra.mxu0 0.0
      %1365 = vmatpush.msra.mxu0 0.0
      %1366 = vmatpush.msra.mxu0 %v1352
      %1367 = vmatpush.msra.mxu0 %v1351
      %1368 = vmatpush.msra.mxu0 %v1349
      %1369 = vmatpush.msra.mxu0 %v1346
      %1370 = vmatmul.f32.gmra.mxu0 %v401
      %v1371 = vpop.f32.mrf.mxu0
      %v1372 = vadd.f32 %v272, %v1371
      %1373 = vmatmul.f32.gmra.mxu0 %v404
      %v1374 = vpop.f32.mrf.mxu0
      %v1375 = vadd.f32 %v277, %v1374
      %1376 = vdwg.mxu0
      %vm1377 = vcmp.gt.f32.partialorder %v1372, 0.0
      %vm1378 = vcmp.gt.f32.partialorder %v1375, 0.0
      %v1379 = vmul.f32 %v1372, %v281
      %v1380 = vmul.f32 %v1375, %v285
      %v1381 = vsel %vm1377, %v1372, %v1379
      %v1382 = vsel %vm1378, %v1375, %v1380
      %s1383 = scalar_lea.vmem %s246, 44
      %v1384 = vld [vmem:[%s1383] sm:$0x7]
      %v1385 = vld [vmem:[%s1383 + $0x4] sm:$0x7]
      %v1386 = vld [vmem:[%s1383 + $0x8] sm:$0x7]
      %v1388 = vrot.slane %v1384, 5
      %1389 = vrot.lane.b32.xlu0 %v1388, 127
      %v1390 = vpop.permute.xlu0 %1389
      %v1392 = vrot.slane %v1384, 2
      %1393 = vrot.lane.b32.xlu0 %v1392, 126
      %v1394 = vpop.permute.xlu0 %1393
      %v1397 = vrot.slane %v1385, 7
      %v1399 = vrot.slane %v1385, 4
      %1400 = vrot.lane.b32.xlu0 %v1399, 127
      %v1401 = vpop.permute.xlu0 %1400
      %v1403 = vrot.slane %v1385, 1
      %1404 = vrot.lane.b32.xlu0 %v1403, 126
      %v1405 = vpop.permute.xlu0 %1404
      %v1408 = vrot.slane %v1386, 6
      %v1410 = vrot.slane %v1386, 3
      %1411 = vrot.lane.b32.xlu0 %v1410, 127
      %v1412 = vpop.permute.xlu0 %1411
      %1414 = vrot.lane.b32.xlu0 %v1386, 126
      %v1415 = vpop.permute.xlu0 %1414
      %v1416 = vsel %vm385, %v1384, %v1390
      %v1417 = vsel %vm387, %v1416, %v1394
      %v1418 = vsel %vm389, %v1394, %v1397
      %v1419 = vsel %vm391, %v1418, %v1401
      %v1420 = vsel %vm393, %v1419, %v1405
      %v1421 = vsel %vm395, %v1405, %v1408
      %v1422 = vsel %vm397, %v1421, %v1412
      %v1423 = vsel %vm385, %v1415, 0
      %1425 = vmatpush.msra.mxu0 0.0
      %1426 = vmatpush.msra.mxu0 0.0
      %1427 = vmatpush.msra.mxu0 0.0
      %1428 = vmatpush.msra.mxu0 0.0
      %1429 = vmatpush.msra.mxu0 0.0
      %1430 = vmatpush.msra.mxu0 0.0
      %1431 = vmatpush.msra.mxu0 0.0
      %1432 = vmatpush.msra.mxu0 0.0
      %1433 = vmatpush.msra.mxu0 0.0
      %1434 = vmatpush.msra.mxu0 0.0
      %1435 = vmatpush.msra.mxu0 0.0
      %1436 = vmatpush.msra.mxu0 0.0
      %1437 = vmatpush.msra.mxu0 %v1423
      %1438 = vmatpush.msra.mxu0 %v1422
      %1439 = vmatpush.msra.mxu0 %v1420
      %1440 = vmatpush.msra.mxu0 %v1417
      %1441 = vmatmul.f32.gmra.mxu0 %v401
      %v1442 = vpop.f32.mrf.mxu0
      %v1443 = vadd.f32 %v272, %v1442
      %1444 = vmatmul.f32.gmra.mxu0 %v404
      %v1445 = vpop.f32.mrf.mxu0
      %v1446 = vadd.f32 %v277, %v1445
      %1447 = vdwg.mxu0
      %vm1448 = vcmp.gt.f32.partialorder %v1443, 0.0
      %vm1449 = vcmp.gt.f32.partialorder %v1446, 0.0
      %v1450 = vmul.f32 %v1443, %v281
      %v1451 = vmul.f32 %v1446, %v285
      %v1452 = vsel %vm1448, %v1443, %v1450
      %v1453 = vsel %vm1449, %v1446, %v1451
      %v1454 = vmax.f32 %v1381, %v1452
      %v1455 = vmax.f32 %v1382, %v1453
      %1458 = vrot.lane.b32.xlu0 %v1454, 127
      %v1459 = vpop.permute.xlu0 %1458
      %1460 = vrot.lane.b32.xlu0 %v1455, 127
      %v1461 = vpop.permute.xlu0 %1460
      %v1464 = vsel %vm518, %v1459, %v1454
      %v1465 = vsel %vm518, %v1461, %v1455
      %v1466 = vmax.f32 %v1454, %v1464
      %v1467 = vmax.f32 %v1455, %v1465
      %v1469 = vsel %vm523, %v1466, 0
      %v1472 = vsel %vm523, %v1467, 0
      %1474 = vmatpush.msra.mxu0 0.0
      %1475 = vmatpush.msra.mxu0 0.0
      %1476 = vmatpush.msra.mxu0 0.0
      %1477 = vmatpush.msra.mxu0 0.0
      %1478 = vmatpush.msra.mxu0 0.0
      %1479 = vmatpush.msra.mxu0 0.0
      %1480 = vmatpush.msra.mxu0 0.0
      %1481 = vmatpush.msra.mxu0 0.0
      %1482 = vmatpush.msra.mxu0 0.0
      %1483 = vmatpush.msra.mxu0 0.0
      %1484 = vmatpush.msra.mxu0 0.0
      %1485 = vmatpush.msra.mxu0 0.0
      %1486 = vmatpush.msra.mxu0 0.0
      %1487 = vmatpush.msra.mxu0 0.0
      %1488 = vmatpush.msra.mxu0 %v531
      %1489 = vmatpush.msra.mxu0 %v351
      %1490 = vmatmul.f32.gmra.mxu0 %v1469
      %v1491 = vpop.f32.mrf.mxu0
      %v1492 = vadd.f32 0.0, %v1491
      %1493 = vmatmul.f32.gmra.mxu0 %v1472
      %v1494 = vpop.f32.mrf.mxu0
      %v1495 = vadd.f32 0.0, %v1494
      %1496 = vdwg.mxu0
      %s1497 = scalar_lea.vmem [#allocation2], 80
      %1498 = vst.msk [vmem:[%s1497] sm:$0xff] %vm556, %v1492
      %1499 = vst.msk [vmem:[%s1497 + $0x8] sm:$0x3] %vm558, %v1495
      %s1500 = scalar_lea.vmem %s246, 48
      %v1501 = vld [vmem:[%s1500] sm:$0x7]
      %v1502 = vld [vmem:[%s1500 + $0x4] sm:$0x7]
      %v1503 = vld [vmem:[%s1500 + $0x8] sm:$0x7]
      %v1505 = vrot.slane %v1501, 5
      %1506 = vrot.lane.b32.xlu0 %v1505, 127
      %v1507 = vpop.permute.xlu0 %1506
      %v1509 = vrot.slane %v1501, 2
      %1510 = vrot.lane.b32.xlu0 %v1509, 126
      %v1511 = vpop.permute.xlu0 %1510
      %v1514 = vrot.slane %v1502, 7
      %v1516 = vrot.slane %v1502, 4
      %1517 = vrot.lane.b32.xlu0 %v1516, 127
      %v1518 = vpop.permute.xlu0 %1517
      %v1520 = vrot.slane %v1502, 1
      %1521 = vrot.lane.b32.xlu0 %v1520, 126
      %v1522 = vpop.permute.xlu0 %1521
      %v1525 = vrot.slane %v1503, 6
      %v1527 = vrot.slane %v1503, 3
      %1528 = vrot.lane.b32.xlu0 %v1527, 127
      %v1529 = vpop.permute.xlu0 %1528
      %1531 = vrot.lane.b32.xlu0 %v1503, 126
      %v1532 = vpop.permute.xlu0 %1531
      %v1533 = vsel %vm385, %v1501, %v1507
      %v1534 = vsel %vm387, %v1533, %v1511
      %v1535 = vsel %vm389, %v1511, %v1514
      %v1536 = vsel %vm391, %v1535, %v1518
      %v1537 = vsel %vm393, %v1536, %v1522
      %v1538 = vsel %vm395, %v1522, %v1525
      %v1539 = vsel %vm397, %v1538, %v1529
      %v1540 = vsel %vm385, %v1532, 0
      %1542 = vmatpush.msra.mxu0 0.0
      %1543 = vmatpush.msra.mxu0 0.0
      %1544 = vmatpush.msra.mxu0 0.0
      %1545 = vmatpush.msra.mxu0 0.0
      %1546 = vmatpush.msra.mxu0 0.0
      %1547 = vmatpush.msra.mxu0 0.0
      %1548 = vmatpush.msra.mxu0 0.0
      %1549 = vmatpush.msra.mxu0 0.0
      %1550 = vmatpush.msra.mxu0 0.0
      %1551 = vmatpush.msra.mxu0 0.0
      %1552 = vmatpush.msra.mxu0 0.0
      %1553 = vmatpush.msra.mxu0 0.0
      %1554 = vmatpush.msra.mxu0 %v1540
      %1555 = vmatpush.msra.mxu0 %v1539
      %1556 = vmatpush.msra.mxu0 %v1537
      %1557 = vmatpush.msra.mxu0 %v1534
      %1558 = vmatmul.f32.gmra.mxu0 %v401
      %v1559 = vpop.f32.mrf.mxu0
      %v1560 = vadd.f32 %v272, %v1559
      %1561 = vmatmul.f32.gmra.mxu0 %v404
      %v1562 = vpop.f32.mrf.mxu0
      %v1563 = vadd.f32 %v277, %v1562
      %1564 = vdwg.mxu0
      %vm1565 = vcmp.gt.f32.partialorder %v1560, 0.0
      %vm1566 = vcmp.gt.f32.partialorder %v1563, 0.0
      %v1567 = vmul.f32 %v1560, %v281
      %v1568 = vmul.f32 %v1563, %v285
      %v1569 = vsel %vm1565, %v1560, %v1567
      %v1570 = vsel %vm1566, %v1563, %v1568
      %s1571 = scalar_lea.vmem %s246, 52
      %v1572 = vld [vmem:[%s1571] sm:$0x7]
      %v1573 = vld [vmem:[%s1571 + $0x4] sm:$0x7]
      %v1574 = vld [vmem:[%s1571 + $0x8] sm:$0x7]
      %v1576 = vrot.slane %v1572, 5
      %1577 = vrot.lane.b32.xlu0 %v1576, 127
      %v1578 = vpop.permute.xlu0 %1577
      %v1580 = vrot.slane %v1572, 2
      %1581 = vrot.lane.b32.xlu0 %v1580, 126
      %v1582 = vpop.permute.xlu0 %1581
      %v1585 = vrot.slane %v1573, 7
      %v1587 = vrot.slane %v1573, 4
      %1588 = vrot.lane.b32.xlu0 %v1587, 127
      %v1589 = vpop.permute.xlu0 %1588
      %v1591 = vrot.slane %v1573, 1
      %1592 = vrot.lane.b32.xlu0 %v1591, 126
      %v1593 = vpop.permute.xlu0 %1592
      %v1596 = vrot.slane %v1574, 6
      %v1598 = vrot.slane %v1574, 3
      %1599 = vrot.lane.b32.xlu0 %v1598, 127
      %v1600 = vpop.permute.xlu0 %1599
      %1602 = vrot.lane.b32.xlu0 %v1574, 126
      %v1603 = vpop.permute.xlu0 %1602
      %v1604 = vsel %vm385, %v1572, %v1578
      %v1605 = vsel %vm387, %v1604, %v1582
      %v1606 = vsel %vm389, %v1582, %v1585
      %v1607 = vsel %vm391, %v1606, %v1589
      %v1608 = vsel %vm393, %v1607, %v1593
      %v1609 = vsel %vm395, %v1593, %v1596
      %v1610 = vsel %vm397, %v1609, %v1600
      %v1611 = vsel %vm385, %v1603, 0
      %1613 = vmatpush.msra.mxu0 0.0
      %1614 = vmatpush.msra.mxu0 0.0
      %1615 = vmatpush.msra.mxu0 0.0
      %1616 = vmatpush.msra.mxu0 0.0
      %1617 = vmatpush.msra.mxu0 0.0
      %1618 = vmatpush.msra.mxu0 0.0
      %1619 = vmatpush.msra.mxu0 0.0
      %1620 = vmatpush.msra.mxu0 0.0
      %1621 = vmatpush.msra.mxu0 0.0
      %1622 = vmatpush.msra.mxu0 0.0
      %1623 = vmatpush.msra.mxu0 0.0
      %1624 = vmatpush.msra.mxu0 0.0
      %1625 = vmatpush.msra.mxu0 %v1611
      %1626 = vmatpush.msra.mxu0 %v1610
      %1627 = vmatpush.msra.mxu0 %v1608
      %1628 = vmatpush.msra.mxu0 %v1605
      %1629 = vmatmul.f32.gmra.mxu0 %v401
      %v1630 = vpop.f32.mrf.mxu0
      %v1631 = vadd.f32 %v272, %v1630
      %1632 = vmatmul.f32.gmra.mxu0 %v404
      %v1633 = vpop.f32.mrf.mxu0
      %v1634 = vadd.f32 %v277, %v1633
      %1635 = vdwg.mxu0
      %vm1636 = vcmp.gt.f32.partialorder %v1631, 0.0
      %vm1637 = vcmp.gt.f32.partialorder %v1634, 0.0
      %v1638 = vmul.f32 %v1631, %v281
      %v1639 = vmul.f32 %v1634, %v285
      %v1640 = vsel %vm1636, %v1631, %v1638
      %v1641 = vsel %vm1637, %v1634, %v1639
      %v1642 = vmax.f32 %v1569, %v1640
      %v1643 = vmax.f32 %v1570, %v1641
      %1646 = vrot.lane.b32.xlu0 %v1642, 127
      %v1647 = vpop.permute.xlu0 %1646
      %1648 = vrot.lane.b32.xlu0 %v1643, 127
      %v1649 = vpop.permute.xlu0 %1648
      %v1652 = vsel %vm518, %v1647, %v1642
      %v1653 = vsel %vm518, %v1649, %v1643
      %v1654 = vmax.f32 %v1642, %v1652
      %v1655 = vmax.f32 %v1643, %v1653
      %v1657 = vsel %vm523, %v1654, 0
      %v1660 = vsel %vm523, %v1655, 0
      %1662 = vmatpush.msra.mxu0 0.0
      %1663 = vmatpush.msra.mxu0 0.0
      %1664 = vmatpush.msra.mxu0 0.0
      %1665 = vmatpush.msra.mxu0 0.0
      %1666 = vmatpush.msra.mxu0 0.0
      %1667 = vmatpush.msra.mxu0 0.0
      %1668 = vmatpush.msra.mxu0 0.0
      %1669 = vmatpush.msra.mxu0 0.0
      %1670 = vmatpush.msra.mxu0 0.0
      %1671 = vmatpush.msra.mxu0 0.0
      %1672 = vmatpush.msra.mxu0 0.0
      %1673 = vmatpush.msra.mxu0 0.0
      %1674 = vmatpush.msra.mxu0 0.0
      %1675 = vmatpush.msra.mxu0 0.0
      %1676 = vmatpush.msra.mxu0 %v531
      %1677 = vmatpush.msra.mxu0 %v351
      %1678 = vmatmul.f32.gmra.mxu0 %v1657
      %v1679 = vpop.f32.mrf.mxu0
      %v1680 = vadd.f32 0.0, %v1679
      %1681 = vmatmul.f32.gmra.mxu0 %v1660
      %v1682 = vpop.f32.mrf.mxu0
      %v1683 = vadd.f32 0.0, %v1682
      %1684 = vdwg.mxu0
      %s1685 = scalar_lea.vmem [#allocation2], 96
      %1686 = vst.msk [vmem:[%s1685] sm:$0xff] %vm556, %v1680
      %1687 = vst.msk [vmem:[%s1685 + $0x8] sm:$0x3] %vm558, %v1683
      %v1688 = vld [vmem:[#allocation2] sm:$0xff]
      %v1689 = vld [vmem:[#allocation2 + $0x8] sm:$0x3]
      %v1690 = vld [vmem:[#allocation2 + $0x10] sm:$0xff]
      %v1691 = vld [vmem:[#allocation2 + $0x18] sm:$0x3]
      %v1692 = vld [vmem:[#allocation2 + $0x20] sm:$0xff]
      %v1693 = vld [vmem:[#allocation2 + $0x28] sm:$0x3]
      %v1696 = vrot.slane %v1688, 6
      %v1697 = vrot.slane %v1689, 6
      %v1698 = vsel %vm395, %v1696, %v1697
      %1699 = vrot.lane.b32.xlu0 %v1696, 127
      %v1700 = vpop.permute.xlu0 %1699
      %1701 = vrot.lane.b32.xlu0 %v1698, 127
      %v1702 = vpop.permute.xlu0 %1701
      %v1705 = vrot.slane %v1688, 4
      %v1706 = vrot.slane %v1689, 4
      %v1707 = vsel %vm391, %v1705, %v1706
      %1708 = vrot.lane.b32.xlu0 %v1705, 126
      %v1709 = vpop.permute.xlu0 %1708
      %1710 = vrot.lane.b32.xlu0 %v1707, 126
      %v1711 = vpop.permute.xlu0 %1710
      %v1716 = vrot.slane %v1690, 2
      %v1717 = vrot.slane %v1691, 2
      %v1718 = vsel %vm387, %v1716, %v1717
      %1721 = vrot.lane.b32.xlu0 %v1690, 127
      %v1722 = vpop.permute.xlu0 %1721
      %1723 = vrot.lane.b32.xlu0 %v1691, 127
      %v1724 = vpop.permute.xlu0 %1723
      %v1727 = vrot.slane %v1690, 6
      %v1728 = vrot.slane %v1691, 6
      %v1729 = vsel %vm395, %v1727, %v1728
      %1730 = vrot.lane.b32.xlu0 %v1727, 126
      %v1731 = vpop.permute.xlu0 %1730
      %1732 = vrot.lane.b32.xlu0 %v1729, 126
      %v1733 = vpop.permute.xlu0 %1732
      %v1738 = vrot.slane %v1692, 4
      %v1739 = vrot.slane %v1693, 4
      %v1740 = vsel %vm391, %v1738, %v1739
      %v1743 = vrot.slane %v1692, 2
      %v1744 = vrot.slane %v1693, 2
      %v1745 = vsel %vm387, %v1743, %v1744
      %1746 = vrot.lane.b32.xlu0 %v1743, 127
      %v1747 = vpop.permute.xlu0 %1746
      %1748 = vrot.lane.b32.xlu0 %v1745, 127
      %v1749 = vpop.permute.xlu0 %1748
      %1752 = vrot.lane.b32.xlu0 %v1692, 126
      %v1753 = vpop.permute.xlu0 %1752
      %1754 = vrot.lane.b32.xlu0 %v1693, 126
      %v1755 = vpop.permute.xlu0 %1754
      %v1757 = vsel %vm395, %v1689, %v1700
      %v1758 = vsel %vm391, %v1702, %v1709
      %v1759 = vsel %vm387, %v1711, %v1716
      %v1760 = vsel %vm395, %v1724, %v1731
      %v1761 = vsel %vm391, %v1733, %v1738
      %v1762 = vsel %vm387, %v1740, %v1747
      %vm1763 = vcmask 736256
      %v1765 = vsel %vm1763, %v254, 0
      %v1768 = vsel %vm1763, %v255, 0
      %v1770 = vsel %vm395, %v1755, 0
      %1772 = vmatpush.msra.mxu0 0.0
      %1773 = vmatpush.msra.mxu0 0.0
      %1774 = vmatpush.msra.mxu0 0.0
      %1775 = vmatpush.msra.mxu0 0.0
      %1776 = vmatpush.msra.mxu0 %v1770
      %1777 = vmatpush.msra.mxu0 %v1753
      %1778 = vmatpush.msra.mxu0 %v1749
      %1779 = vmatpush.msra.mxu0 %v1762
      %1780 = vmatpush.msra.mxu0 %v1761
      %1781 = vmatpush.msra.mxu0 %v1760
      %1782 = vmatpush.msra.mxu0 %v1722
      %1783 = vmatpush.msra.mxu0 %v1718
      %1784 = vmatpush.msra.mxu0 %v1759
      %1785 = vmatpush.msra.mxu0 %v1758
      %1786 = vmatpush.msra.mxu0 %v1757
      %1787 = vmatpush.msra.mxu0 %v1688
      %1788 = vmatmul.f32.gmra.mxu0 %v1765
      %v1789 = vpop.f32.mrf.mxu0
      %v1790 = vadd.f32 %v289, %v1789
      %1791 = vmatmul.f32.gmra.mxu0 %v1768
      %v1792 = vpop.f32.mrf.mxu0
      %v1793 = vadd.f32 %v293, %v1792
      %1794 = vdwg.mxu0
      %vm1795 = vcmp.gt.f32.partialorder %v1790, 0.0
      %vm1796 = vcmp.gt.f32.partialorder %v1793, 0.0
      %v1797 = vmul.f32 %v1790, %v297
      %v1798 = vmul.f32 %v1793, %v301
      %v1799 = vsel %vm1795, %v1790, %v1797
      %v1800 = vsel %vm1796, %v1793, %v1798
      %vm1801 = vcmask 39936
      %1802 = vst.msk [vmem:[#allocation3] sm:$0xff] %vm1801, %v1799
      %1803 = vst.msk [vmem:[#allocation3 + $0x8] sm:$0xff] %vm1801, %v1800
      %v1804 = vld [vmem:[%s745] sm:$0xff]
      %v1805 = vld [vmem:[%s745 + $0x8] sm:$0x3]
      %v1806 = vld [vmem:[%s745 + $0x10] sm:$0xff]
      %v1807 = vld [vmem:[%s745 + $0x18] sm:$0x3]
      %v1808 = vld [vmem:[%s745 + $0x20] sm:$0xff]
      %v1809 = vld [vmem:[%s745 + $0x28] sm:$0x3]
      %v1812 = vrot.slane %v1804, 6
      %v1813 = vrot.slane %v1805, 6
      %v1814 = vsel %vm395, %v1812, %v1813
      %1815 = vrot.lane.b32.xlu0 %v1812, 127
      %v1816 = vpop.permute.xlu0 %1815
      %1817 = vrot.lane.b32.xlu0 %v1814, 127
      %v1818 = vpop.permute.xlu0 %1817
      %v1821 = vrot.slane %v1804, 4
      %v1822 = vrot.slane %v1805, 4
      %v1823 = vsel %vm391, %v1821, %v1822
      %1824 = vrot.lane.b32.xlu0 %v1821, 126
      %v1825 = vpop.permute.xlu0 %1824
      %1826 = vrot.lane.b32.xlu0 %v1823, 126
      %v1827 = vpop.permute.xlu0 %1826
      %v1832 = vrot.slane %v1806, 2
      %v1833 = vrot.slane %v1807, 2
      %v1834 = vsel %vm387, %v1832, %v1833
      %1837 = vrot.lane.b32.xlu0 %v1806, 127
      %v1838 = vpop.permute.xlu0 %1837
      %1839 = vrot.lane.b32.xlu0 %v1807, 127
      %v1840 = vpop.permute.xlu0 %1839
      %v1843 = vrot.slane %v1806, 6
      %v1844 = vrot.slane %v1807, 6
      %v1845 = vsel %vm395, %v1843, %v1844
      %1846 = vrot.lane.b32.xlu0 %v1843, 126
      %v1847 = vpop.permute.xlu0 %1846
      %1848 = vrot.lane.b32.xlu0 %v1845, 126
      %v1849 = vpop.permute.xlu0 %1848
      %v1854 = vrot.slane %v1808, 4
      %v1855 = vrot.slane %v1809, 4
      %v1856 = vsel %vm391, %v1854, %v1855
      %v1859 = vrot.slane %v1808, 2
      %v1860 = vrot.slane %v1809, 2
      %v1861 = vsel %vm387, %v1859, %v1860
      %1862 = vrot.lane.b32.xlu0 %v1859, 127
      %v1863 = vpop.permute.xlu0 %1862
      %1864 = vrot.lane.b32.xlu0 %v1861, 127
      %v1865 = vpop.permute.xlu0 %1864
      %1868 = vrot.lane.b32.xlu0 %v1808, 126
      %v1869 = vpop.permute.xlu0 %1868
      %1870 = vrot.lane.b32.xlu0 %v1809, 126
      %v1871 = vpop.permute.xlu0 %1870
      %v1873 = vsel %vm395, %v1805, %v1816
      %v1874 = vsel %vm391, %v1818, %v1825
      %v1875 = vsel %vm387, %v1827, %v1832
      %v1876 = vsel %vm395, %v1840, %v1847
      %v1877 = vsel %vm391, %v1849, %v1854
      %v1878 = vsel %vm387, %v1856, %v1863
      %v1879 = vsel %vm395, %v1871, 0
      %1881 = vmatpush.msra.mxu0 0.0
      %1882 = vmatpush.msra.mxu0 0.0
      %1883 = vmatpush.msra.mxu0 0.0
      %1884 = vmatpush.msra.mxu0 0.0
      %1885 = vmatpush.msra.mxu0 %v1879
      %1886 = vmatpush.msra.mxu0 %v1869
      %1887 = vmatpush.msra.mxu0 %v1865
      %1888 = vmatpush.msra.mxu0 %v1878
      %1889 = vmatpush.msra.mxu0 %v1877
      %1890 = vmatpush.msra.mxu0 %v1876
      %1891 = vmatpush.msra.mxu0 %v1838
      %1892 = vmatpush.msra.mxu0 %v1834
      %1893 = vmatpush.msra.mxu0 %v1875
      %1894 = vmatpush.msra.mxu0 %v1874
      %1895 = vmatpush.msra.mxu0 %v1873
      %1896 = vmatpush.msra.mxu0 %v1804
      %1897 = vmatmul.f32.gmra.mxu0 %v1765
      %v1898 = vpop.f32.mrf.mxu0
      %v1899 = vadd.f32 %v289, %v1898
      %1900 = vmatmul.f32.gmra.mxu0 %v1768
      %v1901 = vpop.f32.mrf.mxu0
      %v1902 = vadd.f32 %v293, %v1901
      %1903 = vdwg.mxu0
      %vm1904 = vcmp.gt.f32.partialorder %v1899, 0.0
      %vm1905 = vcmp.gt.f32.partialorder %v1902, 0.0
      %v1906 = vmul.f32 %v1899, %v297
      %v1907 = vmul.f32 %v1902, %v301
      %v1908 = vsel %vm1904, %v1899, %v1906
      %v1909 = vsel %vm1905, %v1902, %v1907
      %s1910 = scalar_lea.vmem [#allocation3], 16
      %1911 = vst.msk [vmem:[%s1910] sm:$0xff] %vm1801, %v1908
      %1912 = vst.msk [vmem:[%s1910 + $0x8] sm:$0xff] %vm1801, %v1909
      %v1913 = vld [vmem:[%s933] sm:$0xff]
      %v1914 = vld [vmem:[%s933 + $0x8] sm:$0x3]
      %v1915 = vld [vmem:[%s933 + $0x10] sm:$0xff]
      %v1916 = vld [vmem:[%s933 + $0x18] sm:$0x3]
      %v1917 = vld [vmem:[%s933 + $0x20] sm:$0xff]
      %v1918 = vld [vmem:[%s933 + $0x28] sm:$0x3]
      %v1921 = vrot.slane %v1913, 6
      %v1922 = vrot.slane %v1914, 6
      %v1923 = vsel %vm395, %v1921, %v1922
      %1924 = vrot.lane.b32.xlu0 %v1921, 127
      %v1925 = vpop.permute.xlu0 %1924
      %1926 = vrot.lane.b32.xlu0 %v1923, 127
      %v1927 = vpop.permute.xlu0 %1926
      %v1930 = vrot.slane %v1913, 4
      %v1931 = vrot.slane %v1914, 4
      %v1932 = vsel %vm391, %v1930, %v1931
      %1933 = vrot.lane.b32.xlu0 %v1930, 126
      %v1934 = vpop.permute.xlu0 %1933
      %1935 = vrot.lane.b32.xlu0 %v1932, 126
      %v1936 = vpop.permute.xlu0 %1935
      %v1941 = vrot.slane %v1915, 2
      %v1942 = vrot.slane %v1916, 2
      %v1943 = vsel %vm387, %v1941, %v1942
      %1946 = vrot.lane.b32.xlu0 %v1915, 127
      %v1947 = vpop.permute.xlu0 %1946
      %1948 = vrot.lane.b32.xlu0 %v1916, 127
      %v1949 = vpop.permute.xlu0 %1948
      %v1952 = vrot.slane %v1915, 6
      %v1953 = vrot.slane %v1916, 6
      %v1954 = vsel %vm395, %v1952, %v1953
      %1955 = vrot.lane.b32.xlu0 %v1952, 126
      %v1956 = vpop.permute.xlu0 %1955
      %1957 = vrot.lane.b32.xlu0 %v1954, 126
      %v1958 = vpop.permute.xlu0 %1957
      %v1963 = vrot.slane %v1917, 4
      %v1964 = vrot.slane %v1918, 4
      %v1965 = vsel %vm391, %v1963, %v1964
      %v1968 = vrot.slane %v1917, 2
      %v1969 = vrot.slane %v1918, 2
      %v1970 = vsel %vm387, %v1968, %v1969
      %1971 = vrot.lane.b32.xlu0 %v1968, 127
      %v1972 = vpop.permute.xlu0 %1971
      %1973 = vrot.lane.b32.xlu0 %v1970, 127
      %v1974 = vpop.permute.xlu0 %1973
      %1977 = vrot.lane.b32.xlu0 %v1917, 126
      %v1978 = vpop.permute.xlu0 %1977
      %1979 = vrot.lane.b32.xlu0 %v1918, 126
      %v1980 = vpop.permute.xlu0 %1979
      %v1982 = vsel %vm395, %v1914, %v1925
      %v1983 = vsel %vm391, %v1927, %v1934
      %v1984 = vsel %vm387, %v1936, %v1941
      %v1985 = vsel %vm395, %v1949, %v1956
      %v1986 = vsel %vm391, %v1958, %v1963
      %v1987 = vsel %vm387, %v1965, %v1972
      %v1988 = vsel %vm395, %v1980, 0
      %1990 = vmatpush.msra.mxu0 0.0
      %1991 = vmatpush.msra.mxu0 0.0
      %1992 = vmatpush.msra.mxu0 0.0
      %1993 = vmatpush.msra.mxu0 0.0
      %1994 = vmatpush.msra.mxu0 %v1988
      %1995 = vmatpush.msra.mxu0 %v1978
      %1996 = vmatpush.msra.mxu0 %v1974
      %1997 = vmatpush.msra.mxu0 %v1987
      %1998 = vmatpush.msra.mxu0 %v1986
      %1999 = vmatpush.msra.mxu0 %v1985
      %2000 = vmatpush.msra.mxu0 %v1947
      %2001 = vmatpush.msra.mxu0 %v1943
      %2002 = vmatpush.msra.mxu0 %v1984
      %2003 = vmatpush.msra.mxu0 %v1983
      %2004 = vmatpush.msra.mxu0 %v1982
      %2005 = vmatpush.msra.mxu0 %v1913
      %2006 = vmatmul.f32.gmra.mxu0 %v1765
      %v2007 = vpop.f32.mrf.mxu0
      %v2008 = vadd.f32 %v289, %v2007
      %2009 = vmatmul.f32.gmra.mxu0 %v1768
      %v2010 = vpop.f32.mrf.mxu0
      %v2011 = vadd.f32 %v293, %v2010
      %2012 = vdwg.mxu0
      %vm2013 = vcmp.gt.f32.partialorder %v2008, 0.0
      %vm2014 = vcmp.gt.f32.partialorder %v2011, 0.0
      %v2015 = vmul.f32 %v2008, %v297
      %v2016 = vmul.f32 %v2011, %v301
      %v2017 = vsel %vm2013, %v2008, %v2015
      %v2018 = vsel %vm2014, %v2011, %v2016
      %s2019 = scalar_lea.vmem [#allocation3], 32
      %2020 = vst.msk [vmem:[%s2019] sm:$0xff] %vm1801, %v2017
      %2021 = vst.msk [vmem:[%s2019 + $0x8] sm:$0xff] %vm1801, %v2018
      %v2022 = vld [vmem:[%s1121] sm:$0xff]
      %v2023 = vld [vmem:[%s1121 + $0x8] sm:$0x3]
      %v2024 = vld [vmem:[%s1121 + $0x10] sm:$0xff]
      %v2025 = vld [vmem:[%s1121 + $0x18] sm:$0x3]
      %v2026 = vld [vmem:[%s1121 + $0x20] sm:$0xff]
      %v2027 = vld [vmem:[%s1121 + $0x28] sm:$0x3]
      %v2030 = vrot.slane %v2022, 6
      %v2031 = vrot.slane %v2023, 6
      %v2032 = vsel %vm395, %v2030, %v2031
      %2033 = vrot.lane.b32.xlu0 %v2030, 127
      %v2034 = vpop.permute.xlu0 %2033
      %2035 = vrot.lane.b32.xlu0 %v2032, 127
      %v2036 = vpop.permute.xlu0 %2035
      %v2039 = vrot.slane %v2022, 4
      %v2040 = vrot.slane %v2023, 4
      %v2041 = vsel %vm391, %v2039, %v2040
      %2042 = vrot.lane.b32.xlu0 %v2039, 126
      %v2043 = vpop.permute.xlu0 %2042
      %2044 = vrot.lane.b32.xlu0 %v2041, 126
      %v2045 = vpop.permute.xlu0 %2044
      %v2050 = vrot.slane %v2024, 2
      %v2051 = vrot.slane %v2025, 2
      %v2052 = vsel %vm387, %v2050, %v2051
      %2055 = vrot.lane.b32.xlu0 %v2024, 127
      %v2056 = vpop.permute.xlu0 %2055
      %2057 = vrot.lane.b32.xlu0 %v2025, 127
      %v2058 = vpop.permute.xlu0 %2057
      %v2061 = vrot.slane %v2024, 6
      %v2062 = vrot.slane %v2025, 6
      %v2063 = vsel %vm395, %v2061, %v2062
      %2064 = vrot.lane.b32.xlu0 %v2061, 126
      %v2065 = vpop.permute.xlu0 %2064
      %2066 = vrot.lane.b32.xlu0 %v2063, 126
      %v2067 = vpop.permute.xlu0 %2066
      %v2072 = vrot.slane %v2026, 4
      %v2073 = vrot.slane %v2027, 4
      %v2074 = vsel %vm391, %v2072, %v2073
      %v2077 = vrot.slane %v2026, 2
      %v2078 = vrot.slane %v2027, 2
      %v2079 = vsel %vm387, %v2077, %v2078
      %2080 = vrot.lane.b32.xlu0 %v2077, 127
      %v2081 = vpop.permute.xlu0 %2080
      %2082 = vrot.lane.b32.xlu0 %v2079, 127
      %v2083 = vpop.permute.xlu0 %2082
      %2086 = vrot.lane.b32.xlu0 %v2026, 126
      %v2087 = vpop.permute.xlu0 %2086
      %2088 = vrot.lane.b32.xlu0 %v2027, 126
      %v2089 = vpop.permute.xlu0 %2088
      %v2091 = vsel %vm395, %v2023, %v2034
      %v2092 = vsel %vm391, %v2036, %v2043
      %v2093 = vsel %vm387, %v2045, %v2050
      %v2094 = vsel %vm395, %v2058, %v2065
      %v2095 = vsel %vm391, %v2067, %v2072
      %v2096 = vsel %vm387, %v2074, %v2081
      %v2097 = vsel %vm395, %v2089, 0
      %2099 = vmatpush.msra.mxu0 0.0
      %2100 = vmatpush.msra.mxu0 0.0
      %2101 = vmatpush.msra.mxu0 0.0
      %2102 = vmatpush.msra.mxu0 0.0
      %2103 = vmatpush.msra.mxu0 %v2097
      %2104 = vmatpush.msra.mxu0 %v2087
      %2105 = vmatpush.msra.mxu0 %v2083
      %2106 = vmatpush.msra.mxu0 %v2096
      %2107 = vmatpush.msra.mxu0 %v2095
      %2108 = vmatpush.msra.mxu0 %v2094
      %2109 = vmatpush.msra.mxu0 %v2056
      %2110 = vmatpush.msra.mxu0 %v2052
      %2111 = vmatpush.msra.mxu0 %v2093
      %2112 = vmatpush.msra.mxu0 %v2092
      %2113 = vmatpush.msra.mxu0 %v2091
      %2114 = vmatpush.msra.mxu0 %v2022
      %2115 = vmatmul.f32.gmra.mxu0 %v1765
      %v2116 = vpop.f32.mrf.mxu0
      %v2117 = vadd.f32 %v289, %v2116
      %2118 = vmatmul.f32.gmra.mxu0 %v1768
      %v2119 = vpop.f32.mrf.mxu0
      %v2120 = vadd.f32 %v293, %v2119
      %2121 = vdwg.mxu0
      %vm2122 = vcmp.gt.f32.partialorder %v2117, 0.0
      %vm2123 = vcmp.gt.f32.partialorder %v2120, 0.0
      %v2124 = vmul.f32 %v2117, %v297
      %v2125 = vmul.f32 %v2120, %v301
      %v2126 = vsel %vm2122, %v2117, %v2124
      %v2127 = vsel %vm2123, %v2120, %v2125
      %s2128 = scalar_lea.vmem [#allocation3], 48
      %2129 = vst.msk [vmem:[%s2128] sm:$0xff] %vm1801, %v2126
      %2130 = vst.msk [vmem:[%s2128 + $0x8] sm:$0xff] %vm1801, %v2127
      %v2131 = vld [vmem:[%s1309] sm:$0xff]
      %v2132 = vld [vmem:[%s1309 + $0x8] sm:$0x3]
      %v2133 = vld [vmem:[%s1309 + $0x10] sm:$0xff]
      %v2134 = vld [vmem:[%s1309 + $0x18] sm:$0x3]
      %v2135 = vld [vmem:[%s1309 + $0x20] sm:$0xff]
      %v2136 = vld [vmem:[%s1309 + $0x28] sm:$0x3]
      %v2139 = vrot.slane %v2131, 6
      %v2140 = vrot.slane %v2132, 6
      %v2141 = vsel %vm395, %v2139, %v2140
      %2142 = vrot.lane.b32.xlu0 %v2139, 127
      %v2143 = vpop.permute.xlu0 %2142
      %2144 = vrot.lane.b32.xlu0 %v2141, 127
      %v2145 = vpop.permute.xlu0 %2144
      %v2148 = vrot.slane %v2131, 4
      %v2149 = vrot.slane %v2132, 4
      %v2150 = vsel %vm391, %v2148, %v2149
      %2151 = vrot.lane.b32.xlu0 %v2148, 126
      %v2152 = vpop.permute.xlu0 %2151
      %2153 = vrot.lane.b32.xlu0 %v2150, 126
      %v2154 = vpop.permute.xlu0 %2153
      %v2159 = vrot.slane %v2133, 2
      %v2160 = vrot.slane %v2134, 2
      %v2161 = vsel %vm387, %v2159, %v2160
      %2164 = vrot.lane.b32.xlu0 %v2133, 127
      %v2165 = vpop.permute.xlu0 %2164
      %2166 = vrot.lane.b32.xlu0 %v2134, 127
      %v2167 = vpop.permute.xlu0 %2166
      %v2170 = vrot.slane %v2133, 6
      %v2171 = vrot.slane %v2134, 6
      %v2172 = vsel %vm395, %v2170, %v2171
      %2173 = vrot.lane.b32.xlu0 %v2170, 126
      %v2174 = vpop.permute.xlu0 %2173
      %2175 = vrot.lane.b32.xlu0 %v2172, 126
      %v2176 = vpop.permute.xlu0 %2175
      %v2181 = vrot.slane %v2135, 4
      %v2182 = vrot.slane %v2136, 4
      %v2183 = vsel %vm391, %v2181, %v2182
      %v2186 = vrot.slane %v2135, 2
      %v2187 = vrot.slane %v2136, 2
      %v2188 = vsel %vm387, %v2186, %v2187
      %2189 = vrot.lane.b32.xlu0 %v2186, 127
      %v2190 = vpop.permute.xlu0 %2189
      %2191 = vrot.lane.b32.xlu0 %v2188, 127
      %v2192 = vpop.permute.xlu0 %2191
      %2195 = vrot.lane.b32.xlu0 %v2135, 126
      %v2196 = vpop.permute.xlu0 %2195
      %2197 = vrot.lane.b32.xlu0 %v2136, 126
      %v2198 = vpop.permute.xlu0 %2197
      %v2200 = vsel %vm395, %v2132, %v2143
      %v2201 = vsel %vm391, %v2145, %v2152
      %v2202 = vsel %vm387, %v2154, %v2159
      %v2203 = vsel %vm395, %v2167, %v2174
      %v2204 = vsel %vm391, %v2176, %v2181
      %v2205 = vsel %vm387, %v2183, %v2190
      %v2206 = vsel %vm395, %v2198, 0
      %2208 = vmatpush.msra.mxu0 0.0
      %2209 = vmatpush.msra.mxu0 0.0
      %2210 = vmatpush.msra.mxu0 0.0
      %2211 = vmatpush.msra.mxu0 0.0
      %2212 = vmatpush.msra.mxu0 %v2206
      %2213 = vmatpush.msra.mxu0 %v2196
      %2214 = vmatpush.msra.mxu0 %v2192
      %2215 = vmatpush.msra.mxu0 %v2205
      %2216 = vmatpush.msra.mxu0 %v2204
      %2217 = vmatpush.msra.mxu0 %v2203
      %2218 = vmatpush.msra.mxu0 %v2165
      %2219 = vmatpush.msra.mxu0 %v2161
      %2220 = vmatpush.msra.mxu0 %v2202
      %2221 = vmatpush.msra.mxu0 %v2201
      %2222 = vmatpush.msra.mxu0 %v2200
      %2223 = vmatpush.msra.mxu0 %v2131
      %2224 = vmatmul.f32.gmra.mxu0 %v1765
      %v2225 = vpop.f32.mrf.mxu0
      %v2226 = vadd.f32 %v289, %v2225
      %2227 = vmatmul.f32.gmra.mxu0 %v1768
      %v2228 = vpop.f32.mrf.mxu0
      %v2229 = vadd.f32 %v293, %v2228
      %2230 = vdwg.mxu0
      %vm2231 = vcmp.gt.f32.partialorder %v2226, 0.0
      %vm2232 = vcmp.gt.f32.partialorder %v2229, 0.0
      %v2233 = vmul.f32 %v2226, %v297
      %v2234 = vmul.f32 %v2229, %v301
      %v2235 = vsel %vm2231, %v2226, %v2233
      %v2236 = vsel %vm2232, %v2229, %v2234
      %s2237 = scalar_lea.vmem [#allocation3], 64
      %2238 = vst.msk [vmem:[%s2237] sm:$0xff] %vm1801, %v2235
      %2239 = vst.msk [vmem:[%s2237 + $0x8] sm:$0xff] %vm1801, %v2236
      %v2240 = vld [vmem:[#allocation3] sm:$0xff]
      %v2241 = vld [vmem:[#allocation3 + $0x8] sm:$0xff]
      %v2242 = vld [vmem:[#allocation3 + $0x10] sm:$0xff]
      %v2243 = vld [vmem:[#allocation3 + $0x18] sm:$0xff]
      %v2244 = vld [vmem:[#allocation3 + $0x20] sm:$0xff]
      %v2245 = vld [vmem:[#allocation3 + $0x28] sm:$0xff]
      %2248 = vrot.lane.b32.xlu0 %v2240, 127
      %v2249 = vpop.permute.xlu0 %2248
      %2250 = vrot.lane.b32.xlu0 %v2241, 127
      %v2251 = vpop.permute.xlu0 %2250
      %2254 = vrot.lane.b32.xlu0 %v2240, 126
      %v2255 = vpop.permute.xlu0 %2254
      %2256 = vrot.lane.b32.xlu0 %v2241, 126
      %v2257 = vpop.permute.xlu0 %2256
      %2262 = vrot.lane.b32.xlu0 %v2242, 127
      %v2263 = vpop.permute.xlu0 %2262
      %2264 = vrot.lane.b32.xlu0 %v2243, 127
      %v2265 = vpop.permute.xlu0 %2264
      %2268 = vrot.lane.b32.xlu0 %v2242, 126
      %v2269 = vpop.permute.xlu0 %2268
      %2270 = vrot.lane.b32.xlu0 %v2243, 126
      %v2271 = vpop.permute.xlu0 %2270
      %2276 = vrot.lane.b32.xlu0 %v2244, 127
      %v2277 = vpop.permute.xlu0 %2276
      %2278 = vrot.lane.b32.xlu0 %v2245, 127
      %v2279 = vpop.permute.xlu0 %2278
      %2282 = vrot.lane.b32.xlu0 %v2244, 126
      %v2283 = vpop.permute.xlu0 %2282
      %2284 = vrot.lane.b32.xlu0 %v2245, 126
      %v2285 = vpop.permute.xlu0 %2284
      %vm2288 = vcmask 130048
      %v2290 = vsel %vm2288, %v257, 0
      %v2293 = vsel %vm2288, %v259, 0
      %v2296 = vsel %vm2288, %v261, 0
      %v2299 = vsel %vm2288, %v263, 0
      %2301 = vmatpush.msra.mxu0 %v2279
      %2302 = vmatpush.msra.mxu0 %v2277
      %2303 = vmatpush.msra.mxu0 %v2245
      %2304 = vmatpush.msra.mxu0 %v2244
      %2305 = vmatpush.msra.mxu0 %v2271
      %2306 = vmatpush.msra.mxu0 %v2269
      %2307 = vmatpush.msra.mxu0 %v2265
      %2308 = vmatpush.msra.mxu0 %v2263
      %2309 = vmatpush.msra.mxu0 %v2243
      %2310 = vmatpush.msra.mxu0 %v2242
      %2311 = vmatpush.msra.mxu0 %v2257
      %2312 = vmatpush.msra.mxu0 %v2255
      %2313 = vmatpush.msra.mxu0 %v2251
      %2314 = vmatpush.msra.mxu0 %v2249
      %2315 = vmatpush.msra.mxu0 %v2241
      %2316 = vmatpush.msra.mxu0 %v2240
      %2317 = vmatmul.f32.gmra.mxu0 %v256
      %v2318 = vpop.f32.mrf.mxu0
      %v2319 = vadd.f32 %v305, %v2318
      %2320 = vmatmul.f32.gmra.mxu0 %v258
      %v2321 = vpop.f32.mrf.mxu0
      %v2322 = vadd.f32 %v309, %v2321
      %2323 = vmatmul.f32.gmra.mxu0 %v260
      %v2324 = vpop.f32.mrf.mxu0
      %v2325 = vadd.f32 %v314, %v2324
      %2326 = vmatmul.f32.gmra.mxu0 %v262
      %v2327 = vpop.f32.mrf.mxu0
      %v2328 = vadd.f32 %v319, %v2327
      %2329 = vdwg.mxu0
      %2330 = vmatpush.msra.mxu0 0.0
      %2331 = vmatpush.msra.mxu0 0.0
      %2332 = vmatpush.msra.mxu0 0.0
      %2333 = vmatpush.msra.mxu0 0.0
      %2334 = vmatpush.msra.mxu0 0.0
      %2335 = vmatpush.msra.mxu0 0.0
      %2336 = vmatpush.msra.mxu0 0.0
      %2337 = vmatpush.msra.mxu0 0.0
      %2338 = vmatpush.msra.mxu0 0.0
      %2339 = vmatpush.msra.mxu0 0.0
      %2340 = vmatpush.msra.mxu0 0.0
      %2341 = vmatpush.msra.mxu0 0.0
      %2342 = vmatpush.msra.mxu0 0.0
      %2343 = vmatpush.msra.mxu0 0.0
      %2344 = vmatpush.msra.mxu0 %v2285
      %2345 = vmatpush.msra.mxu0 %v2283
      %2346 = vmatmul.f32.gmra.mxu0 %v2290
      %v2347 = vpop.f32.mrf.mxu0
      %v2348 = vadd.f32 %v2319, %v2347
      %2349 = vmatmul.f32.gmra.mxu0 %v2293
      %v2350 = vpop.f32.mrf.mxu0
      %v2351 = vadd.f32 %v2322, %v2350
      %2352 = vmatmul.f32.gmra.mxu0 %v2296
      %v2353 = vpop.f32.mrf.mxu0
      %v2354 = vadd.f32 %v2325, %v2353
      %2355 = vmatmul.f32.gmra.mxu0 %v2299
      %v2356 = vpop.f32.mrf.mxu0
      %v2357 = vadd.f32 %v2328, %v2356
      %2358 = vdwg.mxu0
      %vm2359 = vcmp.gt.f32.partialorder %v2348, 0.0
      %vm2360 = vcmp.gt.f32.partialorder %v2351, 0.0
      %vm2361 = vcmp.gt.f32.partialorder %v2354, 0.0
      %vm2362 = vcmp.gt.f32.partialorder %v2357, 0.0
      %v2363 = vmul.f32 %v2348, %v323
      %v2364 = vmul.f32 %v2351, %v327
      %v2365 = vmul.f32 %v2354, %v331
      %v2366 = vmul.f32 %v2357, %v335
      %v2367 = vsel %vm2359, %v2348, %v2363
      %v2368 = vsel %vm2360, %v2351, %v2364
      %v2369 = vsel %vm2361, %v2354, %v2365
      %v2370 = vsel %vm2362, %v2357, %v2366
      %vm2371 = vcmask 261120
      %v2373 = vsel %vm2371, %v264, 0
      %2375 = vmatpush.msra.mxu0 0.0
      %2376 = vmatpush.msra.mxu0 0.0
      %2377 = vmatpush.msra.mxu0 0.0
      %2378 = vmatpush.msra.mxu0 0.0
      %2379 = vmatpush.msra.mxu0 0.0
      %2380 = vmatpush.msra.mxu0 0.0
      %2381 = vmatpush.msra.mxu0 0.0
      %2382 = vmatpush.msra.mxu0 0.0
      %2383 = vmatpush.msra.mxu0 0.0
      %2384 = vmatpush.msra.mxu0 0.0
      %2385 = vmatpush.msra.mxu0 0.0
      %2386 = vmatpush.msra.mxu0 0.0
      %2387 = vmatpush.msra.mxu0 %v2370
      %2388 = vmatpush.msra.mxu0 %v2369
      %2389 = vmatpush.msra.mxu0 %v2368
      %2390 = vmatpush.msra.mxu0 %v2367
      %2391 = vmatmul.f32.gmra.mxu0 %v2373
      %v2392 = vpop.f32.mrf.mxu0
      %v2393 = vadd.f32 %v339, %v2392
      %2394 = vdwg.mxu0
      %v2396 = vrot.slane %v2393, 7
      %v2398 = vsub.f32 %v2393, %v2396
      %v2399 = vmul.f32 %v2398, 1.442695
      %v2400 = vpow.pop %v2399
      %v2401 = vadd.f32 %v2400, 1.0
      %v2402 = vrcp.pop %v2401
      %v2403 = vmul.f32 %v2401, %v2402
      %v2404 = vsub.f32 1.0, %v2403
      %v2405 = vmul.f32 %v2402, %v2404
      %v2406 = vadd.f32 %v2402, %v2405
      %vm2407 = vweird.f32 %v2401
      %vm2408 = vweird.f32 %v2402
      %vm2409 = vmor %vm2407, %vm2408
      %v2410 = vsel %vm2409, %v2402, %v2406
      %v2411 = vand.u32 2147483647, %v2401
      %vm2412 = vcmp.eq.f32.partialorder %v2411, 8.507059e+37
      %v2413 = vand.u32 %v2401, 2147483648
      %v2414 = vor.u32 1.1754944e-38, %v2413
      %v2415 = vsel %vm2412, %v2414, %v2410
      %v2416 = vmul.f32 1.0, %v2415
      %v2417 = vsub.f32 1.0, %v2416
      %v2419 = vrot.slane %v2416, 1
      %v2421 = vsel %vm391, %v2393, %v2419
      %v2422 = vsel %vm397, %v2421, %v2417
      %vm2423 = vcmask 21504
      %2424 = vst.msk [vmem:[%s251] sm:$0x3f] %vm2423, %v2422
      %v2425 = vld [vmem:[%s1910] sm:$0xff]
      %v2426 = vld [vmem:[%s1910 + $0x8] sm:$0xff]
      %v2427 = vld [vmem:[%s1910 + $0x10] sm:$0xff]
      %v2428 = vld [vmem:[%s1910 + $0x18] sm:$0xff]
      %v2429 = vld [vmem:[%s1910 + $0x20] sm:$0xff]
      %v2430 = vld [vmem:[%s1910 + $0x28] sm:$0xff]
      %2433 = vrot.lane.b32.xlu0 %v2425, 127
      %v2434 = vpop.permute.xlu0 %2433
      %2435 = vrot.lane.b32.xlu0 %v2426, 127
      %v2436 = vpop.permute.xlu0 %2435
      %2439 = vrot.lane.b32.xlu0 %v2425, 126
      %v2440 = vpop.permute.xlu0 %2439
      %2441 = vrot.lane.b32.xlu0 %v2426, 126
      %v2442 = vpop.permute.xlu0 %2441
      %2447 = vrot.lane.b32.xlu0 %v2427, 127
      %v2448 = vpop.permute.xlu0 %2447
      %2449 = vrot.lane.b32.xlu0 %v2428, 127
      %v2450 = vpop.permute.xlu0 %2449
      %2453 = vrot.lane.b32.xlu0 %v2427, 126
      %v2454 = vpop.permute.xlu0 %2453
      %2455 = vrot.lane.b32.xlu0 %v2428, 126
      %v2456 = vpop.permute.xlu0 %2455
      %2461 = vrot.lane.b32.xlu0 %v2429, 127
      %v2462 = vpop.permute.xlu0 %2461
      %2463 = vrot.lane.b32.xlu0 %v2430, 127
      %v2464 = vpop.permute.xlu0 %2463
      %2467 = vrot.lane.b32.xlu0 %v2429, 126
      %v2468 = vpop.permute.xlu0 %2467
      %2469 = vrot.lane.b32.xlu0 %v2430, 126
      %v2470 = vpop.permute.xlu0 %2469
      %2473 = vmatpush.msra.mxu0 %v2464
      %2474 = vmatpush.msra.mxu0 %v2462
      %2475 = vmatpush.msra.mxu0 %v2430
      %2476 = vmatpush.msra.mxu0 %v2429
      %2477 = vmatpush.msra.mxu0 %v2456
      %2478 = vmatpush.msra.mxu0 %v2454
      %2479 = vmatpush.msra.mxu0 %v2450
      %2480 = vmatpush.msra.mxu0 %v2448
      %2481 = vmatpush.msra.mxu0 %v2428
      %2482 = vmatpush.msra.mxu0 %v2427
      %2483 = vmatpush.msra.mxu0 %v2442
      %2484 = vmatpush.msra.mxu0 %v2440
      %2485 = vmatpush.msra.mxu0 %v2436
      %2486 = vmatpush.msra.mxu0 %v2434
      %2487 = vmatpush.msra.mxu0 %v2426
      %2488 = vmatpush.msra.mxu0 %v2425
      %2489 = vmatmul.f32.gmra.mxu0 %v256
      %v2490 = vpop.f32.mrf.mxu0
      %v2491 = vadd.f32 %v305, %v2490
      %2492 = vmatmul.f32.gmra.mxu0 %v258
      %v2493 = vpop.f32.mrf.mxu0
      %v2494 = vadd.f32 %v309, %v2493
      %2495 = vmatmul.f32.gmra.mxu0 %v260
      %v2496 = vpop.f32.mrf.mxu0
      %v2497 = vadd.f32 %v314, %v2496
      %2498 = vmatmul.f32.gmra.mxu0 %v262
      %v2499 = vpop.f32.mrf.mxu0
      %v2500 = vadd.f32 %v319, %v2499
      %2501 = vdwg.mxu0
      %2502 = vmatpush.msra.mxu0 0.0
      %2503 = vmatpush.msra.mxu0 0.0
      %2504 = vmatpush.msra.mxu0 0.0
      %2505 = vmatpush.msra.mxu0 0.0
      %2506 = vmatpush.msra.mxu0 0.0
      %2507 = vmatpush.msra.mxu0 0.0
      %2508 = vmatpush.msra.mxu0 0.0
      %2509 = vmatpush.msra.mxu0 0.0
      %2510 = vmatpush.msra.mxu0 0.0
      %2511 = vmatpush.msra.mxu0 0.0
      %2512 = vmatpush.msra.mxu0 0.0
      %2513 = vmatpush.msra.mxu0 0.0
      %2514 = vmatpush.msra.mxu0 0.0
      %2515 = vmatpush.msra.mxu0 0.0
      %2516 = vmatpush.msra.mxu0 %v2470
      %2517 = vmatpush.msra.mxu0 %v2468
      %2518 = vmatmul.f32.gmra.mxu0 %v2290
      %v2519 = vpop.f32.mrf.mxu0
      %v2520 = vadd.f32 %v2491, %v2519
      %2521 = vmatmul.f32.gmra.mxu0 %v2293
      %v2522 = vpop.f32.mrf.mxu0
      %v2523 = vadd.f32 %v2494, %v2522
      %2524 = vmatmul.f32.gmra.mxu0 %v2296
      %v2525 = vpop.f32.mrf.mxu0
      %v2526 = vadd.f32 %v2497, %v2525
      %2527 = vmatmul.f32.gmra.mxu0 %v2299
      %v2528 = vpop.f32.mrf.mxu0
      %v2529 = vadd.f32 %v2500, %v2528
      %2530 = vdwg.mxu0
      %vm2531 = vcmp.gt.f32.partialorder %v2520, 0.0
      %vm2532 = vcmp.gt.f32.partialorder %v2523, 0.0
      %vm2533 = vcmp.gt.f32.partialorder %v2526, 0.0
      %vm2534 = vcmp.gt.f32.partialorder %v2529, 0.0
      %v2535 = vmul.f32 %v2520, %v323
      %v2536 = vmul.f32 %v2523, %v327
      %v2537 = vmul.f32 %v2526, %v331
      %v2538 = vmul.f32 %v2529, %v335
      %v2539 = vsel %vm2531, %v2520, %v2535
      %v2540 = vsel %vm2532, %v2523, %v2536
      %v2541 = vsel %vm2533, %v2526, %v2537
      %v2542 = vsel %vm2534, %v2529, %v2538
      %2543 = vmatpush.msra.mxu0 0.0
      %2544 = vmatpush.msra.mxu0 0.0
      %2545 = vmatpush.msra.mxu0 0.0
      %2546 = vmatpush.msra.mxu0 0.0
      %2547 = vmatpush.msra.mxu0 0.0
      %2548 = vmatpush.msra.mxu0 0.0
      %2549 = vmatpush.msra.mxu0 0.0
      %2550 = vmatpush.msra.mxu0 0.0
      %2551 = vmatpush.msra.mxu0 0.0
      %2552 = vmatpush.msra.mxu0 0.0
      %2553 = vmatpush.msra.mxu0 0.0
      %2554 = vmatpush.msra.mxu0 0.0
      %2555 = vmatpush.msra.mxu0 %v2542
      %2556 = vmatpush.msra.mxu0 %v2541
      %2557 = vmatpush.msra.mxu0 %v2540
      %2558 = vmatpush.msra.mxu0 %v2539
      %2559 = vmatmul.f32.gmra.mxu0 %v2373
      %v2560 = vpop.f32.mrf.mxu0
      %v2561 = vadd.f32 %v339, %v2560
      %2562 = vdwg.mxu0
      %v2564 = vrot.slane %v2561, 7
      %v2566 = vsub.f32 %v2561, %v2564
      %v2567 = vmul.f32 %v2566, 1.442695
      %v2568 = vpow.pop %v2567
      %v2569 = vadd.f32 %v2568, 1.0
      %v2570 = vrcp.pop %v2569
      %v2571 = vmul.f32 %v2569, %v2570
      %v2572 = vsub.f32 1.0, %v2571
      %v2573 = vmul.f32 %v2570, %v2572
      %v2574 = vadd.f32 %v2570, %v2573
      %vm2575 = vweird.f32 %v2569
      %vm2576 = vweird.f32 %v2570
      %vm2577 = vmor %vm2575, %vm2576
      %v2578 = vsel %vm2577, %v2570, %v2574
      %v2579 = vand.u32 2147483647, %v2569
      %vm2580 = vcmp.eq.f32.partialorder %v2579, 8.507059e+37
      %v2581 = vand.u32 %v2569, 2147483648
      %v2582 = vor.u32 1.1754944e-38, %v2581
      %v2583 = vsel %vm2580, %v2582, %v2578
      %v2584 = vmul.f32 1.0, %v2583
      %v2585 = vsub.f32 1.0, %v2584
      %v2587 = vrot.slane %v2584, 1
      %v2589 = vsel %vm391, %v2561, %v2587
      %v2590 = vsel %vm397, %v2589, %v2585
      %s2591 = scalar_lea.vmem %s251, 8
      %2592 = vst.msk [vmem:[%s2591] sm:$0x3f] %vm2423, %v2590
      %v2593 = vld [vmem:[%s2019] sm:$0xff]
      %v2594 = vld [vmem:[%s2019 + $0x8] sm:$0xff]
      %v2595 = vld [vmem:[%s2019 + $0x10] sm:$0xff]
      %v2596 = vld [vmem:[%s2019 + $0x18] sm:$0xff]
      %v2597 = vld [vmem:[%s2019 + $0x20] sm:$0xff]
      %v2598 = vld [vmem:[%s2019 + $0x28] sm:$0xff]
      %2601 = vrot.lane.b32.xlu0 %v2593, 127
      %v2602 = vpop.permute.xlu0 %2601
      %2603 = vrot.lane.b32.xlu0 %v2594, 127
      %v2604 = vpop.permute.xlu0 %2603
      %2607 = vrot.lane.b32.xlu0 %v2593, 126
      %v2608 = vpop.permute.xlu0 %2607
      %2609 = vrot.lane.b32.xlu0 %v2594, 126
      %v2610 = vpop.permute.xlu0 %2609
      %2615 = vrot.lane.b32.xlu0 %v2595, 127
      %v2616 = vpop.permute.xlu0 %2615
      %2617 = vrot.lane.b32.xlu0 %v2596, 127
      %v2618 = vpop.permute.xlu0 %2617
      %2621 = vrot.lane.b32.xlu0 %v2595, 126
      %v2622 = vpop.permute.xlu0 %2621
      %2623 = vrot.lane.b32.xlu0 %v2596, 126
      %v2624 = vpop.permute.xlu0 %2623
      %2629 = vrot.lane.b32.xlu0 %v2597, 127
      %v2630 = vpop.permute.xlu0 %2629
      %2631 = vrot.lane.b32.xlu0 %v2598, 127
      %v2632 = vpop.permute.xlu0 %2631
      %2635 = vrot.lane.b32.xlu0 %v2597, 126
      %v2636 = vpop.permute.xlu0 %2635
      %2637 = vrot.lane.b32.xlu0 %v2598, 126
      %v2638 = vpop.permute.xlu0 %2637
      %2641 = vmatpush.msra.mxu0 %v2632
      %2642 = vmatpush.msra.mxu0 %v2630
      %2643 = vmatpush.msra.mxu0 %v2598
      %2644 = vmatpush.msra.mxu0 %v2597
      %2645 = vmatpush.msra.mxu0 %v2624
      %2646 = vmatpush.msra.mxu0 %v2622
      %2647 = vmatpush.msra.mxu0 %v2618
      %2648 = vmatpush.msra.mxu0 %v2616
      %2649 = vmatpush.msra.mxu0 %v2596
      %2650 = vmatpush.msra.mxu0 %v2595
      %2651 = vmatpush.msra.mxu0 %v2610
      %2652 = vmatpush.msra.mxu0 %v2608
      %2653 = vmatpush.msra.mxu0 %v2604
      %2654 = vmatpush.msra.mxu0 %v2602
      %2655 = vmatpush.msra.mxu0 %v2594
      %2656 = vmatpush.msra.mxu0 %v2593
      %2657 = vmatmul.f32.gmra.mxu0 %v256
      %v2658 = vpop.f32.mrf.mxu0
      %v2659 = vadd.f32 %v305, %v2658
      %2660 = vmatmul.f32.gmra.mxu0 %v258
      %v2661 = vpop.f32.mrf.mxu0
      %v2662 = vadd.f32 %v309, %v2661
      %2663 = vmatmul.f32.gmra.mxu0 %v260
      %v2664 = vpop.f32.mrf.mxu0
      %v2665 = vadd.f32 %v314, %v2664
      %2666 = vmatmul.f32.gmra.mxu0 %v262
      %v2667 = vpop.f32.mrf.mxu0
      %v2668 = vadd.f32 %v319, %v2667
      %2669 = vdwg.mxu0
      %2670 = vmatpush.msra.mxu0 0.0
      %2671 = vmatpush.msra.mxu0 0.0
      %2672 = vmatpush.msra.mxu0 0.0
      %2673 = vmatpush.msra.mxu0 0.0
      %2674 = vmatpush.msra.mxu0 0.0
      %2675 = vmatpush.msra.mxu0 0.0
      %2676 = vmatpush.msra.mxu0 0.0
      %2677 = vmatpush.msra.mxu0 0.0
      %2678 = vmatpush.msra.mxu0 0.0
      %2679 = vmatpush.msra.mxu0 0.0
      %2680 = vmatpush.msra.mxu0 0.0
      %2681 = vmatpush.msra.mxu0 0.0
      %2682 = vmatpush.msra.mxu0 0.0
      %2683 = vmatpush.msra.mxu0 0.0
      %2684 = vmatpush.msra.mxu0 %v2638
      %2685 = vmatpush.msra.mxu0 %v2636
      %2686 = vmatmul.f32.gmra.mxu0 %v2290
      %v2687 = vpop.f32.mrf.mxu0
      %v2688 = vadd.f32 %v2659, %v2687
      %2689 = vmatmul.f32.gmra.mxu0 %v2293
      %v2690 = vpop.f32.mrf.mxu0
      %v2691 = vadd.f32 %v2662, %v2690
      %2692 = vmatmul.f32.gmra.mxu0 %v2296
      %v2693 = vpop.f32.mrf.mxu0
      %v2694 = vadd.f32 %v2665, %v2693
      %2695 = vmatmul.f32.gmra.mxu0 %v2299
      %v2696 = vpop.f32.mrf.mxu0
      %v2697 = vadd.f32 %v2668, %v2696
      %2698 = vdwg.mxu0
      %vm2699 = vcmp.gt.f32.partialorder %v2688, 0.0
      %vm2700 = vcmp.gt.f32.partialorder %v2691, 0.0
      %vm2701 = vcmp.gt.f32.partialorder %v2694, 0.0
      %vm2702 = vcmp.gt.f32.partialorder %v2697, 0.0
      %v2703 = vmul.f32 %v2688, %v323
      %v2704 = vmul.f32 %v2691, %v327
      %v2705 = vmul.f32 %v2694, %v331
      %v2706 = vmul.f32 %v2697, %v335
      %v2707 = vsel %vm2699, %v2688, %v2703
      %v2708 = vsel %vm2700, %v2691, %v2704
      %v2709 = vsel %vm2701, %v2694, %v2705
      %v2710 = vsel %vm2702, %v2697, %v2706
      %2711 = vmatpush.msra.mxu0 0.0
      %2712 = vmatpush.msra.mxu0 0.0
      %2713 = vmatpush.msra.mxu0 0.0
      %2714 = vmatpush.msra.mxu0 0.0
      %2715 = vmatpush.msra.mxu0 0.0
      %2716 = vmatpush.msra.mxu0 0.0
      %2717 = vmatpush.msra.mxu0 0.0
      %2718 = vmatpush.msra.mxu0 0.0
      %2719 = vmatpush.msra.mxu0 0.0
      %2720 = vmatpush.msra.mxu0 0.0
      %2721 = vmatpush.msra.mxu0 0.0
      %2722 = vmatpush.msra.mxu0 0.0
      %2723 = vmatpush.msra.mxu0 %v2710
      %2724 = vmatpush.msra.mxu0 %v2709
      %2725 = vmatpush.msra.mxu0 %v2708
      %2726 = vmatpush.msra.mxu0 %v2707
      %2727 = vmatmul.f32.gmra.mxu0 %v2373
      %v2728 = vpop.f32.mrf.mxu0
      %v2729 = vadd.f32 %v339, %v2728
      %2730 = vdwg.mxu0
      %v2732 = vrot.slane %v2729, 7
      %v2734 = vsub.f32 %v2729, %v2732
      %v2735 = vmul.f32 %v2734, 1.442695
      %v2736 = vpow.pop %v2735
      %v2737 = vadd.f32 %v2736, 1.0
      %v2738 = vrcp.pop %v2737
      %v2739 = vmul.f32 %v2737, %v2738
      %v2740 = vsub.f32 1.0, %v2739
      %v2741 = vmul.f32 %v2738, %v2740
      %v2742 = vadd.f32 %v2738, %v2741
      %vm2743 = vweird.f32 %v2737
      %vm2744 = vweird.f32 %v2738
      %vm2745 = vmor %vm2743, %vm2744
      %v2746 = vsel %vm2745, %v2738, %v2742
      %v2747 = vand.u32 2147483647, %v2737
      %vm2748 = vcmp.eq.f32.partialorder %v2747, 8.507059e+37
      %v2749 = vand.u32 %v2737, 2147483648
      %v2750 = vor.u32 1.1754944e-38, %v2749
      %v2751 = vsel %vm2748, %v2750, %v2746
      %v2752 = vmul.f32 1.0, %v2751
      %v2753 = vsub.f32 1.0, %v2752
      %v2755 = vrot.slane %v2752, 1
      %v2757 = vsel %vm391, %v2729, %v2755
      %v2758 = vsel %vm397, %v2757, %v2753
      %s2759 = scalar_lea.vmem %s251, 16
      %2760 = vst.msk [vmem:[%s2759] sm:$0x3f] %vm2423, %v2758
      %p2761 = scmp.lt.s32.totalorder %s17, 1
      %s2762 = scalar_select %p2761, %s17, 1
      %s2763 = smul.addr %s2762, 3
      %s2764 = smul.addr %s2763, 8
      %s2765 = scalar_lea.vmem %s6, %s2764
      // Predicated region
      $region45: #{pnet_forward.1} parent=43 // pred_check
        %p2766 = pneg %p166
      $region46: #{pnet_forward.1} parent=43 // pred_check_branch
        %2768 = sbr.rel (%p2766) target = $region48
      $region47: #{pnet_forward.1} parent=43 // pred_region
        _
      $region48: #{pnet_forward.1} parent=43 // pred_fallthru
        _
    $region44: #{pnet_forward.1} parent=5 // pred_fallthru
      _
    %p2769 = scmp.le.s32.totalorder 2, %s12
    // Predicated region
    $region49: #{pnet_forward.1} parent=5 // pred_check
      %p2770 = pneg %p2769
    $region50: #{pnet_forward.1} parent=5 // pred_check_branch
      %2772 = sbr.rel (%p2770) target = $region52
    $region51: #{pnet_forward.1} parent=5 // pred_region
      %s2773 = ssub.s32 %s12, 2
      // Predicated region
      $region53: #{pnet_forward.1} parent=51 // pred_check
        %p2774 = pneg %p172
      $region54: #{pnet_forward.1} parent=51 // pred_check_branch
        %2776 = sbr.rel (%p2774) target = $region56
      $region55: #{pnet_forward.1} parent=51 // pred_region
        %p2777 = scmp.lt.s32.totalorder %s18, 1
        %s2778 = scalar_select %p2777, %s18, 1
        %s2779 = smul.addr %s2778, 3
        %s2780 = smul.addr %s2779, 8
        %s2781 = scalar_lea.vmem %s6, %s2780
      $region56: #{pnet_forward.1} parent=51 // pred_fallthru
        _
    $region52: #{pnet_forward.1} parent=5 // pred_fallthru
      _
  $region6: #{pnet_forward.1} parent=0 // loop_footer
    %s16 = sadd.s32 1, %s12
  $region7: #{pnet_forward.1} parent=0 // loop_footer_branch
    %11 = sbr.rel target = $region3
  $region8: #{pnet_forward.1} parent=0 // loop_exit
    _

</llo_original>
